<compile_context>
chip_gen: v7x
topology: tpu7x:2x2x1
jax: 0.10.0
libtpu: 0.0.40
codegen_flags: <defaults>
</compile_context>

<pallas_src>
import numpy as np
import jax
import jax.numpy as jnp
from jax.experimental import pallas as pl
from jax.experimental.pallas import tpu as pltpu


# --------------------------- parameter preparation -------------------------- #

def _tap_matrix(w_pt, groups, kh, kw):
    """PyTorch ConvTranspose2d weight tap (kh,kw) -> dense (Cin, Cout) matrix
    (group block-diagonal)."""
    w = np.asarray(w_pt, np.float32)
    cin, cg, _, _ = w.shape
    cout = cg * groups
    cing = cin // groups
    m = np.zeros((cin, cout), np.float32)
    for g in range(groups):
        m[g * cing:(g + 1) * cing, g * cg:(g + 1) * cg] = \
            w[g * cing:(g + 1) * cing, :, kh, kw]
    return m


def _row_matrix(w_pt, groups, kh, w_in, w_out, stride):
    """Banded matrix for one kh tap: maps a flattened input row (Win*Cin) to a
    flattened output row (Wout*Cout), folding the width-direction transposed
    conv (stride + all kw taps) and channel mixing into a single matmul
    operand:  A[iw*Cin+ci, ow*Cout+co] = w[ci,co,kh,kw]  where ow = s*iw+kw."""
    cin = w_pt.shape[0]
    cout = w_pt.shape[1] * groups
    k = w_pt.shape[2]
    a = np.zeros((w_in * cin, w_out * cout), np.float32)
    for kw in range(k):
        tap = _tap_matrix(w_pt, groups, kh, kw)
        for iw in range(w_in):
            ow = stride * iw + kw
            if 0 <= ow < w_out:
                a[iw * cin:(iw + 1) * cin, ow * cout:(ow + 1) * cout] += tap
    return a


def prepare_params(params):
    """One-time conversion of the PyTorch-layout weights into the big
    lane-dense matmul operands consumed by the fused kernel."""
    (w1, b1), (w2, b2), (w3, b3) = params
    # layer 1: W 8 -> 17 (stride 2, K 3, groups 2); kernel slice j of the
    # H-padded input multiplies A1[kh = 2 - j].
    a1 = np.stack([_row_matrix(w1, 2, kh, 8, 17, 2) for kh in (2, 1, 0)])
    # layer 2: W 17 -> 34 (stride 2, K 2)
    a2 = np.stack([_row_matrix(w2, 1, kh, 17, 34, 2) for kh in (0, 1)])
    # layer 3: W 34 -> 35 (stride 1, K 2)
    a3 = np.stack([_row_matrix(w3, 1, kh, 34, 35, 1) for kh in (0, 1)])
    b1r = np.tile(np.asarray(b1, np.float32), 17)[None, :]    # (1, 272)
    b2r = np.tile(np.asarray(b2, np.float32), 34)[None, :]    # (1, 272)
    b3r = np.tile(np.asarray(b3, np.float32), 35)[None, :]    # (1, 280)
    return tuple(jnp.asarray(v) for v in (a1, a2, a3, b1r, b2r, b3r))


# ----------------------------- fused Pallas kernel -------------------------- #

def _fused_kernel(x_ref, a1_ref, a2_ref, a3_ref, b1_ref, b2_ref, b3_ref,
                  o_ref, xp_ref, v3p_ref):
    f32 = jnp.float32

    # ---- layer 1: ConvT(32->16, K=3, s=2, g=2) + sigmoid --------------------
    # Height-direction zero-insertion (stride 2) + pad(K-1) into VMEM scratch:
    # xp row m holds x row (m-2)/2 for m = 2,4,...,16 and zeros elsewhere.
    xp_ref[...] = jnp.zeros((19, 256), f32)
    for i in range(8):                                   # 8 static row stores
        xp_ref[2 + 2 * i:3 + 2 * i, :] = x_ref[0, i:i + 1, :]
    v1 = jnp.zeros((17, 272), f32)
    for j in range(3):                                   # 3 row-shifted matmuls
        v1 = v1 + jnp.dot(xp_ref[j:j + 17, :], a1_ref[j],
                          preferred_element_type=f32)
    v1 = jax.nn.sigmoid(v1 + b1_ref[...])                # (17, 17*16)

    # ---- layer 2: ConvT(16->8, K=2, s=2) + tanh -----------------------------
    # K == stride == 2  =>  output row 2a+p depends only on v1 row a (phase p).
    v3e = jnp.tanh(jnp.dot(v1, a2_ref[0], preferred_element_type=f32)
                   + b2_ref[...])                        # even rows (17, 34*8)
    v3o = jnp.tanh(jnp.dot(v1, a2_ref[1], preferred_element_type=f32)
                   + b2_ref[...])                        # odd rows  (17, 34*8)

    # ---- layer 3: ConvT(8->8, K=2, s=1) -------------------------------------
    # v4[h] = v3[h] @ A3[0] + v3[h-1] @ A3[1]; compute even/odd output rows
    # from the phase-split v3 with one-row shifts staged in VMEM scratch.
    v3p_ref[0, 0:17, :] = v3e                            # v3[2a],   a = 0..17
    v3p_ref[0, 17:18, :] = jnp.zeros((1, 272), f32)
    v3p_ref[1, 0:1, :] = jnp.zeros((1, 272), f32)
    v3p_ref[1, 1:18, :] = v3o                            # v3[2a-1], a = 0..17
    v4e = (jnp.dot(v3p_ref[0], a3_ref[0], preferred_element_type=f32)
           + jnp.dot(v3p_ref[1], a3_ref[1], preferred_element_type=f32)
           + b3_ref[...])                                # rows 0,2,..,34 (18,280)
    v4o = (jnp.dot(v3o, a3_ref[0], preferred_element_type=f32)
           + jnp.dot(v3e, a3_ref[1], preferred_element_type=f32)
           + b3_ref[...])                                # rows 1,3,..,33 (17,280)

    # ---- phase-major, lane-dense stores -------------------------------------
    o_ref[0, 0, :, :] = v4e
    o_ref[0, 1, 0:17, :] = v4o
    o_ref[0, 1, 17:18, :] = jnp.zeros((1, 280), f32)     # unused padding row


def _fused_forward_2d(x2d, a1, a2, a3, b1r, b2r, b3r):
    n = x2d.shape[0]
    cost = pl.CostEstimate(flops=n * 23_000_000,
                           transcendentals=n * 14_000,
                           bytes_accessed=2_900_000 + n * 60_000)
    return pl.pallas_call(
        _fused_kernel,
        out_shape=jax.ShapeDtypeStruct((n, 2, 18, 280), jnp.float32),
        grid=(n,),
        in_specs=[
            pl.BlockSpec((1, 8, 256), lambda i: (i, 0, 0)),
            pl.BlockSpec((3, 256, 272), lambda i: (0, 0, 0)),
            pl.BlockSpec((2, 272, 272), lambda i: (0, 0, 0)),
            pl.BlockSpec((2, 272, 280), lambda i: (0, 0, 0)),
            pl.BlockSpec((1, 272), lambda i: (0, 0)),
            pl.BlockSpec((1, 272), lambda i: (0, 0)),
            pl.BlockSpec((1, 280), lambda i: (0, 0)),
        ],
        out_specs=pl.BlockSpec((1, 2, 18, 280), lambda i: (i, 0, 0, 0)),
        scratch_shapes=[pltpu.VMEM((19, 256), jnp.float32),
                        pltpu.VMEM((2, 18, 272), jnp.float32)],
        compiler_params=pltpu.CompilerParams(
            dimension_semantics=("parallel",)),
        cost_estimate=cost,
    )(x2d, a1, a2, a3, b1r, b2r, b3r)


@jax.jit
def model_forward(x_nchw, prepared):
    a1, a2, a3, b1r, b2r, b3r = prepared
    n = x_nchw.shape[0]
    # NCHW -> lane-dense rows (N, H, W*C)
    x2d = jnp.transpose(x_nchw, (0, 2, 3, 1)).reshape(n, 8, 8 * 32)
    out = _fused_forward_2d(x2d, a1, a2, a3, b1r, b2r, b3r)   # (N, 2, 18, 280)
    # de-interleave the two H phases and convert back to NCHW (N, 8, 35, 35)
    y = out.reshape(n, 2, 18, 35, 8)
    y = jnp.transpose(y, (0, 4, 2, 1, 3)).reshape(n, 8, 36, 35)
    return y[:, :, :35, :]


# ----------------------------- numpy reference ------------------------------ #

def conv_transpose_ref(x, w, b, stride, groups):
    x = np.asarray(x, np.float64)
    w = np.asarray(w, np.float64)
    b = np.asarray(b, np.float64)
    n_, cin, h, wd = x.shape
    _, coutg, k, _ = w.shape
    cout = coutg * groups
    cing = cin // groups
    oh = (h - 1) * stride + k
    ow = (wd - 1) * stride + k
    y = np.zeros((n_, cout, oh, ow), np.float64)
    for n in range(n_):
        for g in range(groups):
            xg = x[n, g * cing:(g + 1) * cing]
            wg = w[g * cing:(g + 1) * cing]
            for ih in range(h):
                for iw in range(wd):
                    for kh in range(k):
                        for kw in range(k):
                            y[n, g * coutg:(g + 1) * coutg,
                              ih * stride + kh, iw * stride + kw] += \
                                wg[:, :, kh, kw].T @ xg[:, ih, iw]
    return y + b[None, :, None, None]


# ---------------------------------- main ------------------------------------ #

if __name__ == "__main__":
    key = jax.random.PRNGKey(0)
    k1, k2, k3, k4, k5, k6, kx = jax.random.split(key, 7)

    # ConvTranspose2d(32, 16, 3, stride=2, groups=2): weight (32, 8, 3, 3)
    w1 = jax.random.normal(k1, (32, 8, 3, 3), jnp.float32) * 0.1
    b1 = jax.random.normal(k2, (16,), jnp.float32) * 0.1
    # ConvTranspose2d(16, 8, 2, stride=2): weight (16, 8, 2, 2)
    w2 = jax.random.normal(k3, (16, 8, 2, 2), jnp.float32) * 0.1
    b2 = jax.random.normal(k4, (8,), jnp.float32) * 0.1
    # ConvTranspose2d(8, 8, 2, stride=1): weight (8, 8, 2, 2)
    w3 = jax.random.normal(k5, (8, 8, 2, 2), jnp.float32) * 0.1
    b3 = jax.random.normal(k6, (8,), jnp.float32) * 0.1

    params = ((w1, b1), (w2, b2), (w3, b3))
    prepared = prepare_params(params)            # one-time weight preprocessing

    x = jax.random.normal(kx, (2, 32, 8, 8), jnp.float32)   # NCHW like torch

    out = jax.block_until_ready(model_forward(x, prepared))
    assert out.shape == (2, 8, 35, 35), out.shape

    # reference: sigmoid(ct1(x)) -> tanh(ct2(.)) -> ct3(.)
    r1 = 1.0 / (1.0 + np.exp(-conv_transpose_ref(x, w1, b1, 2, 2)))
    r2 = np.tanh(conv_transpose_ref(r1, w2, b2, 2, 1))
    r3 = conv_transpose_ref(r2, w3, b3, 1, 1)
    np.testing.assert_allclose(np.asarray(out), r3, atol=2e-4, rtol=2e-4)

    print("KERNEL_OK")
</pallas_src>

<mosaic_0001>
module attributes {stable_mosaic.version = 11 : i64} {
  func.func @_fused_kernel(%arg0: i32, %arg1: memref<1x8x256xf32, #tpu.memory_space<vmem>>, %arg2: memref<3x256x272xf32, #tpu.memory_space<vmem>>, %arg3: memref<2x272x272xf32, #tpu.memory_space<vmem>>, %arg4: memref<2x272x280xf32, #tpu.memory_space<vmem>>, %arg5: memref<1x272xf32, #tpu.memory_space<vmem>>, %arg6: memref<1x272xf32, #tpu.memory_space<vmem>>, %arg7: memref<1x280xf32, #tpu.memory_space<vmem>>, %arg8: memref<1x2x18x280xf32, #tpu.memory_space<vmem>>, %arg9: memref<19x256xf32, #tpu.memory_space<vmem>>, %arg10: memref<2x18x272xf32, #tpu.memory_space<vmem>>) attributes {dimension_semantics = [#tpu.dimension_semantics<parallel>], iteration_bounds = array<i64: 2>, scalar_prefetch = 0 : i64, scratch_operands = 2 : i64, tpu.core_type = #tpu.core_type<tc>, window_params = [{transform_indices = @transform_0, window_bounds = array<i64: 1, 8, 256>}, {pipeline_mode = #tpu.pipeline_mode<synchronous>, transform_indices = @transform_1, window_bounds = array<i64: 3, 256, 272>}, {pipeline_mode = #tpu.pipeline_mode<synchronous>, transform_indices = @transform_2, window_bounds = array<i64: 2, 272, 272>}, {pipeline_mode = #tpu.pipeline_mode<synchronous>, transform_indices = @transform_3, window_bounds = array<i64: 2, 272, 280>}, {pipeline_mode = #tpu.pipeline_mode<synchronous>, transform_indices = @transform_4, window_bounds = array<i64: 1, 272>}, {pipeline_mode = #tpu.pipeline_mode<synchronous>, transform_indices = @transform_5, window_bounds = array<i64: 1, 272>}, {pipeline_mode = #tpu.pipeline_mode<synchronous>, transform_indices = @transform_6, window_bounds = array<i64: 1, 280>}, {transform_indices = @transform_7, window_bounds = array<i64: 1, 2, 18, 280>}]} {
    %cst = arith.constant 0.000000e+00 : f32
    %0 = vector.broadcast %cst : f32 to vector<19x256xf32>
    %c0 = arith.constant 0 : index
    %c0_0 = arith.constant 0 : index
    %1 = vector.load %arg9[%c0, %c0_0] : memref<19x256xf32, #tpu.memory_space<vmem>>, vector<19x256xf32>
    tpu.vector_store %arg9[%c0, %c0_0], %0 {strides = array<i32>} : memref<19x256xf32, #tpu.memory_space<vmem>>, vector<19x256xf32>,
    %c0_1 = arith.constant 0 : index
    %c0_2 = arith.constant 0 : index
    %c0_3 = arith.constant 0 : index
    %2 = vector.load %arg1[%c0_1, %c0_2, %c0_3] : memref<1x8x256xf32, #tpu.memory_space<vmem>>, vector<1x1x256xf32>
    %3 = vector.shape_cast %2 : vector<1x1x256xf32> to vector<1x256xf32>
    %c2 = arith.constant 2 : index
    %c0_4 = arith.constant 0 : index
    %4 = vector.load %arg9[%c2, %c0_4] : memref<19x256xf32, #tpu.memory_space<vmem>>, vector<1x256xf32>
    tpu.vector_store %arg9[%c2, %c0_4], %3 {strides = array<i32>} : memref<19x256xf32, #tpu.memory_space<vmem>>, vector<1x256xf32>,
    %c0_5 = arith.constant 0 : index
    %c1 = arith.constant 1 : index
    %c0_6 = arith.constant 0 : index
    %5 = vector.load %arg1[%c0_5, %c1, %c0_6] : memref<1x8x256xf32, #tpu.memory_space<vmem>>, vector<1x1x256xf32>
    %6 = vector.shape_cast %5 : vector<1x1x256xf32> to vector<1x256xf32>
    %c4 = arith.constant 4 : index
    %c0_7 = arith.constant 0 : index
    %7 = vector.load %arg9[%c4, %c0_7] : memref<19x256xf32, #tpu.memory_space<vmem>>, vector<1x256xf32>
    tpu.vector_store %arg9[%c4, %c0_7], %6 {strides = array<i32>} : memref<19x256xf32, #tpu.memory_space<vmem>>, vector<1x256xf32>,
    %c0_8 = arith.constant 0 : index
    %c2_9 = arith.constant 2 : index
    %c0_10 = arith.constant 0 : index
    %8 = vector.load %arg1[%c0_8, %c2_9, %c0_10] : memref<1x8x256xf32, #tpu.memory_space<vmem>>, vector<1x1x256xf32>
    %9 = vector.shape_cast %8 : vector<1x1x256xf32> to vector<1x256xf32>
    %c6 = arith.constant 6 : index
    %c0_11 = arith.constant 0 : index
    %10 = vector.load %arg9[%c6, %c0_11] : memref<19x256xf32, #tpu.memory_space<vmem>>, vector<1x256xf32>
    tpu.vector_store %arg9[%c6, %c0_11], %9 {strides = array<i32>} : memref<19x256xf32, #tpu.memory_space<vmem>>, vector<1x256xf32>,
    %c0_12 = arith.constant 0 : index
    %c3 = arith.constant 3 : index
    %c0_13 = arith.constant 0 : index
    %11 = vector.load %arg1[%c0_12, %c3, %c0_13] : memref<1x8x256xf32, #tpu.memory_space<vmem>>, vector<1x1x256xf32>
    %12 = vector.shape_cast %11 : vector<1x1x256xf32> to vector<1x256xf32>
    %c8 = arith.constant 8 : index
    %c0_14 = arith.constant 0 : index
    %13 = vector.load %arg9[%c8, %c0_14] : memref<19x256xf32, #tpu.memory_space<vmem>>, vector<1x256xf32>
    tpu.vector_store %arg9[%c8, %c0_14], %12 {strides = array<i32>} : memref<19x256xf32, #tpu.memory_space<vmem>>, vector<1x256xf32>,
    %c0_15 = arith.constant 0 : index
    %c4_16 = arith.constant 4 : index
    %c0_17 = arith.constant 0 : index
    %14 = vector.load %arg1[%c0_15, %c4_16, %c0_17] : memref<1x8x256xf32, #tpu.memory_space<vmem>>, vector<1x1x256xf32>
    %15 = vector.shape_cast %14 : vector<1x1x256xf32> to vector<1x256xf32>
    %c10 = arith.constant 10 : index
    %c0_18 = arith.constant 0 : index
    %16 = vector.load %arg9[%c10, %c0_18] : memref<19x256xf32, #tpu.memory_space<vmem>>, vector<1x256xf32>
    tpu.vector_store %arg9[%c10, %c0_18], %15 {strides = array<i32>} : memref<19x256xf32, #tpu.memory_space<vmem>>, vector<1x256xf32>,
    %c0_19 = arith.constant 0 : index
    %c5 = arith.constant 5 : index
    %c0_20 = arith.constant 0 : index
    %17 = vector.load %arg1[%c0_19, %c5, %c0_20] : memref<1x8x256xf32, #tpu.memory_space<vmem>>, vector<1x1x256xf32>
    %18 = vector.shape_cast %17 : vector<1x1x256xf32> to vector<1x256xf32>
    %c12 = arith.constant 12 : index
    %c0_21 = arith.constant 0 : index
    %19 = vector.load %arg9[%c12, %c0_21] : memref<19x256xf32, #tpu.memory_space<vmem>>, vector<1x256xf32>
    tpu.vector_store %arg9[%c12, %c0_21], %18 {strides = array<i32>} : memref<19x256xf32, #tpu.memory_space<vmem>>, vector<1x256xf32>,
    %c0_22 = arith.constant 0 : index
    %c6_23 = arith.constant 6 : index
    %c0_24 = arith.constant 0 : index
    %20 = vector.load %arg1[%c0_22, %c6_23, %c0_24] : memref<1x8x256xf32, #tpu.memory_space<vmem>>, vector<1x1x256xf32>
    %21 = vector.shape_cast %20 : vector<1x1x256xf32> to vector<1x256xf32>
    %c14 = arith.constant 14 : index
    %c0_25 = arith.constant 0 : index
    %22 = vector.load %arg9[%c14, %c0_25] : memref<19x256xf32, #tpu.memory_space<vmem>>, vector<1x256xf32>
    tpu.vector_store %arg9[%c14, %c0_25], %21 {strides = array<i32>} : memref<19x256xf32, #tpu.memory_space<vmem>>, vector<1x256xf32>,
    %c0_26 = arith.constant 0 : index
    %c7 = arith.constant 7 : index
    %c0_27 = arith.constant 0 : index
    %23 = vector.load %arg1[%c0_26, %c7, %c0_27] : memref<1x8x256xf32, #tpu.memory_space<vmem>>, vector<1x1x256xf32>
    %24 = vector.shape_cast %23 : vector<1x1x256xf32> to vector<1x256xf32>
    %c16 = arith.constant 16 : index
    %c0_28 = arith.constant 0 : index
    %25 = vector.load %arg9[%c16, %c0_28] : memref<19x256xf32, #tpu.memory_space<vmem>>, vector<1x256xf32>
    tpu.vector_store %arg9[%c16, %c0_28], %24 {strides = array<i32>} : memref<19x256xf32, #tpu.memory_space<vmem>>, vector<1x256xf32>,
    %cst_29 = arith.constant 0.000000e+00 : f32
    %26 = vector.broadcast %cst_29 : f32 to vector<17x272xf32>
    %c0_30 = arith.constant 0 : index
    %c0_31 = arith.constant 0 : index
    %27 = vector.load %arg9[%c0_30, %c0_31] : memref<19x256xf32, #tpu.memory_space<vmem>>, vector<17x256xf32>
    %c0_32 = arith.constant 0 : index
    %c0_33 = arith.constant 0 : index
    %c0_34 = arith.constant 0 : index
    %28 = vector.load %arg2[%c0_32, %c0_33, %c0_34] : memref<3x256x272xf32, #tpu.memory_space<vmem>>, vector<1x256x272xf32>
    %29 = vector.shape_cast %28 : vector<1x256x272xf32> to vector<256x272xf32>
    %cst_35 = arith.constant dense<0.000000e+00> : vector<17x272xf32>
    %30 = tpu.matmul %27, %29, %cst_35 {dimension_numbers = #tpu.dot_dimension_numbers<[1], [0], [0], [1], [0, 0, 1, 1], [], []>} : vector<17x256xf32>, vector<256x272xf32>, vector<17x272xf32> -> vector<17x272xf32>
    %31 = arith.addf %26, %30 : vector<17x272xf32>
    %c1_36 = arith.constant 1 : index
    %c0_37 = arith.constant 0 : index
    %32 = vector.load %arg9[%c1_36, %c0_37] : memref<19x256xf32, #tpu.memory_space<vmem>>, vector<17x256xf32>
    %c1_38 = arith.constant 1 : index
    %c0_39 = arith.constant 0 : index
    %c0_40 = arith.constant 0 : index
    %33 = vector.load %arg2[%c1_38, %c0_39, %c0_40] : memref<3x256x272xf32, #tpu.memory_space<vmem>>, vector<1x256x272xf32>
    %34 = vector.shape_cast %33 : vector<1x256x272xf32> to vector<256x272xf32>
    %cst_41 = arith.constant dense<0.000000e+00> : vector<17x272xf32>
    %35 = tpu.matmul %32, %34, %cst_41 {dimension_numbers = #tpu.dot_dimension_numbers<[1], [0], [0], [1], [0, 0, 1, 1], [], []>} : vector<17x256xf32>, vector<256x272xf32>, vector<17x272xf32> -> vector<17x272xf32>
    %36 = arith.addf %31, %35 : vector<17x272xf32>
    %c2_42 = arith.constant 2 : index
    %c0_43 = arith.constant 0 : index
    %37 = vector.load %arg9[%c2_42, %c0_43] : memref<19x256xf32, #tpu.memory_space<vmem>>, vector<17x256xf32>
    %c2_44 = arith.constant 2 : index
    %c0_45 = arith.constant 0 : index
    %c0_46 = arith.constant 0 : index
    %38 = vector.load %arg2[%c2_44, %c0_45, %c0_46] : memref<3x256x272xf32, #tpu.memory_space<vmem>>, vector<1x256x272xf32>
    %39 = vector.shape_cast %38 : vector<1x256x272xf32> to vector<256x272xf32>
    %cst_47 = arith.constant dense<0.000000e+00> : vector<17x272xf32>
    %40 = tpu.matmul %37, %39, %cst_47 {dimension_numbers = #tpu.dot_dimension_numbers<[1], [0], [0], [1], [0, 0, 1, 1], [], []>} : vector<17x256xf32>, vector<256x272xf32>, vector<17x272xf32> -> vector<17x272xf32>
    %41 = arith.addf %36, %40 : vector<17x272xf32>
    %c0_48 = arith.constant 0 : index
    %c0_49 = arith.constant 0 : index
    %42 = vector.load %arg5[%c0_48, %c0_49] : memref<1x272xf32, #tpu.memory_space<vmem>>, vector<1x272xf32>
    %43 = vector.broadcast %42 : vector<1x272xf32> to vector<17x272xf32>
    %44 = arith.addf %41, %43 : vector<17x272xf32>
    %45 = arith.negf %44 : vector<17x272xf32>
    %46 = math.exp %45 : vector<17x272xf32>
    %cst_50 = arith.constant 1.000000e+00 : f32
    %47 = vector.broadcast %cst_50 : f32 to vector<17x272xf32>
    %48 = arith.addf %47, %46 : vector<17x272xf32>
    %49 = arith.divf %47, %48 : vector<17x272xf32>
    %c0_51 = arith.constant 0 : index
    %c0_52 = arith.constant 0 : index
    %c0_53 = arith.constant 0 : index
    %50 = vector.load %arg3[%c0_51, %c0_52, %c0_53] : memref<2x272x272xf32, #tpu.memory_space<vmem>>, vector<1x272x272xf32>
    %51 = vector.shape_cast %50 : vector<1x272x272xf32> to vector<272x272xf32>
    %cst_54 = arith.constant dense<0.000000e+00> : vector<17x272xf32>
    %52 = tpu.matmul %49, %51, %cst_54 {dimension_numbers = #tpu.dot_dimension_numbers<[1], [0], [0], [1], [0, 0, 1, 1], [], []>} : vector<17x272xf32>, vector<272x272xf32>, vector<17x272xf32> -> vector<17x272xf32>
    %c0_55 = arith.constant 0 : index
    %c0_56 = arith.constant 0 : index
    %53 = vector.load %arg6[%c0_55, %c0_56] : memref<1x272xf32, #tpu.memory_space<vmem>>, vector<1x272xf32>
    %54 = vector.broadcast %53 : vector<1x272xf32> to vector<17x272xf32>
    %55 = arith.addf %52, %54 : vector<17x272xf32>
    %56 = math.tanh %55 : vector<17x272xf32>
    %c1_57 = arith.constant 1 : index
    %c0_58 = arith.constant 0 : index
    %c0_59 = arith.constant 0 : index
    %57 = vector.load %arg3[%c1_57, %c0_58, %c0_59] : memref<2x272x272xf32, #tpu.memory_space<vmem>>, vector<1x272x272xf32>
    %58 = vector.shape_cast %57 : vector<1x272x272xf32> to vector<272x272xf32>
    %cst_60 = arith.constant dense<0.000000e+00> : vector<17x272xf32>
    %59 = tpu.matmul %49, %58, %cst_60 {dimension_numbers = #tpu.dot_dimension_numbers<[1], [0], [0], [1], [0, 0, 1, 1], [], []>} : vector<17x272xf32>, vector<272x272xf32>, vector<17x272xf32> -> vector<17x272xf32>
    %c0_61 = arith.constant 0 : index
    %c0_62 = arith.constant 0 : index
    %60 = vector.load %arg6[%c0_61, %c0_62] : memref<1x272xf32, #tpu.memory_space<vmem>>, vector<1x272xf32>
    %61 = vector.broadcast %60 : vector<1x272xf32> to vector<17x272xf32>
    %62 = arith.addf %59, %61 : vector<17x272xf32>
    %63 = math.tanh %62 : vector<17x272xf32>
    %c0_63 = arith.constant 0 : index
    %c0_64 = arith.constant 0 : index
    %c0_65 = arith.constant 0 : index
    %64 = vector.load %arg10[%c0_63, %c0_64, %c0_65] : memref<2x18x272xf32, #tpu.memory_space<vmem>>, vector<1x17x272xf32>
    %65 = vector.shape_cast %64 : vector<1x17x272xf32> to vector<17x272xf32>
    %66 = vector.shape_cast %56 : vector<17x272xf32> to vector<1x17x272xf32>
    tpu.vector_store %arg10[%c0_63, %c0_64, %c0_65], %66 {strides = array<i32>} : memref<2x18x272xf32, #tpu.memory_space<vmem>>, vector<1x17x272xf32>,
    %cst_66 = arith.constant 0.000000e+00 : f32
    %67 = vector.broadcast %cst_66 : f32 to vector<1x272xf32>
    %c0_67 = arith.constant 0 : index
    %c17 = arith.constant 17 : index
    %c0_68 = arith.constant 0 : index
    %68 = vector.load %arg10[%c0_67, %c17, %c0_68] : memref<2x18x272xf32, #tpu.memory_space<vmem>>, vector<1x1x272xf32>
    %69 = vector.shape_cast %68 : vector<1x1x272xf32> to vector<1x272xf32>
    %70 = vector.shape_cast %67 : vector<1x272xf32> to vector<1x1x272xf32>
    tpu.vector_store %arg10[%c0_67, %c17, %c0_68], %70 {strides = array<i32>} : memref<2x18x272xf32, #tpu.memory_space<vmem>>, vector<1x1x272xf32>,
    %cst_69 = arith.constant 0.000000e+00 : f32
    %71 = vector.broadcast %cst_69 : f32 to vector<1x272xf32>
    %c1_70 = arith.constant 1 : index
    %c0_71 = arith.constant 0 : index
    %c0_72 = arith.constant 0 : index
    %72 = vector.load %arg10[%c1_70, %c0_71, %c0_72] : memref<2x18x272xf32, #tpu.memory_space<vmem>>, vector<1x1x272xf32>
    %73 = vector.shape_cast %72 : vector<1x1x272xf32> to vector<1x272xf32>
    %74 = vector.shape_cast %71 : vector<1x272xf32> to vector<1x1x272xf32>
    tpu.vector_store %arg10[%c1_70, %c0_71, %c0_72], %74 {strides = array<i32>} : memref<2x18x272xf32, #tpu.memory_space<vmem>>, vector<1x1x272xf32>,
    %c1_73 = arith.constant 1 : index
    %c1_74 = arith.constant 1 : index
    %c0_75 = arith.constant 0 : index
    %75 = vector.load %arg10[%c1_73, %c1_74, %c0_75] : memref<2x18x272xf32, #tpu.memory_space<vmem>>, vector<1x17x272xf32>
    %76 = vector.shape_cast %75 : vector<1x17x272xf32> to vector<17x272xf32>
    %77 = vector.shape_cast %63 : vector<17x272xf32> to vector<1x17x272xf32>
    tpu.vector_store %arg10[%c1_73, %c1_74, %c0_75], %77 {strides = array<i32>} : memref<2x18x272xf32, #tpu.memory_space<vmem>>, vector<1x17x272xf32>,
    %c0_76 = arith.constant 0 : index
    %c0_77 = arith.constant 0 : index
    %c0_78 = arith.constant 0 : index
    %78 = vector.load %arg10[%c0_76, %c0_77, %c0_78] : memref<2x18x272xf32, #tpu.memory_space<vmem>>, vector<1x18x272xf32>
    %79 = vector.shape_cast %78 : vector<1x18x272xf32> to vector<18x272xf32>
    %c0_79 = arith.constant 0 : index
    %c0_80 = arith.constant 0 : index
    %c0_81 = arith.constant 0 : index
    %80 = vector.load %arg4[%c0_79, %c0_80, %c0_81] : memref<2x272x280xf32, #tpu.memory_space<vmem>>, vector<1x272x280xf32>
    %81 = vector.shape_cast %80 : vector<1x272x280xf32> to vector<272x280xf32>
    %cst_82 = arith.constant dense<0.000000e+00> : vector<18x280xf32>
    %82 = tpu.matmul %79, %81, %cst_82 {dimension_numbers = #tpu.dot_dimension_numbers<[1], [0], [0], [1], [0, 0, 1, 1], [], []>} : vector<18x272xf32>, vector<272x280xf32>, vector<18x280xf32> -> vector<18x280xf32>
    %c1_83 = arith.constant 1 : index
    %c0_84 = arith.constant 0 : index
    %c0_85 = arith.constant 0 : index
    %83 = vector.load %arg10[%c1_83, %c0_84, %c0_85] : memref<2x18x272xf32, #tpu.memory_space<vmem>>, vector<1x18x272xf32>
    %84 = vector.shape_cast %83 : vector<1x18x272xf32> to vector<18x272xf32>
    %c1_86 = arith.constant 1 : index
    %c0_87 = arith.constant 0 : index
    %c0_88 = arith.constant 0 : index
    %85 = vector.load %arg4[%c1_86, %c0_87, %c0_88] : memref<2x272x280xf32, #tpu.memory_space<vmem>>, vector<1x272x280xf32>
    %86 = vector.shape_cast %85 : vector<1x272x280xf32> to vector<272x280xf32>
    %cst_89 = arith.constant dense<0.000000e+00> : vector<18x280xf32>
    %87 = tpu.matmul %84, %86, %cst_89 {dimension_numbers = #tpu.dot_dimension_numbers<[1], [0], [0], [1], [0, 0, 1, 1], [], []>} : vector<18x272xf32>, vector<272x280xf32>, vector<18x280xf32> -> vector<18x280xf32>
    %88 = arith.addf %82, %87 : vector<18x280xf32>
    %c0_90 = arith.constant 0 : index
    %c0_91 = arith.constant 0 : index
    %89 = vector.load %arg7[%c0_90, %c0_91] : memref<1x280xf32, #tpu.memory_space<vmem>>, vector<1x280xf32>
    %90 = vector.broadcast %89 : vector<1x280xf32> to vector<18x280xf32>
    %91 = arith.addf %88, %90 : vector<18x280xf32>
    %c0_92 = arith.constant 0 : index
    %c0_93 = arith.constant 0 : index
    %c0_94 = arith.constant 0 : index
    %92 = vector.load %arg4[%c0_92, %c0_93, %c0_94] : memref<2x272x280xf32, #tpu.memory_space<vmem>>, vector<1x272x280xf32>
    %93 = vector.shape_cast %92 : vector<1x272x280xf32> to vector<272x280xf32>
    %cst_95 = arith.constant dense<0.000000e+00> : vector<17x280xf32>
    %94 = tpu.matmul %63, %93, %cst_95 {dimension_numbers = #tpu.dot_dimension_numbers<[1], [0], [0], [1], [0, 0, 1, 1], [], []>} : vector<17x272xf32>, vector<272x280xf32>, vector<17x280xf32> -> vector<17x280xf32>
    %c1_96 = arith.constant 1 : index
    %c0_97 = arith.constant 0 : index
    %c0_98 = arith.constant 0 : index
    %95 = vector.load %arg4[%c1_96, %c0_97, %c0_98] : memref<2x272x280xf32, #tpu.memory_space<vmem>>, vector<1x272x280xf32>
    %96 = vector.shape_cast %95 : vector<1x272x280xf32> to vector<272x280xf32>
    %cst_99 = arith.constant dense<0.000000e+00> : vector<17x280xf32>
    %97 = tpu.matmul %56, %96, %cst_99 {dimension_numbers = #tpu.dot_dimension_numbers<[1], [0], [0], [1], [0, 0, 1, 1], [], []>} : vector<17x272xf32>, vector<272x280xf32>, vector<17x280xf32> -> vector<17x280xf32>
    %98 = arith.addf %94, %97 : vector<17x280xf32>
    %c0_100 = arith.constant 0 : index
    %c0_101 = arith.constant 0 : index
    %99 = vector.load %arg7[%c0_100, %c0_101] : memref<1x280xf32, #tpu.memory_space<vmem>>, vector<1x280xf32>
    %100 = vector.broadcast %99 : vector<1x280xf32> to vector<17x280xf32>
    %101 = arith.addf %98, %100 : vector<17x280xf32>
    %c0_102 = arith.constant 0 : index
    %c0_103 = arith.constant 0 : index
    %c0_104 = arith.constant 0 : index
    %c0_105 = arith.constant 0 : index
    %102 = vector.load %arg8[%c0_102, %c0_103, %c0_104, %c0_105] : memref<1x2x18x280xf32, #tpu.memory_space<vmem>>, vector<1x1x18x280xf32>
    %103 = vector.shape_cast %102 : vector<1x1x18x280xf32> to vector<18x280xf32>
    %104 = vector.shape_cast %91 : vector<18x280xf32> to vector<1x1x18x280xf32>
    tpu.vector_store %arg8[%c0_102, %c0_103, %c0_104, %c0_105], %104 {strides = array<i32>} : memref<1x2x18x280xf32, #tpu.memory_space<vmem>>, vector<1x1x18x280xf32>,
    %c0_106 = arith.constant 0 : index
    %c1_107 = arith.constant 1 : index
    %c0_108 = arith.constant 0 : index
    %c0_109 = arith.constant 0 : index
    %105 = vector.load %arg8[%c0_106, %c1_107, %c0_108, %c0_109] : memref<1x2x18x280xf32, #tpu.memory_space<vmem>>, vector<1x1x17x280xf32>
    %106 = vector.shape_cast %105 : vector<1x1x17x280xf32> to vector<17x280xf32>
    %107 = vector.shape_cast %101 : vector<17x280xf32> to vector<1x1x17x280xf32>
    tpu.vector_store %arg8[%c0_106, %c1_107, %c0_108, %c0_109], %107 {strides = array<i32>} : memref<1x2x18x280xf32, #tpu.memory_space<vmem>>, vector<1x1x17x280xf32>,
    %cst_110 = arith.constant 0.000000e+00 : f32
    %108 = vector.broadcast %cst_110 : f32 to vector<1x280xf32>
    %c0_111 = arith.constant 0 : index
    %c1_112 = arith.constant 1 : index
    %c17_113 = arith.constant 17 : index
    %c0_114 = arith.constant 0 : index
    %109 = vector.load %arg8[%c0_111, %c1_112, %c17_113, %c0_114] : memref<1x2x18x280xf32, #tpu.memory_space<vmem>>, vector<1x1x1x280xf32>
    %110 = vector.shape_cast %109 : vector<1x1x1x280xf32> to vector<1x280xf32>
    %111 = vector.shape_cast %108 : vector<1x280xf32> to vector<1x1x1x280xf32>
    tpu.vector_store %arg8[%c0_111, %c1_112, %c17_113, %c0_114], %111 {strides = array<i32>} : memref<1x2x18x280xf32, #tpu.memory_space<vmem>>, vector<1x1x1x280xf32>,
    return
  }
  func.func @transform_0(%arg0: i32) -> (i32, i32, i32) {
    %c0_i32 = arith.constant 0 : i32
    %c0_i32_0 = arith.constant 0 : i32
    %c0_i32_1 = arith.constant 0 : i32
    return %arg0, %c0_i32, %c0_i32_0 : i32, i32, i32
  }
  func.func @transform_1(%arg0: i32) -> (i32, i32, i32) {
    %c0_i32 = arith.constant 0 : i32
    %c0_i32_0 = arith.constant 0 : i32
    %c0_i32_1 = arith.constant 0 : i32
    %c0_i32_2 = arith.constant 0 : i32
    return %c0_i32, %c0_i32_0, %c0_i32_1 : i32, i32, i32
  }
  func.func @transform_2(%arg0: i32) -> (i32, i32, i32) {
    %c0_i32 = arith.constant 0 : i32
    %c0_i32_0 = arith.constant 0 : i32
    %c0_i32_1 = arith.constant 0 : i32
    %c0_i32_2 = arith.constant 0 : i32
    return %c0_i32, %c0_i32_0, %c0_i32_1 : i32, i32, i32
  }
  func.func @transform_3(%arg0: i32) -> (i32, i32, i32) {
    %c0_i32 = arith.constant 0 : i32
    %c0_i32_0 = arith.constant 0 : i32
    %c0_i32_1 = arith.constant 0 : i32
    %c0_i32_2 = arith.constant 0 : i32
    return %c0_i32, %c0_i32_0, %c0_i32_1 : i32, i32, i32
  }
  func.func @transform_4(%arg0: i32) -> (i32, i32) {
    %c0_i32 = arith.constant 0 : i32
    %c0_i32_0 = arith.constant 0 : i32
    %c0_i32_1 = arith.constant 0 : i32
    return %c0_i32, %c0_i32_0 : i32, i32
  }
  func.func @transform_5(%arg0: i32) -> (i32, i32) {
    %c0_i32 = arith.constant 0 : i32
    %c0_i32_0 = arith.constant 0 : i32
    %c0_i32_1 = arith.constant 0 : i32
    return %c0_i32, %c0_i32_0 : i32, i32
  }
  func.func @transform_6(%arg0: i32) -> (i32, i32) {
    %c0_i32 = arith.constant 0 : i32
    %c0_i32_0 = arith.constant 0 : i32
    %c0_i32_1 = arith.constant 0 : i32
    return %c0_i32, %c0_i32_0 : i32, i32
  }
  func.func @transform_7(%arg0: i32) -> (i32, i32, i32, i32) {
    %c0_i32 = arith.constant 0 : i32
    %c0_i32_0 = arith.constant 0 : i32
    %c0_i32_1 = arith.constant 0 : i32
    %c0_i32_2 = arith.constant 0 : i32
    return %arg0, %c0_i32, %c0_i32_0, %c0_i32_1 : i32, i32, i32, i32
  }
}

</mosaic_0001>

<llo_original>
// kernel: model_forward.1
$region0: #{model_forward.1}
  #allocation0 [shape = 'u32[]', space=smem, size = 0x4, offset = 0x4, fixed_abs, tag = 'smem constant byte address 0x4 - core index']
  #allocation1 [shape = 'u32[144,128]{1,0:T(1,128)}', space=vmem, size = 0x12000, scoped, tag = 'internal scratch']
  #allocation2 [shape = 'f32[19,256]{1,0:T(8,128)}', space=vmem, size = 0x6000, scoped, tag = 'scratch operand']
  #allocation3 [shape = 'f32[2,18,272]{2,1,0:T(8,128)}', space=vmem, size = 0x12000, scoped, tag = 'scratch operand']
  %s0 = inlined_call_operand.vmem [shape: f32[2,8,256], index: 0, kind: input, shape index: {}]
  %s1 = inlined_call_operand.vmem [shape: f32[3,256,272], index: 1, kind: input, shape index: {}]
  %s2 = inlined_call_operand.vmem [shape: f32[2,272,272], index: 2, kind: input, shape index: {}]
  %s3 = inlined_call_operand.vmem [shape: f32[2,272,280], index: 3, kind: input, shape index: {}]
  %s4 = inlined_call_operand.vmem [shape: f32[1,272], index: 4, kind: input, shape index: {}]
  %s5 = inlined_call_operand.vmem [shape: f32[1,272], index: 5, kind: input, shape index: {}]
  %s6 = inlined_call_operand.vmem [shape: f32[1,280], index: 6, kind: input, shape index: {}]
  %s7 = inlined_call_operand.vmem [shape: f32[2,2,18,280], index: 7, kind: output, shape index: {}]
  %s8 = sld [smem:[#allocation0]]
  $region61: #{model_forward.1} parent=0
    _
  %s10 = ssub.s32 1, %s8
  %s11 = scalar_select 0, %s10, %s8
  loop: start=0, step=1, limit=4
  $region2: #{model_forward.1} parent=0 // loop_pre_header
    _
  $region3: #{model_forward.1} parent=0 // loop_header
    %s13 = sphi 0, %s17
    %p14 = scmp.ge.s32.totalorder %s13, 4
    %s23 = sphi 0, %s25
    %s26 = sphi 0, %s23
    %s27 = sphi 0, %s26
    %s43 = sphi 0, %s27
    %s47 = sphi 0, %s47
    %s49 = sphi 0, %s47
    %s50 = sphi 0, %s49
    %s64 = sphi 0, %s50
    %s68 = sphi 0, %s68
    %s70 = sphi 0, %s68
    %s71 = sphi 0, %s70
    %s85 = sphi 0, %s71
    %s89 = sphi 0, %s89
    %s91 = sphi 0, %s89
    %s92 = sphi 0, %s91
    %s106 = sphi 0, %s92
    %s110 = sphi 0, %s110
    %s112 = sphi 0, %s110
    %s113 = sphi 0, %s112
    %s127 = sphi 0, %s113
    %s131 = sphi 0, %s131
    %s133 = sphi 0, %s131
    %s134 = sphi 0, %s133
    %s148 = sphi 0, %s134
    %s152 = sphi 0, %s152
    %s154 = sphi 0, %s152
    %s155 = sphi 0, %s154
    %s169 = sphi 0, %s155
    %s175 = sphi 0, %s177
    %s178 = sphi 0, %s175
    %s179 = sphi 0, %s178
    %s195 = sphi 0, %s179
  $region4: #{model_forward.1} parent=0 // loop_header_branch
    %16 = sbr.rel (%p14) target = $region8
  $region5: #{model_forward.1} parent=0 // loop_body
    %s18 = ssub.s32 %s13, 1
    %s19 = ssub.s32 %s13, 2
    %s20 = sadd.s32 %s13, 1
    %s21 = ssub.s32 %s13, %s20
    %p22 = scmp.eq.s32.totalorder %s21, 0
    %s24 = sadd.s32 %s23, 1
    %s25 = scalar_select %p22, %s23, %s24
    %p28 = pneg %p22
    %p29 = scmp.eq.s32.totalorder %s13, 1
    %p30 = por %p28, %p29
    %p31 = scmp.ne.s32.totalorder %s23, %s26
    %p32 = scmp.eq.s32.totalorder %s13, 0
    %p33 = por %p31, %p32
    %p34 = scmp.ne.s32.totalorder %s23, %s26
    %p35 = scmp.eq.s32.totalorder %s18, 1
    %p36 = por %p34, %p35
    %p37 = scmp.ne.s32.totalorder %s26, %s27
    %p38 = scmp.eq.s32.totalorder %s18, 0
    %p39 = por %p37, %p38
    %p40 = scmp.ne.s32.totalorder %s26, %s27
    %p41 = scmp.eq.s32.totalorder %s19, 1
    %p42 = por %p40, %p41
    %p44 = scmp.ne.s32.totalorder %s27, %s43
    %p45 = scmp.eq.s32.totalorder %s19, 0
    %p46 = por %p44, %p45
    %s48 = sadd.s32 %s47, 1
    %p51 = scmp.eq.s32.totalorder %s13, 1
    %p52 = scmp.ne.s32.totalorder %s47, %s49
    %p53 = scmp.eq.s32.totalorder %s13, 0
    %p54 = por %p52, %p53
    %p55 = scmp.ne.s32.totalorder %s47, %s49
    %p56 = scmp.eq.s32.totalorder %s18, 1
    %p57 = por %p55, %p56
    %p58 = scmp.ne.s32.totalorder %s49, %s50
    %p59 = scmp.eq.s32.totalorder %s18, 0
    %p60 = por %p58, %p59
    %p61 = scmp.ne.s32.totalorder %s49, %s50
    %p62 = scmp.eq.s32.totalorder %s19, 1
    %p63 = por %p61, %p62
    %p65 = scmp.ne.s32.totalorder %s50, %s64
    %p66 = scmp.eq.s32.totalorder %s19, 0
    %p67 = por %p65, %p66
    %s69 = sadd.s32 %s68, 1
    %p72 = scmp.eq.s32.totalorder %s13, 1
    %p73 = scmp.ne.s32.totalorder %s68, %s70
    %p74 = scmp.eq.s32.totalorder %s13, 0
    %p75 = por %p73, %p74
    %p76 = scmp.ne.s32.totalorder %s68, %s70
    %p77 = scmp.eq.s32.totalorder %s18, 1
    %p78 = por %p76, %p77
    %p79 = scmp.ne.s32.totalorder %s70, %s71
    %p80 = scmp.eq.s32.totalorder %s18, 0
    %p81 = por %p79, %p80
    %p82 = scmp.ne.s32.totalorder %s70, %s71
    %p83 = scmp.eq.s32.totalorder %s19, 1
    %p84 = por %p82, %p83
    %p86 = scmp.ne.s32.totalorder %s71, %s85
    %p87 = scmp.eq.s32.totalorder %s19, 0
    %p88 = por %p86, %p87
    %s90 = sadd.s32 %s89, 1
    %p93 = scmp.eq.s32.totalorder %s13, 1
    %p94 = scmp.ne.s32.totalorder %s89, %s91
    %p95 = scmp.eq.s32.totalorder %s13, 0
    %p96 = por %p94, %p95
    %p97 = scmp.ne.s32.totalorder %s89, %s91
    %p98 = scmp.eq.s32.totalorder %s18, 1
    %p99 = por %p97, %p98
    %p100 = scmp.ne.s32.totalorder %s91, %s92
    %p101 = scmp.eq.s32.totalorder %s18, 0
    %p102 = por %p100, %p101
    %p103 = scmp.ne.s32.totalorder %s91, %s92
    %p104 = scmp.eq.s32.totalorder %s19, 1
    %p105 = por %p103, %p104
    %p107 = scmp.ne.s32.totalorder %s92, %s106
    %p108 = scmp.eq.s32.totalorder %s19, 0
    %p109 = por %p107, %p108
    %s111 = sadd.s32 %s110, 1
    %p114 = scmp.eq.s32.totalorder %s13, 1
    %p115 = scmp.ne.s32.totalorder %s110, %s112
    %p116 = scmp.eq.s32.totalorder %s13, 0
    %p117 = por %p115, %p116
    %p118 = scmp.ne.s32.totalorder %s110, %s112
    %p119 = scmp.eq.s32.totalorder %s18, 1
    %p120 = por %p118, %p119
    %p121 = scmp.ne.s32.totalorder %s112, %s113
    %p122 = scmp.eq.s32.totalorder %s18, 0
    %p123 = por %p121, %p122
    %p124 = scmp.ne.s32.totalorder %s112, %s113
    %p125 = scmp.eq.s32.totalorder %s19, 1
    %p126 = por %p124, %p125
    %p128 = scmp.ne.s32.totalorder %s113, %s127
    %p129 = scmp.eq.s32.totalorder %s19, 0
    %p130 = por %p128, %p129
    %s132 = sadd.s32 %s131, 1
    %p135 = scmp.eq.s32.totalorder %s13, 1
    %p136 = scmp.ne.s32.totalorder %s131, %s133
    %p137 = scmp.eq.s32.totalorder %s13, 0
    %p138 = por %p136, %p137
    %p139 = scmp.ne.s32.totalorder %s131, %s133
    %p140 = scmp.eq.s32.totalorder %s18, 1
    %p141 = por %p139, %p140
    %p142 = scmp.ne.s32.totalorder %s133, %s134
    %p143 = scmp.eq.s32.totalorder %s18, 0
    %p144 = por %p142, %p143
    %p145 = scmp.ne.s32.totalorder %s133, %s134
    %p146 = scmp.eq.s32.totalorder %s19, 1
    %p147 = por %p145, %p146
    %p149 = scmp.ne.s32.totalorder %s134, %s148
    %p150 = scmp.eq.s32.totalorder %s19, 0
    %p151 = por %p149, %p150
    %s153 = sadd.s32 %s152, 1
    %p156 = scmp.eq.s32.totalorder %s13, 1
    %p157 = scmp.ne.s32.totalorder %s152, %s154
    %p158 = scmp.eq.s32.totalorder %s13, 0
    %p159 = por %p157, %p158
    %p160 = scmp.ne.s32.totalorder %s152, %s154
    %p161 = scmp.eq.s32.totalorder %s18, 1
    %p162 = por %p160, %p161
    %p163 = scmp.ne.s32.totalorder %s154, %s155
    %p164 = scmp.eq.s32.totalorder %s18, 0
    %p165 = por %p163, %p164
    %p166 = scmp.ne.s32.totalorder %s154, %s155
    %p167 = scmp.eq.s32.totalorder %s19, 1
    %p168 = por %p166, %p167
    %p170 = scmp.ne.s32.totalorder %s155, %s169
    %p171 = scmp.eq.s32.totalorder %s19, 0
    %p172 = por %p170, %p171
    %s173 = ssub.s32 %s13, %s20
    %p174 = scmp.eq.s32.totalorder %s173, 0
    %s176 = sadd.s32 %s175, 1
    %s177 = scalar_select %p174, %s175, %s176
    %p180 = pneg %p174
    %p181 = scmp.eq.s32.totalorder %s13, 1
    %p182 = por %p180, %p181
    %p183 = scmp.ne.s32.totalorder %s175, %s178
    %p184 = scmp.eq.s32.totalorder %s13, 0
    %p185 = por %p183, %p184
    %p186 = scmp.ne.s32.totalorder %s175, %s178
    %p187 = scmp.eq.s32.totalorder %s18, 1
    %p188 = por %p186, %p187
    %p189 = scmp.ne.s32.totalorder %s178, %s179
    %p190 = scmp.eq.s32.totalorder %s18, 0
    %p191 = por %p189, %p190
    %p192 = scmp.ne.s32.totalorder %s178, %s179
    %p193 = scmp.eq.s32.totalorder %s19, 1
    %p194 = por %p192, %p193
    %p196 = scmp.ne.s32.totalorder %s179, %s195
    %p197 = scmp.eq.s32.totalorder %s19, 0
    %p198 = por %p196, %p197
    %p199 = scmp.le.s32.totalorder 1, %s13
    %p200 = scmp.lt.s32.totalorder %s13, 3
    %p201 = pnand %p199, %p200
    %p202 = pneg %p201
    // Predicated region
    $region9: #{model_forward.1} parent=5 // pred_check
      _
    $region10: #{model_forward.1} parent=5 // pred_check_branch
      %204 = sbr.rel (%p201) target = $region12
    $region11: #{model_forward.1} parent=5 // pred_region
      %s205 = ssub.s32 %s13, 1
      // Predicated region
      $region13: #{model_forward.1} parent=11 // pred_check
        %p206 = pneg %p60
      $region14: #{model_forward.1} parent=11 // pred_check_branch
        %208 = sbr.rel (%p206) target = $region16
      $region15: #{model_forward.1} parent=11 // pred_region
        _
      $region16: #{model_forward.1} parent=11 // pred_fallthru
        _
      // Predicated region
      $region17: #{model_forward.1} parent=11 // pred_check
        %p209 = pneg %p81
      $region18: #{model_forward.1} parent=11 // pred_check_branch
        %211 = sbr.rel (%p209) target = $region20
      $region19: #{model_forward.1} parent=11 // pred_region
        _
      $region20: #{model_forward.1} parent=11 // pred_fallthru
        _
      // Predicated region
      $region21: #{model_forward.1} parent=11 // pred_check
        %p212 = pneg %p102
      $region22: #{model_forward.1} parent=11 // pred_check_branch
        %214 = sbr.rel (%p212) target = $region24
      $region23: #{model_forward.1} parent=11 // pred_region
        _
      $region24: #{model_forward.1} parent=11 // pred_fallthru
        _
      // Predicated region
      $region25: #{model_forward.1} parent=11 // pred_check
        %p215 = pneg %p123
      $region26: #{model_forward.1} parent=11 // pred_check_branch
        %217 = sbr.rel (%p215) target = $region28
      $region27: #{model_forward.1} parent=11 // pred_region
        _
      $region28: #{model_forward.1} parent=11 // pred_fallthru
        _
      // Predicated region
      $region29: #{model_forward.1} parent=11 // pred_check
        %p218 = pneg %p144
      $region30: #{model_forward.1} parent=11 // pred_check_branch
        %220 = sbr.rel (%p218) target = $region32
      $region31: #{model_forward.1} parent=11 // pred_region
        _
      $region32: #{model_forward.1} parent=11 // pred_fallthru
        _
      // Predicated region
      $region33: #{model_forward.1} parent=11 // pred_check
        %p221 = pneg %p165
      $region34: #{model_forward.1} parent=11 // pred_check_branch
        %223 = sbr.rel (%p221) target = $region36
      $region35: #{model_forward.1} parent=11 // pred_region
        _
      $region36: #{model_forward.1} parent=11 // pred_fallthru
        _
    $region12: #{model_forward.1} parent=5 // pred_fallthru
      _
    %p224 = scmp.lt.s32.totalorder %s13, 2
    // Predicated region
    $region37: #{model_forward.1} parent=5 // pred_check
      %p225 = pneg %p224
    $region38: #{model_forward.1} parent=5 // pred_check_branch
      %227 = sbr.rel (%p225) target = $region40
    $region39: #{model_forward.1} parent=5 // pred_region
      // Predicated region
      $region41: #{model_forward.1} parent=39 // pred_check
        %p228 = pneg %p33
      $region42: #{model_forward.1} parent=39 // pred_check_branch
        %230 = sbr.rel (%p228) target = $region44
      $region43: #{model_forward.1} parent=39 // pred_region
        %p231 = scmp.lt.s32.totalorder %s13, 1
        %s232 = scalar_select %p231, %s13, 1
        %s233 = smul.addr %s232, 2
        %s234 = smul.addr %s233, 8
        %s235 = scalar_lea.vmem %s0, %s234
      $region44: #{model_forward.1} parent=39 // pred_fallthru
        _
    $region40: #{model_forward.1} parent=5 // pred_fallthru
      _
    %p236 = scmp.le.s32.totalorder 1, %s13
    %p237 = scmp.lt.s32.totalorder %s13, 3
    %p238 = pnand %p236, %p237
    %p239 = pneg %p238
    // Predicated region
    $region45: #{model_forward.1} parent=5 // pred_check
      _
    $region46: #{model_forward.1} parent=5 // pred_check_branch
      %241 = sbr.rel (%p238) target = $region48
    $region47: #{model_forward.1} parent=5 // pred_region
      %s242 = ssub.s32 %s13, 1
      %p243 = scmp.lt.s32.totalorder %s18, 1
      %s244 = scalar_select %p243, %s18, 1
      %s245 = smul.addr %s244, 2
      %s246 = smul.addr %s245, 8
      %s247 = scalar_lea.vmem %s0, %s246
      %p248 = pneg %p39
      %p249 = pneg %p36
      %p250 = pneg %p60
      %p251 = pneg %p57
      %p252 = pneg %p81
      %p253 = pneg %p78
      %p254 = pneg %p102
      %p255 = pneg %p99
      %p256 = pneg %p123
      %p257 = pneg %p120
      %p258 = pneg %p144
      %p259 = pneg %p141
      %p260 = pneg %p165
      %p261 = pneg %p162
      %p262 = pneg %p191
      %p263 = pneg %p188
      %p264 = scmp.lt.s32.totalorder %s18, 1
      %s265 = scalar_select %p264, %s18, 1
      %s266 = smul.addr %s265, 18
      %s267 = smul.addr %s266, 8
      %s268 = scalar_lea.vmem %s7, %s267
      %p269 = scmp.lt.s32.totalorder %s18, 1
      %s270 = scalar_select %p269, %s18, 1
      %s271 = smul.addr %s270, 2
      %s272 = smul.addr %s271, 8
      %s273 = scalar_lea.vmem %s0, %s272
      %p274 = scmp.lt.s32.totalorder %s18, 1
      %s275 = scalar_select %p274, %s18, 1
      %s276 = smul.addr %s275, 18
      %s277 = smul.addr %s276, 8
      %s278 = scalar_lea.vmem %s7, %s277
      %279 = vst [vmem:[#allocation2] sm:$0xff] 0.0
      %280 = vst [vmem:[#allocation2 + $0x8] sm:$0xff] 0.0
      %281 = vst [vmem:[#allocation2 + $0x10] sm:$0xff] 0.0
      %282 = vst [vmem:[#allocation2 + $0x18] sm:$0xff] 0.0
      %283 = vst [vmem:[#allocation2 + $0x20] sm:$0x7] 0.0
      %284 = vst [vmem:[#allocation2 + $0x28] sm:$0x7] 0.0
      %v285 = vld [vmem:[%s273] ss:$8 sm:$0x3]
      %v286 = vlaneseq
      %vm287 = vcmp.ge.s32.totalorder %v286, 0
      %vm288 = vcmp.lt.s32.totalorder %v286, 256
      %vm289 = vmand %vm287, %vm288
      %s290 = scalar_lea.vmem [#allocation2], 2
      %291 = vst.msk [vmem:[%s290] ss:$8 sm:$0x3] %vm289, %v285
      %292 = vst.msk [vmem:[%s290] ss:$8 sm:$0x0] %vm289, %v285
      %s293 = scalar_lea.vmem %s273, 1
      %v294 = vld [vmem:[%s293] ss:$8 sm:$0x3]
      %s295 = scalar_lea.vmem [#allocation2], 4
      %296 = vst.msk [vmem:[%s295] ss:$8 sm:$0x3] %vm289, %v294
      %297 = vst.msk [vmem:[%s295] ss:$8 sm:$0x0] %vm289, %v294
      %s298 = scalar_lea.vmem %s273, 2
      %v299 = vld [vmem:[%s298] ss:$8 sm:$0x3]
      %s300 = scalar_lea.vmem [#allocation2], 6
      %301 = vst.msk [vmem:[%s300] ss:$8 sm:$0x3] %vm289, %v299
      %302 = vst.msk [vmem:[%s300] ss:$8 sm:$0x0] %vm289, %v299
      %s303 = scalar_lea.vmem %s273, 3
      %v304 = vld [vmem:[%s303] ss:$8 sm:$0x3]
      %s305 = scalar_lea.vmem [#allocation2], 16
      %306 = vst.msk [vmem:[%s305] ss:$8 sm:$0x3] %vm289, %v304
      %307 = vst.msk [vmem:[%s305] ss:$8 sm:$0x0] %vm289, %v304
      %s308 = scalar_lea.vmem %s273, 4
      %v309 = vld [vmem:[%s308] ss:$8 sm:$0x3]
      %s310 = scalar_lea.vmem [#allocation2], 18
      %311 = vst.msk [vmem:[%s310] ss:$8 sm:$0x3] %vm289, %v309
      %312 = vst.msk [vmem:[%s310] ss:$8 sm:$0x0] %vm289, %v309
      %s313 = scalar_lea.vmem %s273, 5
      %v314 = vld [vmem:[%s313] ss:$8 sm:$0x3]
      %s315 = scalar_lea.vmem [#allocation2], 20
      %316 = vst.msk [vmem:[%s315] ss:$8 sm:$0x3] %vm289, %v314
      %317 = vst.msk [vmem:[%s315] ss:$8 sm:$0x0] %vm289, %v314
      %s318 = scalar_lea.vmem %s273, 6
      %v319 = vld [vmem:[%s318] ss:$8 sm:$0x3]
      %s320 = scalar_lea.vmem [#allocation2], 22
      %321 = vst.msk [vmem:[%s320] ss:$8 sm:$0x3] %vm289, %v319
      %322 = vst.msk [vmem:[%s320] ss:$8 sm:$0x0] %vm289, %v319
      %s323 = scalar_lea.vmem %s273, 7
      %v324 = vld [vmem:[%s323] ss:$8 sm:$0x3]
      %s325 = scalar_lea.vmem [#allocation2], 32
      %326 = vst.msk [vmem:[%s325] ss:$8 sm:$0x3] %vm289, %v324
      %327 = vst.msk [vmem:[%s325] ss:$8 sm:$0x0] %vm289, %v324
      %v328 = vld [vmem:[#allocation2] sm:$0xff]
      %v329 = vld [vmem:[#allocation2 + $0x8] sm:$0xff]
      %v330 = vld [vmem:[#allocation2 + $0x10] sm:$0xff]
      %v331 = vld [vmem:[#allocation2 + $0x18] sm:$0xff]
      %v332 = vld [vmem:[#allocation2 + $0x20] sm:$0x1]
      %v333 = vld [vmem:[#allocation2 + $0x28] sm:$0x1]
      %v334 = vld [vmem:[%s1] sm:$0xff]
      %v335 = vld [vmem:[%s1 + $0x8] sm:$0xff]
      %v336 = vld [vmem:[%s1 + $0x10] sm:$0xff]
      %v337 = vld [vmem:[%s1 + $0x18] sm:$0xff]
      %v338 = vld [vmem:[%s1 + $0x20] sm:$0xff]
      %v339 = vld [vmem:[%s1 + $0x28] sm:$0xff]
      %v340 = vld [vmem:[%s1 + $0x30] sm:$0xff]
      %v341 = vld [vmem:[%s1 + $0x38] sm:$0xff]
      %v342 = vld [vmem:[%s1 + $0x40] sm:$0xff]
      %v343 = vld [vmem:[%s1 + $0x48] sm:$0xff]
      %v344 = vld [vmem:[%s1 + $0x50] sm:$0xff]
      %v345 = vld [vmem:[%s1 + $0x58] sm:$0xff]
      %v346 = vld [vmem:[%s1 + $0x60] sm:$0xff]
      %v347 = vld [vmem:[%s1 + $0x68] sm:$0xff]
      %v348 = vld [vmem:[%s1 + $0x70] sm:$0xff]
      %v349 = vld [vmem:[%s1 + $0x78] sm:$0xff]
      %v350 = vld [vmem:[%s1 + $0x80] sm:$0xff]
      %v351 = vld [vmem:[%s1 + $0x88] sm:$0xff]
      %v352 = vld [vmem:[%s1 + $0x90] sm:$0xff]
      %v353 = vld [vmem:[%s1 + $0x98] sm:$0xff]
      %v354 = vld [vmem:[%s1 + $0xa0] sm:$0xff]
      %v355 = vld [vmem:[%s1 + $0xa8] sm:$0xff]
      %v356 = vld [vmem:[%s1 + $0xb0] sm:$0xff]
      %v357 = vld [vmem:[%s1 + $0xb8] sm:$0xff]
      %v358 = vld [vmem:[%s1 + $0xc0] sm:$0xff]
      %v359 = vld [vmem:[%s1 + $0xc8] sm:$0xff]
      %v360 = vld [vmem:[%s1 + $0xd0] sm:$0xff]
      %v361 = vld [vmem:[%s1 + $0xd8] sm:$0xff]
      %v362 = vld [vmem:[%s1 + $0xe0] sm:$0xff]
      %v363 = vld [vmem:[%s1 + $0xe8] sm:$0xff]
      %v364 = vld [vmem:[%s1 + $0xf0] sm:$0xff]
      %v365 = vld [vmem:[%s1 + $0xf8] sm:$0xff]
      %v366 = vld [vmem:[%s1 + $0x100] sm:$0xff]
      %v367 = vld [vmem:[%s1 + $0x108] sm:$0xff]
      %v368 = vld [vmem:[%s1 + $0x110] sm:$0xff]
      %v369 = vld [vmem:[%s1 + $0x118] sm:$0xff]
      %v370 = vld [vmem:[%s1 + $0x120] sm:$0xff]
      %v371 = vld [vmem:[%s1 + $0x128] sm:$0xff]
      %v372 = vld [vmem:[%s1 + $0x130] sm:$0xff]
      %v373 = vld [vmem:[%s1 + $0x138] sm:$0xff]
      %v374 = vld [vmem:[%s1 + $0x140] sm:$0xff]
      %v375 = vld [vmem:[%s1 + $0x148] sm:$0xff]
      %v376 = vld [vmem:[%s1 + $0x150] sm:$0xff]
      %v377 = vld [vmem:[%s1 + $0x158] sm:$0xff]
      %v378 = vld [vmem:[%s1 + $0x160] sm:$0xff]
      %v379 = vld [vmem:[%s1 + $0x168] sm:$0xff]
      %v380 = vld [vmem:[%s1 + $0x170] sm:$0xff]
      %v381 = vld [vmem:[%s1 + $0x178] sm:$0xff]
      %v382 = vld [vmem:[%s1 + $0x180] sm:$0xff]
      %v383 = vld [vmem:[%s1 + $0x188] sm:$0xff]
      %v384 = vld [vmem:[%s1 + $0x190] sm:$0xff]
      %v385 = vld [vmem:[%s1 + $0x198] sm:$0xff]
      %v386 = vld [vmem:[%s1 + $0x1a0] sm:$0xff]
      %v387 = vld [vmem:[%s1 + $0x1a8] sm:$0xff]
      %v388 = vld [vmem:[%s1 + $0x1b0] sm:$0xff]
      %v389 = vld [vmem:[%s1 + $0x1b8] sm:$0xff]
      %v390 = vld [vmem:[%s1 + $0x1c0] sm:$0xff]
      %v391 = vld [vmem:[%s1 + $0x1c8] sm:$0xff]
      %v392 = vld [vmem:[%s1 + $0x1d0] sm:$0xff]
      %v393 = vld [vmem:[%s1 + $0x1d8] sm:$0xff]
      %v394 = vld [vmem:[%s1 + $0x1e0] sm:$0xff]
      %v395 = vld [vmem:[%s1 + $0x1e8] sm:$0xff]
      %v396 = vld [vmem:[%s1 + $0x1f0] sm:$0xff]
      %v397 = vld [vmem:[%s1 + $0x1f8] sm:$0xff]
      %v398 = vld [vmem:[%s1 + $0x200] sm:$0xff]
      %v399 = vld [vmem:[%s1 + $0x208] sm:$0xff]
      %v400 = vld [vmem:[%s1 + $0x210] sm:$0xff]
      %v401 = vld [vmem:[%s1 + $0x218] sm:$0xff]
      %v402 = vld [vmem:[%s1 + $0x220] sm:$0xff]
      %v403 = vld [vmem:[%s1 + $0x228] sm:$0xff]
      %v404 = vld [vmem:[%s1 + $0x230] sm:$0xff]
      %v405 = vld [vmem:[%s1 + $0x238] sm:$0xff]
      %v406 = vld [vmem:[%s1 + $0x240] sm:$0xff]
      %v407 = vld [vmem:[%s1 + $0x248] sm:$0xff]
      %v408 = vld [vmem:[%s1 + $0x250] sm:$0xff]
      %v409 = vld [vmem:[%s1 + $0x258] sm:$0xff]
      %v410 = vld [vmem:[%s1 + $0x260] sm:$0xff]
      %v411 = vld [vmem:[%s1 + $0x268] sm:$0xff]
      %v412 = vld [vmem:[%s1 + $0x270] sm:$0xff]
      %v413 = vld [vmem:[%s1 + $0x278] sm:$0xff]
      %v414 = vld [vmem:[%s1 + $0x280] sm:$0xff]
      %v415 = vld [vmem:[%s1 + $0x288] sm:$0xff]
      %v416 = vld [vmem:[%s1 + $0x290] sm:$0xff]
      %v417 = vld [vmem:[%s1 + $0x298] sm:$0xff]
      %v418 = vld [vmem:[%s1 + $0x2a0] sm:$0xff]
      %v419 = vld [vmem:[%s1 + $0x2a8] sm:$0xff]
      %v420 = vld [vmem:[%s1 + $0x2b0] sm:$0xff]
      %v421 = vld [vmem:[%s1 + $0x2b8] sm:$0xff]
      %v422 = vld [vmem:[%s1 + $0x2c0] sm:$0xff]
      %v423 = vld [vmem:[%s1 + $0x2c8] sm:$0xff]
      %v424 = vld [vmem:[%s1 + $0x2d0] sm:$0xff]
      %v425 = vld [vmem:[%s1 + $0x2d8] sm:$0xff]
      %v426 = vld [vmem:[%s1 + $0x2e0] sm:$0xff]
      %v427 = vld [vmem:[%s1 + $0x2e8] sm:$0xff]
      %v428 = vld [vmem:[%s1 + $0x2f0] sm:$0xff]
      %v429 = vld [vmem:[%s1 + $0x2f8] sm:$0xff]
      %v430 = vld [vmem:[#allocation2] sm:$0xfe]
      %v431 = vld [vmem:[#allocation2 + $0x8] sm:$0xfe]
      %v432 = vld [vmem:[#allocation2 + $0x20] sm:$0x3]
      %v433 = vld [vmem:[#allocation2 + $0x28] sm:$0x3]
      %s434 = scalar_lea.vmem %s1, 768
      %v435 = vld [vmem:[%s434] sm:$0xff]
      %v436 = vld [vmem:[%s434 + $0x8] sm:$0xff]
      %v437 = vld [vmem:[%s434 + $0x10] sm:$0xff]
      %v438 = vld [vmem:[%s434 + $0x18] sm:$0xff]
      %v439 = vld [vmem:[%s434 + $0x20] sm:$0xff]
      %v440 = vld [vmem:[%s434 + $0x28] sm:$0xff]
      %v441 = vld [vmem:[%s434 + $0x30] sm:$0xff]
      %v442 = vld [vmem:[%s434 + $0x38] sm:$0xff]
      %v443 = vld [vmem:[%s434 + $0x40] sm:$0xff]
      %v444 = vld [vmem:[%s434 + $0x48] sm:$0xff]
      %v445 = vld [vmem:[%s434 + $0x50] sm:$0xff]
      %v446 = vld [vmem:[%s434 + $0x58] sm:$0xff]
      %v447 = vld [vmem:[%s434 + $0x60] sm:$0xff]
      %v448 = vld [vmem:[%s434 + $0x68] sm:$0xff]
      %v449 = vld [vmem:[%s434 + $0x70] sm:$0xff]
      %v450 = vld [vmem:[%s434 + $0x78] sm:$0xff]
      %v451 = vld [vmem:[%s434 + $0x80] sm:$0xff]
      %v452 = vld [vmem:[%s434 + $0x88] sm:$0xff]
      %v453 = vld [vmem:[%s434 + $0x90] sm:$0xff]
      %v454 = vld [vmem:[%s434 + $0x98] sm:$0xff]
      %v455 = vld [vmem:[%s434 + $0xa0] sm:$0xff]
      %v456 = vld [vmem:[%s434 + $0xa8] sm:$0xff]
      %v457 = vld [vmem:[%s434 + $0xb0] sm:$0xff]
      %v458 = vld [vmem:[%s434 + $0xb8] sm:$0xff]
      %v459 = vld [vmem:[%s434 + $0xc0] sm:$0xff]
      %v460 = vld [vmem:[%s434 + $0xc8] sm:$0xff]
      %v461 = vld [vmem:[%s434 + $0xd0] sm:$0xff]
      %v462 = vld [vmem:[%s434 + $0xd8] sm:$0xff]
      %v463 = vld [vmem:[%s434 + $0xe0] sm:$0xff]
      %v464 = vld [vmem:[%s434 + $0xe8] sm:$0xff]
      %v465 = vld [vmem:[%s434 + $0xf0] sm:$0xff]
      %v466 = vld [vmem:[%s434 + $0xf8] sm:$0xff]
      %v467 = vld [vmem:[%s434 + $0x100] sm:$0xff]
      %v468 = vld [vmem:[%s434 + $0x108] sm:$0xff]
      %v469 = vld [vmem:[%s434 + $0x110] sm:$0xff]
      %v470 = vld [vmem:[%s434 + $0x118] sm:$0xff]
      %v471 = vld [vmem:[%s434 + $0x120] sm:$0xff]
      %v472 = vld [vmem:[%s434 + $0x128] sm:$0xff]
      %v473 = vld [vmem:[%s434 + $0x130] sm:$0xff]
      %v474 = vld [vmem:[%s434 + $0x138] sm:$0xff]
      %v475 = vld [vmem:[%s434 + $0x140] sm:$0xff]
      %v476 = vld [vmem:[%s434 + $0x148] sm:$0xff]
      %v477 = vld [vmem:[%s434 + $0x150] sm:$0xff]
      %v478 = vld [vmem:[%s434 + $0x158] sm:$0xff]
      %v479 = vld [vmem:[%s434 + $0x160] sm:$0xff]
      %v480 = vld [vmem:[%s434 + $0x168] sm:$0xff]
      %v481 = vld [vmem:[%s434 + $0x170] sm:$0xff]
      %v482 = vld [vmem:[%s434 + $0x178] sm:$0xff]
      %v483 = vld [vmem:[%s434 + $0x180] sm:$0xff]
      %v484 = vld [vmem:[%s434 + $0x188] sm:$0xff]
      %v485 = vld [vmem:[%s434 + $0x190] sm:$0xff]
      %v486 = vld [vmem:[%s434 + $0x198] sm:$0xff]
      %v487 = vld [vmem:[%s434 + $0x1a0] sm:$0xff]
      %v488 = vld [vmem:[%s434 + $0x1a8] sm:$0xff]
      %v489 = vld [vmem:[%s434 + $0x1b0] sm:$0xff]
      %v490 = vld [vmem:[%s434 + $0x1b8] sm:$0xff]
      %v491 = vld [vmem:[%s434 + $0x1c0] sm:$0xff]
      %v492 = vld [vmem:[%s434 + $0x1c8] sm:$0xff]
      %v493 = vld [vmem:[%s434 + $0x1d0] sm:$0xff]
      %v494 = vld [vmem:[%s434 + $0x1d8] sm:$0xff]
      %v495 = vld [vmem:[%s434 + $0x1e0] sm:$0xff]
      %v496 = vld [vmem:[%s434 + $0x1e8] sm:$0xff]
      %v497 = vld [vmem:[%s434 + $0x1f0] sm:$0xff]
      %v498 = vld [vmem:[%s434 + $0x1f8] sm:$0xff]
      %v499 = vld [vmem:[%s434 + $0x200] sm:$0xff]
      %v500 = vld [vmem:[%s434 + $0x208] sm:$0xff]
      %v501 = vld [vmem:[%s434 + $0x210] sm:$0xff]
      %v502 = vld [vmem:[%s434 + $0x218] sm:$0xff]
      %v503 = vld [vmem:[%s434 + $0x220] sm:$0xff]
      %v504 = vld [vmem:[%s434 + $0x228] sm:$0xff]
      %v505 = vld [vmem:[%s434 + $0x230] sm:$0xff]
      %v506 = vld [vmem:[%s434 + $0x238] sm:$0xff]
      %v507 = vld [vmem:[%s434 + $0x240] sm:$0xff]
      %v508 = vld [vmem:[%s434 + $0x248] sm:$0xff]
      %v509 = vld [vmem:[%s434 + $0x250] sm:$0xff]
      %v510 = vld [vmem:[%s434 + $0x258] sm:$0xff]
      %v511 = vld [vmem:[%s434 + $0x260] sm:$0xff]
      %v512 = vld [vmem:[%s434 + $0x268] sm:$0xff]
      %v513 = vld [vmem:[%s434 + $0x270] sm:$0xff]
      %v514 = vld [vmem:[%s434 + $0x278] sm:$0xff]
      %v515 = vld [vmem:[%s434 + $0x280] sm:$0xff]
      %v516 = vld [vmem:[%s434 + $0x288] sm:$0xff]
      %v517 = vld [vmem:[%s434 + $0x290] sm:$0xff]
      %v518 = vld [vmem:[%s434 + $0x298] sm:$0xff]
      %v519 = vld [vmem:[%s434 + $0x2a0] sm:$0xff]
      %v520 = vld [vmem:[%s434 + $0x2a8] sm:$0xff]
      %v521 = vld [vmem:[%s434 + $0x2b0] sm:$0xff]
      %v522 = vld [vmem:[%s434 + $0x2b8] sm:$0xff]
      %v523 = vld [vmem:[%s434 + $0x2c0] sm:$0xff]
      %v524 = vld [vmem:[%s434 + $0x2c8] sm:$0xff]
      %v525 = vld [vmem:[%s434 + $0x2d0] sm:$0xff]
      %v526 = vld [vmem:[%s434 + $0x2d8] sm:$0xff]
      %v527 = vld [vmem:[%s434 + $0x2e0] sm:$0xff]
      %v528 = vld [vmem:[%s434 + $0x2e8] sm:$0xff]
      %v529 = vld [vmem:[%s434 + $0x2f0] sm:$0xff]
      %v530 = vld [vmem:[%s434 + $0x2f8] sm:$0xff]
      %vm537 = vcmask 1046528
      %v538 = vrot.slane %v430, 1
      %v539 = vrot.slane %v330, 1
      %v540 = vsel %vm537, %v538, %v539
      %v541 = vrot.slane %v431, 1
      %v542 = vrot.slane %v331, 1
      %v543 = vsel %vm537, %v541, %v542
      %v544 = vrot.slane %v432, 1
      %v545 = vsel %vm537, %v539, %v544
      %v546 = vrot.slane %v433, 1
      %v547 = vsel %vm537, %v542, %v546
      %554 = vmatprep.subr.mxu0 %v436
      %555 = vmatpush1.msra.mxu0 %v435
      %556 = vmatprep.subr.mxu0 %v439
      %557 = vmatpush1.msra.mxu0 %v438
      %558 = vmatprep.subr.mxu0 %v442
      %559 = vmatpush1.msra.mxu0 %v441
      %560 = vmatprep.subr.mxu0 %v445
      %561 = vmatpush1.msra.mxu0 %v444
      %562 = vmatprep.subr.mxu0 %v448
      %563 = vmatpush1.msra.mxu0 %v447
      %564 = vmatprep.subr.mxu0 %v451
      %565 = vmatpush1.msra.mxu0 %v450
      %566 = vmatprep.subr.mxu0 %v454
      %567 = vmatpush1.msra.mxu0 %v453
      %568 = vmatprep.subr.mxu0 %v457
      %569 = vmatpush1.msra.mxu0 %v456
      %570 = vmatprep.subr.mxu0 %v460
      %571 = vmatpush1.msra.mxu0 %v459
      %572 = vmatprep.subr.mxu0 %v463
      %573 = vmatpush1.msra.mxu0 %v462
      %574 = vmatprep.subr.mxu0 %v466
      %575 = vmatpush1.msra.mxu0 %v465
      %576 = vmatprep.subr.mxu0 %v469
      %577 = vmatpush1.msra.mxu0 %v468
      %578 = vmatprep.subr.mxu0 %v472
      %579 = vmatpush1.msra.mxu0 %v471
      %580 = vmatprep.subr.mxu0 %v475
      %581 = vmatpush1.msra.mxu0 %v474
      %582 = vmatprep.subr.mxu0 %v478
      %583 = vmatpush1.msra.mxu0 %v477
      %584 = vmatprep.subr.mxu0 %v481
      %585 = vmatpush1.msra.mxu0 %v480
      %586 = vmatprep.subr.mxu0 %v484
      %587 = vmatpush1.msra.mxu0 %v483
      %588 = vmatprep.subr.mxu0 %v487
      %589 = vmatpush1.msra.mxu0 %v486
      %590 = vmatprep.subr.mxu0 %v490
      %591 = vmatpush1.msra.mxu0 %v489
      %592 = vmatprep.subr.mxu0 %v493
      %593 = vmatpush1.msra.mxu0 %v492
      %594 = vmatprep.subr.mxu0 %v496
      %595 = vmatpush1.msra.mxu0 %v495
      %596 = vmatprep.subr.mxu0 %v499
      %597 = vmatpush1.msra.mxu0 %v498
      %598 = vmatprep.subr.mxu0 %v502
      %599 = vmatpush1.msra.mxu0 %v501
      %600 = vmatprep.subr.mxu0 %v505
      %601 = vmatpush1.msra.mxu0 %v504
      %602 = vmatprep.subr.mxu0 %v508
      %603 = vmatpush1.msra.mxu0 %v507
      %604 = vmatprep.subr.mxu0 %v511
      %605 = vmatpush1.msra.mxu0 %v510
      %606 = vmatprep.subr.mxu0 %v514
      %607 = vmatpush1.msra.mxu0 %v513
      %608 = vmatprep.subr.mxu0 %v517
      %609 = vmatpush1.msra.mxu0 %v516
      %610 = vmatprep.subr.mxu0 %v520
      %611 = vmatpush1.msra.mxu0 %v519
      %612 = vmatprep.subr.mxu0 %v523
      %613 = vmatpush1.msra.mxu0 %v522
      %614 = vmatprep.subr.mxu0 %v526
      %615 = vmatpush1.msra.mxu0 %v525
      %616 = vmatprep.subr.mxu0 %v529
      %617 = vmatpush1.msra.mxu0 %v528
      %618 = vmatprep.mubr.f32.mxu0 %v543
      %619 = vmatmul.mubr.f32.gmra.mrb[0].mxu0 %v540
      %v620 = vpop.f32.mrb[0].mxu0
      %v621 = vadd.f32 0.0, %v620
      %v622 = vpop.f32.mrb[0].mxu0
      %v623 = vadd.f32 0.0, %v622
      %624 = vmatprep.mubr.f32.mxu0 %v547
      %625 = vmatmul.mubr.f32.gmra.mrb[0].mxu0 %v545
      %v626 = vpop.f32.mrb[0].mxu0
      %v627 = vadd.f32 0.0, %v626
      %v628 = vpop.f32.mrb[0].mxu0
      %v629 = vadd.f32 0.0, %v628
      %630 = vmatprep.mubr.f32.mxu0 %v546
      %631 = vmatmul.mubr.f32.gmra.mrb[0].mxu0 %v544
      %v632 = vpop.f32.mrb[0].mxu0
      %v633 = vadd.f32 0.0, %v632
      %v634 = vpop.f32.mrb[0].mxu0
      %v635 = vadd.f32 0.0, %v634
      %636 = vdwg.mxu0
      %637 = vmatprep.subr.mxu0 0.0
      %638 = vmatpush1.msra.mxu0 %v437
      %639 = vmatprep.subr.mxu0 0.0
      %640 = vmatpush1.msra.mxu0 %v440
      %641 = vmatprep.subr.mxu0 0.0
      %642 = vmatpush1.msra.mxu0 %v443
      %643 = vmatprep.subr.mxu0 0.0
      %644 = vmatpush1.msra.mxu0 %v446
      %645 = vmatprep.subr.mxu0 0.0
      %646 = vmatpush1.msra.mxu0 %v449
      %647 = vmatprep.subr.mxu0 0.0
      %648 = vmatpush1.msra.mxu0 %v452
      %649 = vmatprep.subr.mxu0 0.0
      %650 = vmatpush1.msra.mxu0 %v455
      %651 = vmatprep.subr.mxu0 0.0
      %652 = vmatpush1.msra.mxu0 %v458
      %653 = vmatprep.subr.mxu0 0.0
      %654 = vmatpush1.msra.mxu0 %v461
      %655 = vmatprep.subr.mxu0 0.0
      %656 = vmatpush1.msra.mxu0 %v464
      %657 = vmatprep.subr.mxu0 0.0
      %658 = vmatpush1.msra.mxu0 %v467
      %659 = vmatprep.subr.mxu0 0.0
      %660 = vmatpush1.msra.mxu0 %v470
      %661 = vmatprep.subr.mxu0 0.0
      %662 = vmatpush1.msra.mxu0 %v473
      %663 = vmatprep.subr.mxu0 0.0
      %664 = vmatpush1.msra.mxu0 %v476
      %665 = vmatprep.subr.mxu0 0.0
      %666 = vmatpush1.msra.mxu0 %v479
      %667 = vmatprep.subr.mxu0 0.0
      %668 = vmatpush1.msra.mxu0 %v482
      %669 = vmatprep.subr.mxu0 0.0
      %670 = vmatpush1.msra.mxu0 %v485
      %671 = vmatprep.subr.mxu0 0.0
      %672 = vmatpush1.msra.mxu0 %v488
      %673 = vmatprep.subr.mxu0 0.0
      %674 = vmatpush1.msra.mxu0 %v491
      %675 = vmatprep.subr.mxu0 0.0
      %676 = vmatpush1.msra.mxu0 %v494
      %677 = vmatprep.subr.mxu0 0.0
      %678 = vmatpush1.msra.mxu0 %v497
      %679 = vmatprep.subr.mxu0 0.0
      %680 = vmatpush1.msra.mxu0 %v500
      %681 = vmatprep.subr.mxu0 0.0
      %682 = vmatpush1.msra.mxu0 %v503
      %683 = vmatprep.subr.mxu0 0.0
      %684 = vmatpush1.msra.mxu0 %v506
      %685 = vmatprep.subr.mxu0 0.0
      %686 = vmatpush1.msra.mxu0 %v509
      %687 = vmatprep.subr.mxu0 0.0
      %688 = vmatpush1.msra.mxu0 %v512
      %689 = vmatprep.subr.mxu0 0.0
      %690 = vmatpush1.msra.mxu0 %v515
      %691 = vmatprep.subr.mxu0 0.0
      %692 = vmatpush1.msra.mxu0 %v518
      %693 = vmatprep.subr.mxu0 0.0
      %694 = vmatpush1.msra.mxu0 %v521
      %695 = vmatprep.subr.mxu0 0.0
      %696 = vmatpush1.msra.mxu0 %v524
      %697 = vmatprep.subr.mxu0 0.0
      %698 = vmatpush1.msra.mxu0 %v527
      %699 = vmatprep.subr.mxu0 0.0
      %700 = vmatpush1.msra.mxu0 %v530
      %701 = vmatprep.mubr.f32.mxu0 %v543
      %702 = vmatmul.mubr.f32.gmra.mrb[0].mxu0 %v540
      %v703 = vpop.f32.mrb[0].mxu0
      %v704 = vadd.f32 0.0, %v703
      %v705 = vpop.f32.mrb[0].mxu0
      %706 = vmatprep.mubr.f32.mxu0 %v547
      %707 = vmatmul.mubr.f32.gmra.mrb[0].mxu0 %v545
      %v708 = vpop.f32.mrb[0].mxu0
      %v709 = vadd.f32 0.0, %v708
      %v710 = vpop.f32.mrb[0].mxu0
      %711 = vmatprep.mubr.f32.mxu0 %v546
      %712 = vmatmul.mubr.f32.gmra.mrb[0].mxu0 %v544
      %v713 = vpop.f32.mrb[0].mxu0
      %v714 = vadd.f32 0.0, %v713
      %v715 = vpop.f32.mrb[0].mxu0
      %716 = vdwg.mxu0
      %717 = vmatprep.subr.mxu0 %v335
      %718 = vmatpush1.msra.mxu0 %v334
      %719 = vmatprep.subr.mxu0 %v338
      %720 = vmatpush1.msra.mxu0 %v337
      %721 = vmatprep.subr.mxu0 %v341
      %722 = vmatpush1.msra.mxu0 %v340
      %723 = vmatprep.subr.mxu0 %v344
      %724 = vmatpush1.msra.mxu0 %v343
      %725 = vmatprep.subr.mxu0 %v347
      %726 = vmatpush1.msra.mxu0 %v346
      %727 = vmatprep.subr.mxu0 %v350
      %728 = vmatpush1.msra.mxu0 %v349
      %729 = vmatprep.subr.mxu0 %v353
      %730 = vmatpush1.msra.mxu0 %v352
      %731 = vmatprep.subr.mxu0 %v356
      %732 = vmatpush1.msra.mxu0 %v355
      %733 = vmatprep.subr.mxu0 %v359
      %734 = vmatpush1.msra.mxu0 %v358
      %735 = vmatprep.subr.mxu0 %v362
      %736 = vmatpush1.msra.mxu0 %v361
      %737 = vmatprep.subr.mxu0 %v365
      %738 = vmatpush1.msra.mxu0 %v364
      %739 = vmatprep.subr.mxu0 %v368
      %740 = vmatpush1.msra.mxu0 %v367
      %741 = vmatprep.subr.mxu0 %v371
      %742 = vmatpush1.msra.mxu0 %v370
      %743 = vmatprep.subr.mxu0 %v374
      %744 = vmatpush1.msra.mxu0 %v373
      %745 = vmatprep.subr.mxu0 %v377
      %746 = vmatpush1.msra.mxu0 %v376
      %747 = vmatprep.subr.mxu0 %v380
      %748 = vmatpush1.msra.mxu0 %v379
      %749 = vmatprep.subr.mxu0 %v383
      %750 = vmatpush1.msra.mxu0 %v382
      %751 = vmatprep.subr.mxu0 %v386
      %752 = vmatpush1.msra.mxu0 %v385
      %753 = vmatprep.subr.mxu0 %v389
      %754 = vmatpush1.msra.mxu0 %v388
      %755 = vmatprep.subr.mxu0 %v392
      %756 = vmatpush1.msra.mxu0 %v391
      %757 = vmatprep.subr.mxu0 %v395
      %758 = vmatpush1.msra.mxu0 %v394
      %759 = vmatprep.subr.mxu0 %v398
      %760 = vmatpush1.msra.mxu0 %v397
      %761 = vmatprep.subr.mxu0 %v401
      %762 = vmatpush1.msra.mxu0 %v400
      %763 = vmatprep.subr.mxu0 %v404
      %764 = vmatpush1.msra.mxu0 %v403
      %765 = vmatprep.subr.mxu0 %v407
      %766 = vmatpush1.msra.mxu0 %v406
      %767 = vmatprep.subr.mxu0 %v410
      %768 = vmatpush1.msra.mxu0 %v409
      %769 = vmatprep.subr.mxu0 %v413
      %770 = vmatpush1.msra.mxu0 %v412
      %771 = vmatprep.subr.mxu0 %v416
      %772 = vmatpush1.msra.mxu0 %v415
      %773 = vmatprep.subr.mxu0 %v419
      %774 = vmatpush1.msra.mxu0 %v418
      %775 = vmatprep.subr.mxu0 %v422
      %776 = vmatpush1.msra.mxu0 %v421
      %777 = vmatprep.subr.mxu0 %v425
      %778 = vmatpush1.msra.mxu0 %v424
      %779 = vmatprep.subr.mxu0 %v428
      %780 = vmatpush1.msra.mxu0 %v427
      %781 = vmatprep.mubr.f32.mxu0 %v329
      %782 = vmatmul.mubr.f32.gmra.mrb[0].mxu0 %v328
      %v783 = vpop.f32.mrb[0].mxu0
      %v784 = vadd.f32 %v621, %v783
      %v785 = vpop.f32.mrb[0].mxu0
      %v786 = vadd.f32 %v623, %v785
      %787 = vmatprep.mubr.f32.mxu0 %v331
      %788 = vmatmul.mubr.f32.gmra.mrb[0].mxu0 %v330
      %v789 = vpop.f32.mrb[0].mxu0
      %v790 = vadd.f32 %v627, %v789
      %v791 = vpop.f32.mrb[0].mxu0
      %v792 = vadd.f32 %v629, %v791
      %793 = vmatprep.mubr.f32.mxu0 %v333
      %794 = vmatmul.mubr.f32.gmra.mrb[0].mxu0 %v332
      %v795 = vpop.f32.mrb[0].mxu0
      %v796 = vadd.f32 %v633, %v795
      %v797 = vpop.f32.mrb[0].mxu0
      %v798 = vadd.f32 %v635, %v797
      %799 = vdwg.mxu0
      %800 = vmatprep.subr.mxu0 0.0
      %801 = vmatpush1.msra.mxu0 %v336
      %802 = vmatprep.subr.mxu0 0.0
      %803 = vmatpush1.msra.mxu0 %v339
      %804 = vmatprep.subr.mxu0 0.0
      %805 = vmatpush1.msra.mxu0 %v342
      %806 = vmatprep.subr.mxu0 0.0
      %807 = vmatpush1.msra.mxu0 %v345
      %808 = vmatprep.subr.mxu0 0.0
      %809 = vmatpush1.msra.mxu0 %v348
      %810 = vmatprep.subr.mxu0 0.0
      %811 = vmatpush1.msra.mxu0 %v351
      %812 = vmatprep.subr.mxu0 0.0
      %813 = vmatpush1.msra.mxu0 %v354
      %814 = vmatprep.subr.mxu0 0.0
      %815 = vmatpush1.msra.mxu0 %v357
      %816 = vmatprep.subr.mxu0 0.0
      %817 = vmatpush1.msra.mxu0 %v360
      %818 = vmatprep.subr.mxu0 0.0
      %819 = vmatpush1.msra.mxu0 %v363
      %820 = vmatprep.subr.mxu0 0.0
      %821 = vmatpush1.msra.mxu0 %v366
      %822 = vmatprep.subr.mxu0 0.0
      %823 = vmatpush1.msra.mxu0 %v369
      %824 = vmatprep.subr.mxu0 0.0
      %825 = vmatpush1.msra.mxu0 %v372
      %826 = vmatprep.subr.mxu0 0.0
      %827 = vmatpush1.msra.mxu0 %v375
      %828 = vmatprep.subr.mxu0 0.0
      %829 = vmatpush1.msra.mxu0 %v378
      %830 = vmatprep.subr.mxu0 0.0
      %831 = vmatpush1.msra.mxu0 %v381
      %832 = vmatprep.subr.mxu0 0.0
      %833 = vmatpush1.msra.mxu0 %v384
      %834 = vmatprep.subr.mxu0 0.0
      %835 = vmatpush1.msra.mxu0 %v387
      %836 = vmatprep.subr.mxu0 0.0
      %837 = vmatpush1.msra.mxu0 %v390
      %838 = vmatprep.subr.mxu0 0.0
      %839 = vmatpush1.msra.mxu0 %v393
      %840 = vmatprep.subr.mxu0 0.0
      %841 = vmatpush1.msra.mxu0 %v396
      %842 = vmatprep.subr.mxu0 0.0
      %843 = vmatpush1.msra.mxu0 %v399
      %844 = vmatprep.subr.mxu0 0.0
      %845 = vmatpush1.msra.mxu0 %v402
      %846 = vmatprep.subr.mxu0 0.0
      %847 = vmatpush1.msra.mxu0 %v405
      %848 = vmatprep.subr.mxu0 0.0
      %849 = vmatpush1.msra.mxu0 %v408
      %850 = vmatprep.subr.mxu0 0.0
      %851 = vmatpush1.msra.mxu0 %v411
      %852 = vmatprep.subr.mxu0 0.0
      %853 = vmatpush1.msra.mxu0 %v414
      %854 = vmatprep.subr.mxu0 0.0
      %855 = vmatpush1.msra.mxu0 %v417
      %856 = vmatprep.subr.mxu0 0.0
      %857 = vmatpush1.msra.mxu0 %v420
      %858 = vmatprep.subr.mxu0 0.0
      %859 = vmatpush1.msra.mxu0 %v423
      %860 = vmatprep.subr.mxu0 0.0
      %861 = vmatpush1.msra.mxu0 %v426
      %862 = vmatprep.subr.mxu0 0.0
      %863 = vmatpush1.msra.mxu0 %v429
      %864 = vmatprep.mubr.f32.mxu0 %v329
      %865 = vmatmul.mubr.f32.gmra.mrb[0].mxu0 %v328
      %v866 = vpop.f32.mrb[0].mxu0
      %v867 = vadd.f32 %v704, %v866
      %v868 = vpop.f32.mrb[0].mxu0
      %869 = vmatprep.mubr.f32.mxu0 %v331
      %870 = vmatmul.mubr.f32.gmra.mrb[0].mxu0 %v330
      %v871 = vpop.f32.mrb[0].mxu0
      %v872 = vadd.f32 %v709, %v871
      %v873 = vpop.f32.mrb[0].mxu0
      %874 = vmatprep.mubr.f32.mxu0 %v333
      %875 = vmatmul.mubr.f32.gmra.mrb[0].mxu0 %v332
      %v876 = vpop.f32.mrb[0].mxu0
      %v877 = vadd.f32 %v714, %v876
      %v878 = vpop.f32.mrb[0].mxu0
      %879 = vdwg.mxu0
      %v880 = vld [vmem:[#allocation2] sm:$0xfc]
      %v881 = vld [vmem:[#allocation2 + $0x8] sm:$0xfc]
      %v882 = vld [vmem:[#allocation2 + $0x20] sm:$0x7]
      %v883 = vld [vmem:[#allocation2 + $0x28] sm:$0x7]
      %s884 = scalar_lea.vmem %s1, 1536
      %v885 = vld [vmem:[%s884] sm:$0xff]
      %v886 = vld [vmem:[%s884 + $0x8] sm:$0xff]
      %v887 = vld [vmem:[%s884 + $0x10] sm:$0xff]
      %v888 = vld [vmem:[%s884 + $0x18] sm:$0xff]
      %v889 = vld [vmem:[%s884 + $0x20] sm:$0xff]
      %v890 = vld [vmem:[%s884 + $0x28] sm:$0xff]
      %v891 = vld [vmem:[%s884 + $0x30] sm:$0xff]
      %v892 = vld [vmem:[%s884 + $0x38] sm:$0xff]
      %v893 = vld [vmem:[%s884 + $0x40] sm:$0xff]
      %v894 = vld [vmem:[%s884 + $0x48] sm:$0xff]
      %v895 = vld [vmem:[%s884 + $0x50] sm:$0xff]
      %v896 = vld [vmem:[%s884 + $0x58] sm:$0xff]
      %v897 = vld [vmem:[%s884 + $0x60] sm:$0xff]
      %v898 = vld [vmem:[%s884 + $0x68] sm:$0xff]
      %v899 = vld [vmem:[%s884 + $0x70] sm:$0xff]
      %v900 = vld [vmem:[%s884 + $0x78] sm:$0xff]
      %v901 = vld [vmem:[%s884 + $0x80] sm:$0xff]
      %v902 = vld [vmem:[%s884 + $0x88] sm:$0xff]
      %v903 = vld [vmem:[%s884 + $0x90] sm:$0xff]
      %v904 = vld [vmem:[%s884 + $0x98] sm:$0xff]
      %v905 = vld [vmem:[%s884 + $0xa0] sm:$0xff]
      %v906 = vld [vmem:[%s884 + $0xa8] sm:$0xff]
      %v907 = vld [vmem:[%s884 + $0xb0] sm:$0xff]
      %v908 = vld [vmem:[%s884 + $0xb8] sm:$0xff]
      %v909 = vld [vmem:[%s884 + $0xc0] sm:$0xff]
      %v910 = vld [vmem:[%s884 + $0xc8] sm:$0xff]
      %v911 = vld [vmem:[%s884 + $0xd0] sm:$0xff]
      %v912 = vld [vmem:[%s884 + $0xd8] sm:$0xff]
      %v913 = vld [vmem:[%s884 + $0xe0] sm:$0xff]
      %v914 = vld [vmem:[%s884 + $0xe8] sm:$0xff]
      %v915 = vld [vmem:[%s884 + $0xf0] sm:$0xff]
      %v916 = vld [vmem:[%s884 + $0xf8] sm:$0xff]
      %v917 = vld [vmem:[%s884 + $0x100] sm:$0xff]
      %v918 = vld [vmem:[%s884 + $0x108] sm:$0xff]
      %v919 = vld [vmem:[%s884 + $0x110] sm:$0xff]
      %v920 = vld [vmem:[%s884 + $0x118] sm:$0xff]
      %v921 = vld [vmem:[%s884 + $0x120] sm:$0xff]
      %v922 = vld [vmem:[%s884 + $0x128] sm:$0xff]
      %v923 = vld [vmem:[%s884 + $0x130] sm:$0xff]
      %v924 = vld [vmem:[%s884 + $0x138] sm:$0xff]
      %v925 = vld [vmem:[%s884 + $0x140] sm:$0xff]
      %v926 = vld [vmem:[%s884 + $0x148] sm:$0xff]
      %v927 = vld [vmem:[%s884 + $0x150] sm:$0xff]
      %v928 = vld [vmem:[%s884 + $0x158] sm:$0xff]
      %v929 = vld [vmem:[%s884 + $0x160] sm:$0xff]
      %v930 = vld [vmem:[%s884 + $0x168] sm:$0xff]
      %v931 = vld [vmem:[%s884 + $0x170] sm:$0xff]
      %v932 = vld [vmem:[%s884 + $0x178] sm:$0xff]
      %v933 = vld [vmem:[%s884 + $0x180] sm:$0xff]
      %v934 = vld [vmem:[%s884 + $0x188] sm:$0xff]
      %v935 = vld [vmem:[%s884 + $0x190] sm:$0xff]
      %v936 = vld [vmem:[%s884 + $0x198] sm:$0xff]
      %v937 = vld [vmem:[%s884 + $0x1a0] sm:$0xff]
      %v938 = vld [vmem:[%s884 + $0x1a8] sm:$0xff]
      %v939 = vld [vmem:[%s884 + $0x1b0] sm:$0xff]
      %v940 = vld [vmem:[%s884 + $0x1b8] sm:$0xff]
      %v941 = vld [vmem:[%s884 + $0x1c0] sm:$0xff]
      %v942 = vld [vmem:[%s884 + $0x1c8] sm:$0xff]
      %v943 = vld [vmem:[%s884 + $0x1d0] sm:$0xff]
      %v944 = vld [vmem:[%s884 + $0x1d8] sm:$0xff]
      %v945 = vld [vmem:[%s884 + $0x1e0] sm:$0xff]
      %v946 = vld [vmem:[%s884 + $0x1e8] sm:$0xff]
      %v947 = vld [vmem:[%s884 + $0x1f0] sm:$0xff]
      %v948 = vld [vmem:[%s884 + $0x1f8] sm:$0xff]
      %v949 = vld [vmem:[%s884 + $0x200] sm:$0xff]
      %v950 = vld [vmem:[%s884 + $0x208] sm:$0xff]
      %v951 = vld [vmem:[%s884 + $0x210] sm:$0xff]
      %v952 = vld [vmem:[%s884 + $0x218] sm:$0xff]
      %v953 = vld [vmem:[%s884 + $0x220] sm:$0xff]
      %v954 = vld [vmem:[%s884 + $0x228] sm:$0xff]
      %v955 = vld [vmem:[%s884 + $0x230] sm:$0xff]
      %v956 = vld [vmem:[%s884 + $0x238] sm:$0xff]
      %v957 = vld [vmem:[%s884 + $0x240] sm:$0xff]
      %v958 = vld [vmem:[%s884 + $0x248] sm:$0xff]
      %v959 = vld [vmem:[%s884 + $0x250] sm:$0xff]
      %v960 = vld [vmem:[%s884 + $0x258] sm:$0xff]
      %v961 = vld [vmem:[%s884 + $0x260] sm:$0xff]
      %v962 = vld [vmem:[%s884 + $0x268] sm:$0xff]
      %v963 = vld [vmem:[%s884 + $0x270] sm:$0xff]
      %v964 = vld [vmem:[%s884 + $0x278] sm:$0xff]
      %v965 = vld [vmem:[%s884 + $0x280] sm:$0xff]
      %v966 = vld [vmem:[%s884 + $0x288] sm:$0xff]
      %v967 = vld [vmem:[%s884 + $0x290] sm:$0xff]
      %v968 = vld [vmem:[%s884 + $0x298] sm:$0xff]
      %v969 = vld [vmem:[%s884 + $0x2a0] sm:$0xff]
      %v970 = vld [vmem:[%s884 + $0x2a8] sm:$0xff]
      %v971 = vld [vmem:[%s884 + $0x2b0] sm:$0xff]
      %v972 = vld [vmem:[%s884 + $0x2b8] sm:$0xff]
      %v973 = vld [vmem:[%s884 + $0x2c0] sm:$0xff]
      %v974 = vld [vmem:[%s884 + $0x2c8] sm:$0xff]
      %v975 = vld [vmem:[%s884 + $0x2d0] sm:$0xff]
      %v976 = vld [vmem:[%s884 + $0x2d8] sm:$0xff]
      %v977 = vld [vmem:[%s884 + $0x2e0] sm:$0xff]
      %v978 = vld [vmem:[%s884 + $0x2e8] sm:$0xff]
      %v979 = vld [vmem:[%s884 + $0x2f0] sm:$0xff]
      %v980 = vld [vmem:[%s884 + $0x2f8] sm:$0xff]
      %vm985 = vcmask 1045504
      %v986 = vrot.slane %v880, 2
      %v987 = vrot.slane %v330, 2
      %v988 = vsel %vm985, %v986, %v987
      %v989 = vrot.slane %v881, 2
      %v990 = vrot.slane %v331, 2
      %v991 = vsel %vm985, %v989, %v990
      %v992 = vrot.slane %v882, 2
      %v993 = vsel %vm985, %v987, %v992
      %v994 = vrot.slane %v883, 2
      %v995 = vsel %vm985, %v990, %v994
      %1002 = vmatprep.subr.mxu0 %v886
      %1003 = vmatpush1.msra.mxu0 %v885
      %1004 = vmatprep.subr.mxu0 %v889
      %1005 = vmatpush1.msra.mxu0 %v888
      %1006 = vmatprep.subr.mxu0 %v892
      %1007 = vmatpush1.msra.mxu0 %v891
      %1008 = vmatprep.subr.mxu0 %v895
      %1009 = vmatpush1.msra.mxu0 %v894
      %1010 = vmatprep.subr.mxu0 %v898
      %1011 = vmatpush1.msra.mxu0 %v897
      %1012 = vmatprep.subr.mxu0 %v901
      %1013 = vmatpush1.msra.mxu0 %v900
      %1014 = vmatprep.subr.mxu0 %v904
      %1015 = vmatpush1.msra.mxu0 %v903
      %1016 = vmatprep.subr.mxu0 %v907
      %1017 = vmatpush1.msra.mxu0 %v906
      %1018 = vmatprep.subr.mxu0 %v910
      %1019 = vmatpush1.msra.mxu0 %v909
      %1020 = vmatprep.subr.mxu0 %v913
      %1021 = vmatpush1.msra.mxu0 %v912
      %1022 = vmatprep.subr.mxu0 %v916
      %1023 = vmatpush1.msra.mxu0 %v915
      %1024 = vmatprep.subr.mxu0 %v919
      %1025 = vmatpush1.msra.mxu0 %v918
      %1026 = vmatprep.subr.mxu0 %v922
      %1027 = vmatpush1.msra.mxu0 %v921
      %1028 = vmatprep.subr.mxu0 %v925
      %1029 = vmatpush1.msra.mxu0 %v924
      %1030 = vmatprep.subr.mxu0 %v928
      %1031 = vmatpush1.msra.mxu0 %v927
      %1032 = vmatprep.subr.mxu0 %v931
      %1033 = vmatpush1.msra.mxu0 %v930
      %1034 = vmatprep.subr.mxu0 %v934
      %1035 = vmatpush1.msra.mxu0 %v933
      %1036 = vmatprep.subr.mxu0 %v937
      %1037 = vmatpush1.msra.mxu0 %v936
      %1038 = vmatprep.subr.mxu0 %v940
      %1039 = vmatpush1.msra.mxu0 %v939
      %1040 = vmatprep.subr.mxu0 %v943
      %1041 = vmatpush1.msra.mxu0 %v942
      %1042 = vmatprep.subr.mxu0 %v946
      %1043 = vmatpush1.msra.mxu0 %v945
      %1044 = vmatprep.subr.mxu0 %v949
      %1045 = vmatpush1.msra.mxu0 %v948
      %1046 = vmatprep.subr.mxu0 %v952
      %1047 = vmatpush1.msra.mxu0 %v951
      %1048 = vmatprep.subr.mxu0 %v955
      %1049 = vmatpush1.msra.mxu0 %v954
      %1050 = vmatprep.subr.mxu0 %v958
      %1051 = vmatpush1.msra.mxu0 %v957
      %1052 = vmatprep.subr.mxu0 %v961
      %1053 = vmatpush1.msra.mxu0 %v960
      %1054 = vmatprep.subr.mxu0 %v964
      %1055 = vmatpush1.msra.mxu0 %v963
      %1056 = vmatprep.subr.mxu0 %v967
      %1057 = vmatpush1.msra.mxu0 %v966
      %1058 = vmatprep.subr.mxu0 %v970
      %1059 = vmatpush1.msra.mxu0 %v969
      %1060 = vmatprep.subr.mxu0 %v973
      %1061 = vmatpush1.msra.mxu0 %v972
      %1062 = vmatprep.subr.mxu0 %v976
      %1063 = vmatpush1.msra.mxu0 %v975
      %1064 = vmatprep.subr.mxu0 %v979
      %1065 = vmatpush1.msra.mxu0 %v978
      %1066 = vmatprep.mubr.f32.mxu0 %v991
      %1067 = vmatmul.mubr.f32.gmra.mrb[0].mxu0 %v988
      %v1068 = vpop.f32.mrb[0].mxu0
      %v1069 = vadd.f32 0.0, %v1068
      %v1070 = vpop.f32.mrb[0].mxu0
      %v1071 = vadd.f32 0.0, %v1070
      %1072 = vmatprep.mubr.f32.mxu0 %v995
      %1073 = vmatmul.mubr.f32.gmra.mrb[0].mxu0 %v993
      %v1074 = vpop.f32.mrb[0].mxu0
      %v1075 = vadd.f32 0.0, %v1074
      %v1076 = vpop.f32.mrb[0].mxu0
      %v1077 = vadd.f32 0.0, %v1076
      %1078 = vmatprep.mubr.f32.mxu0 %v994
      %1079 = vmatmul.mubr.f32.gmra.mrb[0].mxu0 %v992
      %v1080 = vpop.f32.mrb[0].mxu0
      %v1081 = vadd.f32 0.0, %v1080
      %v1082 = vpop.f32.mrb[0].mxu0
      %v1083 = vadd.f32 0.0, %v1082
      %1084 = vdwg.mxu0
      %1085 = vmatprep.subr.mxu0 0.0
      %1086 = vmatpush1.msra.mxu0 %v887
      %1087 = vmatprep.subr.mxu0 0.0
      %1088 = vmatpush1.msra.mxu0 %v890
      %1089 = vmatprep.subr.mxu0 0.0
      %1090 = vmatpush1.msra.mxu0 %v893
      %1091 = vmatprep.subr.mxu0 0.0
      %1092 = vmatpush1.msra.mxu0 %v896
      %1093 = vmatprep.subr.mxu0 0.0
      %1094 = vmatpush1.msra.mxu0 %v899
      %1095 = vmatprep.subr.mxu0 0.0
      %1096 = vmatpush1.msra.mxu0 %v902
      %1097 = vmatprep.subr.mxu0 0.0
      %1098 = vmatpush1.msra.mxu0 %v905
      %1099 = vmatprep.subr.mxu0 0.0
      %1100 = vmatpush1.msra.mxu0 %v908
      %1101 = vmatprep.subr.mxu0 0.0
      %1102 = vmatpush1.msra.mxu0 %v911
      %1103 = vmatprep.subr.mxu0 0.0
      %1104 = vmatpush1.msra.mxu0 %v914
      %1105 = vmatprep.subr.mxu0 0.0
      %1106 = vmatpush1.msra.mxu0 %v917
      %1107 = vmatprep.subr.mxu0 0.0
      %1108 = vmatpush1.msra.mxu0 %v920
      %1109 = vmatprep.subr.mxu0 0.0
      %1110 = vmatpush1.msra.mxu0 %v923
      %1111 = vmatprep.subr.mxu0 0.0
      %1112 = vmatpush1.msra.mxu0 %v926
      %1113 = vmatprep.subr.mxu0 0.0
      %1114 = vmatpush1.msra.mxu0 %v929
      %1115 = vmatprep.subr.mxu0 0.0
      %1116 = vmatpush1.msra.mxu0 %v932
      %1117 = vmatprep.subr.mxu0 0.0
      %1118 = vmatpush1.msra.mxu0 %v935
      %1119 = vmatprep.subr.mxu0 0.0
      %1120 = vmatpush1.msra.mxu0 %v938
      %1121 = vmatprep.subr.mxu0 0.0
      %1122 = vmatpush1.msra.mxu0 %v941
      %1123 = vmatprep.subr.mxu0 0.0
      %1124 = vmatpush1.msra.mxu0 %v944
      %1125 = vmatprep.subr.mxu0 0.0
      %1126 = vmatpush1.msra.mxu0 %v947
      %1127 = vmatprep.subr.mxu0 0.0
      %1128 = vmatpush1.msra.mxu0 %v950
      %1129 = vmatprep.subr.mxu0 0.0
      %1130 = vmatpush1.msra.mxu0 %v953
      %1131 = vmatprep.subr.mxu0 0.0
      %1132 = vmatpush1.msra.mxu0 %v956
      %1133 = vmatprep.subr.mxu0 0.0
      %1134 = vmatpush1.msra.mxu0 %v959
      %1135 = vmatprep.subr.mxu0 0.0
      %1136 = vmatpush1.msra.mxu0 %v962
      %1137 = vmatprep.subr.mxu0 0.0
      %1138 = vmatpush1.msra.mxu0 %v965
      %1139 = vmatprep.subr.mxu0 0.0
      %1140 = vmatpush1.msra.mxu0 %v968
      %1141 = vmatprep.subr.mxu0 0.0
      %1142 = vmatpush1.msra.mxu0 %v971
      %1143 = vmatprep.subr.mxu0 0.0
      %1144 = vmatpush1.msra.mxu0 %v974
      %1145 = vmatprep.subr.mxu0 0.0
      %1146 = vmatpush1.msra.mxu0 %v977
      %1147 = vmatprep.subr.mxu0 0.0
      %1148 = vmatpush1.msra.mxu0 %v980
      %1149 = vmatprep.mubr.f32.mxu0 %v991
      %1150 = vmatmul.mubr.f32.gmra.mrb[0].mxu0 %v988
      %v1151 = vpop.f32.mrb[0].mxu0
      %v1152 = vadd.f32 0.0, %v1151
      %v1153 = vpop.f32.mrb[0].mxu0
      %1154 = vmatprep.mubr.f32.mxu0 %v995
      %1155 = vmatmul.mubr.f32.gmra.mrb[0].mxu0 %v993
      %v1156 = vpop.f32.mrb[0].mxu0
      %v1157 = vadd.f32 0.0, %v1156
      %v1158 = vpop.f32.mrb[0].mxu0
      %1159 = vmatprep.mubr.f32.mxu0 %v994
      %1160 = vmatmul.mubr.f32.gmra.mrb[0].mxu0 %v992
      %v1161 = vpop.f32.mrb[0].mxu0
      %v1162 = vadd.f32 0.0, %v1161
      %v1163 = vpop.f32.mrb[0].mxu0
      %1164 = vdwg.mxu0
      %v1165 = vadd.f32 %v784, %v1069
      %v1166 = vadd.f32 %v786, %v1071
      %v1167 = vadd.f32 %v867, %v1152
      %v1168 = vadd.f32 %v790, %v1075
      %v1169 = vadd.f32 %v792, %v1077
      %v1170 = vadd.f32 %v872, %v1157
      %v1171 = vadd.f32 %v796, %v1081
      %v1172 = vadd.f32 %v798, %v1083
      %v1173 = vadd.f32 %v877, %v1162
      %v1174 = vld [vmem:[%s4] sm:$0x7]
      %v1176 = vlaneseq
      %v1177 = vshrl.u32 %v1176, 7
      %v1178 = vsub.s32 0, %v1177
      %v1179 = vrot.slane %v1174, %v1178
      %v1180 = vlaneseq
      %v1181 = vshrl.u32 %v1180, 7
      %v1182 = vsub.s32 1, %v1181
      %v1183 = vrot.slane %v1174, %v1182
      %v1184 = vlaneseq
      %v1185 = vshrl.u32 %v1184, 7
      %v1186 = vsub.s32 2, %v1185
      %v1187 = vrot.slane %v1174, %v1186
      %v1191 = vadd.f32 %v1165, %v1179
      %v1192 = vadd.f32 %v1166, %v1183
      %v1193 = vadd.f32 %v1167, %v1187
      %v1194 = vadd.f32 %v1168, %v1179
      %v1195 = vadd.f32 %v1169, %v1183
      %v1196 = vadd.f32 %v1170, %v1187
      %v1197 = vadd.f32 %v1171, %v1179
      %v1198 = vadd.f32 %v1172, %v1183
      %v1199 = vadd.f32 %v1173, %v1187
      %v1200 = vxor.u32 %v1191, 2147483648
      %v1201 = vxor.u32 %v1192, 2147483648
      %v1202 = vxor.u32 %v1193, 2147483648
      %v1203 = vxor.u32 %v1194, 2147483648
      %v1204 = vxor.u32 %v1195, 2147483648
      %v1205 = vxor.u32 %v1196, 2147483648
      %v1206 = vxor.u32 %v1197, 2147483648
      %v1207 = vxor.u32 %v1198, 2147483648
      %v1208 = vxor.u32 %v1199, 2147483648
      %v1209 = vmul.f32 %v1200, 1.442695
      %v1210 = vpow.pop %v1209
      %v1211 = vmul.f32 %v1201, 1.442695
      %v1212 = vpow.pop %v1211
      %v1213 = vmul.f32 %v1202, 1.442695
      %v1214 = vpow.pop %v1213
      %v1215 = vmul.f32 %v1203, 1.442695
      %v1216 = vpow.pop %v1215
      %v1217 = vmul.f32 %v1204, 1.442695
      %v1218 = vpow.pop %v1217
      %v1219 = vmul.f32 %v1205, 1.442695
      %v1220 = vpow.pop %v1219
      %v1221 = vmul.f32 %v1206, 1.442695
      %v1222 = vpow.pop %v1221
      %v1223 = vmul.f32 %v1207, 1.442695
      %v1224 = vpow.pop %v1223
      %v1225 = vmul.f32 %v1208, 1.442695
      %v1226 = vpow.pop %v1225
      %v1227 = vadd.f32 %v1210, 1.0
      %v1228 = vadd.f32 %v1212, 1.0
      %v1229 = vadd.f32 %v1214, 1.0
      %v1230 = vadd.f32 %v1216, 1.0
      %v1231 = vadd.f32 %v1218, 1.0
      %v1232 = vadd.f32 %v1220, 1.0
      %v1233 = vadd.f32 %v1222, 1.0
      %v1234 = vadd.f32 %v1224, 1.0
      %v1235 = vadd.f32 %v1226, 1.0
      %v1236 = vrcp.pop %v1227
      %v1237 = vmul.f32 1.0, %v1236
      %v1238 = vrcp.pop %v1228
      %v1239 = vmul.f32 1.0, %v1238
      %v1240 = vrcp.pop %v1229
      %v1241 = vmul.f32 1.0, %v1240
      %v1242 = vrcp.pop %v1230
      %v1243 = vmul.f32 1.0, %v1242
      %v1244 = vrcp.pop %v1231
      %v1245 = vmul.f32 1.0, %v1244
      %v1246 = vrcp.pop %v1232
      %v1247 = vmul.f32 1.0, %v1246
      %v1248 = vrcp.pop %v1233
      %v1249 = vmul.f32 1.0, %v1248
      %v1250 = vrcp.pop %v1234
      %v1251 = vmul.f32 1.0, %v1250
      %v1252 = vrcp.pop %v1235
      %v1253 = vmul.f32 1.0, %v1252
      %v1254 = vld [vmem:[%s2] sm:$0xff]
      %v1255 = vld [vmem:[%s2 + $0x8] sm:$0xff]
      %v1256 = vld [vmem:[%s2 + $0x10] sm:$0xff]
      %v1257 = vld [vmem:[%s2 + $0x18] sm:$0xff]
      %v1258 = vld [vmem:[%s2 + $0x20] sm:$0xff]
      %v1259 = vld [vmem:[%s2 + $0x28] sm:$0xff]
      %v1260 = vld [vmem:[%s2 + $0x30] sm:$0xff]
      %v1261 = vld [vmem:[%s2 + $0x38] sm:$0xff]
      %v1262 = vld [vmem:[%s2 + $0x40] sm:$0xff]
      %v1263 = vld [vmem:[%s2 + $0x48] sm:$0xff]
      %v1264 = vld [vmem:[%s2 + $0x50] sm:$0xff]
      %v1265 = vld [vmem:[%s2 + $0x58] sm:$0xff]
      %v1266 = vld [vmem:[%s2 + $0x60] sm:$0xff]
      %v1267 = vld [vmem:[%s2 + $0x68] sm:$0xff]
      %v1268 = vld [vmem:[%s2 + $0x70] sm:$0xff]
      %v1269 = vld [vmem:[%s2 + $0x78] sm:$0xff]
      %v1270 = vld [vmem:[%s2 + $0x80] sm:$0xff]
      %v1271 = vld [vmem:[%s2 + $0x88] sm:$0xff]
      %v1272 = vld [vmem:[%s2 + $0x90] sm:$0xff]
      %v1273 = vld [vmem:[%s2 + $0x98] sm:$0xff]
      %v1274 = vld [vmem:[%s2 + $0xa0] sm:$0xff]
      %v1275 = vld [vmem:[%s2 + $0xa8] sm:$0xff]
      %v1276 = vld [vmem:[%s2 + $0xb0] sm:$0xff]
      %v1277 = vld [vmem:[%s2 + $0xb8] sm:$0xff]
      %v1278 = vld [vmem:[%s2 + $0xc0] sm:$0xff]
      %v1279 = vld [vmem:[%s2 + $0xc8] sm:$0xff]
      %v1280 = vld [vmem:[%s2 + $0xd0] sm:$0xff]
      %v1281 = vld [vmem:[%s2 + $0xd8] sm:$0xff]
      %v1282 = vld [vmem:[%s2 + $0xe0] sm:$0xff]
      %v1283 = vld [vmem:[%s2 + $0xe8] sm:$0xff]
      %v1284 = vld [vmem:[%s2 + $0xf0] sm:$0xff]
      %v1285 = vld [vmem:[%s2 + $0xf8] sm:$0xff]
      %v1286 = vld [vmem:[%s2 + $0x100] sm:$0xff]
      %v1287 = vld [vmem:[%s2 + $0x108] sm:$0xff]
      %v1288 = vld [vmem:[%s2 + $0x110] sm:$0xff]
      %v1289 = vld [vmem:[%s2 + $0x118] sm:$0xff]
      %v1290 = vld [vmem:[%s2 + $0x120] sm:$0xff]
      %v1291 = vld [vmem:[%s2 + $0x128] sm:$0xff]
      %v1292 = vld [vmem:[%s2 + $0x130] sm:$0xff]
      %v1293 = vld [vmem:[%s2 + $0x138] sm:$0xff]
      %v1294 = vld [vmem:[%s2 + $0x140] sm:$0xff]
      %v1295 = vld [vmem:[%s2 + $0x148] sm:$0xff]
      %v1296 = vld [vmem:[%s2 + $0x150] sm:$0xff]
      %v1297 = vld [vmem:[%s2 + $0x158] sm:$0xff]
      %v1298 = vld [vmem:[%s2 + $0x160] sm:$0xff]
      %v1299 = vld [vmem:[%s2 + $0x168] sm:$0xff]
      %v1300 = vld [vmem:[%s2 + $0x170] sm:$0xff]
      %v1301 = vld [vmem:[%s2 + $0x178] sm:$0xff]
      %v1302 = vld [vmem:[%s2 + $0x180] sm:$0xff]
      %v1303 = vld [vmem:[%s2 + $0x188] sm:$0xff]
      %v1304 = vld [vmem:[%s2 + $0x190] sm:$0xff]
      %v1305 = vld [vmem:[%s2 + $0x198] sm:$0xff]
      %v1306 = vld [vmem:[%s2 + $0x1a0] sm:$0xff]
      %v1307 = vld [vmem:[%s2 + $0x1a8] sm:$0xff]
      %v1308 = vld [vmem:[%s2 + $0x1b0] sm:$0xff]
      %v1309 = vld [vmem:[%s2 + $0x1b8] sm:$0xff]
      %v1310 = vld [vmem:[%s2 + $0x1c0] sm:$0xff]
      %v1311 = vld [vmem:[%s2 + $0x1c8] sm:$0xff]
      %v1312 = vld [vmem:[%s2 + $0x1d0] sm:$0xff]
      %v1313 = vld [vmem:[%s2 + $0x1d8] sm:$0xff]
      %v1314 = vld [vmem:[%s2 + $0x1e0] sm:$0xff]
      %v1315 = vld [vmem:[%s2 + $0x1e8] sm:$0xff]
      %v1316 = vld [vmem:[%s2 + $0x1f0] sm:$0xff]
      %v1317 = vld [vmem:[%s2 + $0x1f8] sm:$0xff]
      %v1318 = vld [vmem:[%s2 + $0x200] sm:$0xff]
      %v1319 = vld [vmem:[%s2 + $0x208] sm:$0xff]
      %v1320 = vld [vmem:[%s2 + $0x210] sm:$0xff]
      %v1321 = vld [vmem:[%s2 + $0x218] sm:$0xff]
      %v1322 = vld [vmem:[%s2 + $0x220] sm:$0xff]
      %v1323 = vld [vmem:[%s2 + $0x228] sm:$0xff]
      %v1324 = vld [vmem:[%s2 + $0x230] sm:$0xff]
      %v1325 = vld [vmem:[%s2 + $0x238] sm:$0xff]
      %v1326 = vld [vmem:[%s2 + $0x240] sm:$0xff]
      %v1327 = vld [vmem:[%s2 + $0x248] sm:$0xff]
      %v1328 = vld [vmem:[%s2 + $0x250] sm:$0xff]
      %v1329 = vld [vmem:[%s2 + $0x258] sm:$0xff]
      %v1330 = vld [vmem:[%s2 + $0x260] sm:$0xff]
      %v1331 = vld [vmem:[%s2 + $0x268] sm:$0xff]
      %v1332 = vld [vmem:[%s2 + $0x270] sm:$0xff]
      %v1333 = vld [vmem:[%s2 + $0x278] sm:$0xff]
      %v1334 = vld [vmem:[%s2 + $0x280] sm:$0xff]
      %v1335 = vld [vmem:[%s2 + $0x288] sm:$0xff]
      %v1336 = vld [vmem:[%s2 + $0x290] sm:$0xff]
      %v1337 = vld [vmem:[%s2 + $0x298] sm:$0xff]
      %v1338 = vld [vmem:[%s2 + $0x2a0] sm:$0xff]
      %v1339 = vld [vmem:[%s2 + $0x2a8] sm:$0xff]
      %v1340 = vld [vmem:[%s2 + $0x2b0] sm:$0xff]
      %v1341 = vld [vmem:[%s2 + $0x2b8] sm:$0xff]
      %v1342 = vld [vmem:[%s2 + $0x2c0] sm:$0xff]
      %v1343 = vld [vmem:[%s2 + $0x2c8] sm:$0xff]
      %v1344 = vld [vmem:[%s2 + $0x2d0] sm:$0xff]
      %v1345 = vld [vmem:[%s2 + $0x2d8] sm:$0xff]
      %v1346 = vld [vmem:[%s2 + $0x2e0] sm:$0xff]
      %v1347 = vld [vmem:[%s2 + $0x2e8] sm:$0xff]
      %v1348 = vld [vmem:[%s2 + $0x2f0] sm:$0xff]
      %v1349 = vld [vmem:[%s2 + $0x2f8] sm:$0xff]
      %v1350 = vld [vmem:[%s2 + $0x300] sm:$0xff]
      %v1351 = vld [vmem:[%s2 + $0x308] sm:$0xff]
      %v1352 = vld [vmem:[%s2 + $0x310] sm:$0xff]
      %v1353 = vld [vmem:[%s2 + $0x318] sm:$0xff]
      %v1354 = vld [vmem:[%s2 + $0x320] sm:$0xff]
      %v1355 = vld [vmem:[%s2 + $0x328] sm:$0xff]
      %v1356 = vld [vmem:[%s5] sm:$0x7]
      %v1358 = vlaneseq
      %v1359 = vshrl.u32 %v1358, 7
      %v1360 = vsub.s32 0, %v1359
      %v1361 = vrot.slane %v1356, %v1360
      %v1362 = vlaneseq
      %v1363 = vshrl.u32 %v1362, 7
      %v1364 = vsub.s32 1, %v1363
      %v1365 = vrot.slane %v1356, %v1364
      %v1366 = vlaneseq
      %v1367 = vshrl.u32 %v1366, 7
      %v1368 = vsub.s32 2, %v1367
      %v1369 = vrot.slane %v1356, %v1368
      %vm1373 = vcmask 130048
      %v1375 = vsel %vm1373, %v1241, 0
      %v1378 = vsel %vm1373, %v1247, 0
      %v1381 = vsel %vm1373, %v1253, 0
      %1383 = vmatprep.subr.mxu0 %v1255
      %1384 = vmatpush1.msra.mxu0 %v1254
      %1385 = vmatprep.subr.mxu0 %v1258
      %1386 = vmatpush1.msra.mxu0 %v1257
      %1387 = vmatprep.subr.mxu0 %v1261
      %1388 = vmatpush1.msra.mxu0 %v1260
      %1389 = vmatprep.subr.mxu0 %v1264
      %1390 = vmatpush1.msra.mxu0 %v1263
      %1391 = vmatprep.subr.mxu0 %v1267
      %1392 = vmatpush1.msra.mxu0 %v1266
      %1393 = vmatprep.subr.mxu0 %v1270
      %1394 = vmatpush1.msra.mxu0 %v1269
      %1395 = vmatprep.subr.mxu0 %v1273
      %1396 = vmatpush1.msra.mxu0 %v1272
      %1397 = vmatprep.subr.mxu0 %v1276
      %1398 = vmatpush1.msra.mxu0 %v1275
      %1399 = vmatprep.subr.mxu0 %v1279
      %1400 = vmatpush1.msra.mxu0 %v1278
      %1401 = vmatprep.subr.mxu0 %v1282
      %1402 = vmatpush1.msra.mxu0 %v1281
      %1403 = vmatprep.subr.mxu0 %v1285
      %1404 = vmatpush1.msra.mxu0 %v1284
      %1405 = vmatprep.subr.mxu0 %v1288
      %1406 = vmatpush1.msra.mxu0 %v1287
      %1407 = vmatprep.subr.mxu0 %v1291
      %1408 = vmatpush1.msra.mxu0 %v1290
      %1409 = vmatprep.subr.mxu0 %v1294
      %1410 = vmatpush1.msra.mxu0 %v1293
      %1411 = vmatprep.subr.mxu0 %v1297
      %1412 = vmatpush1.msra.mxu0 %v1296
      %1413 = vmatprep.subr.mxu0 %v1300
      %1414 = vmatpush1.msra.mxu0 %v1299
      %1415 = vmatprep.subr.mxu0 %v1303
      %1416 = vmatpush1.msra.mxu0 %v1302
      %1417 = vmatprep.subr.mxu0 %v1306
      %1418 = vmatpush1.msra.mxu0 %v1305
      %1419 = vmatprep.subr.mxu0 %v1309
      %1420 = vmatpush1.msra.mxu0 %v1308
      %1421 = vmatprep.subr.mxu0 %v1312
      %1422 = vmatpush1.msra.mxu0 %v1311
      %1423 = vmatprep.subr.mxu0 %v1315
      %1424 = vmatpush1.msra.mxu0 %v1314
      %1425 = vmatprep.subr.mxu0 %v1318
      %1426 = vmatpush1.msra.mxu0 %v1317
      %1427 = vmatprep.subr.mxu0 %v1321
      %1428 = vmatpush1.msra.mxu0 %v1320
      %1429 = vmatprep.subr.mxu0 %v1324
      %1430 = vmatpush1.msra.mxu0 %v1323
      %1431 = vmatprep.subr.mxu0 %v1327
      %1432 = vmatpush1.msra.mxu0 %v1326
      %1433 = vmatprep.subr.mxu0 %v1330
      %1434 = vmatpush1.msra.mxu0 %v1329
      %1435 = vmatprep.subr.mxu0 %v1333
      %1436 = vmatpush1.msra.mxu0 %v1332
      %1437 = vmatprep.subr.mxu0 %v1336
      %1438 = vmatpush1.msra.mxu0 %v1335
      %1439 = vmatprep.subr.mxu0 %v1339
      %1440 = vmatpush1.msra.mxu0 %v1338
      %1441 = vmatprep.subr.mxu0 %v1342
      %1442 = vmatpush1.msra.mxu0 %v1341
      %1443 = vmatprep.subr.mxu0 %v1345
      %1444 = vmatpush1.msra.mxu0 %v1344
      %1445 = vmatprep.subr.mxu0 %v1348
      %1446 = vmatpush1.msra.mxu0 %v1347
      %1447 = vmatprep.mubr.f32.mxu0 %v1239
      %1448 = vmatmul.mubr.f32.gmra.mrb[0].mxu0 %v1237
      %v1449 = vpop.f32.mrb[0].mxu0
      %v1450 = vadd.f32 %v1361, %v1449
      %v1451 = vpop.f32.mrb[0].mxu0
      %v1452 = vadd.f32 %v1365, %v1451
      %1453 = vmatprep.mubr.f32.mxu0 %v1245
      %1454 = vmatmul.mubr.f32.gmra.mrb[0].mxu0 %v1243
      %v1455 = vpop.f32.mrb[0].mxu0
      %v1456 = vadd.f32 %v1361, %v1455
      %v1457 = vpop.f32.mrb[0].mxu0
      %v1458 = vadd.f32 %v1365, %v1457
      %1459 = vmatprep.mubr.f32.mxu0 %v1251
      %1460 = vmatmul.mubr.f32.gmra.mrb[0].mxu0 %v1249
      %v1461 = vpop.f32.mrb[0].mxu0
      %v1462 = vadd.f32 %v1361, %v1461
      %v1463 = vpop.f32.mrb[0].mxu0
      %v1464 = vadd.f32 %v1365, %v1463
      %1465 = vdwg.mxu0
      %1466 = vmatprep.subr.mxu0 %v1351
      %1467 = vmatpush1.msra.mxu0 %v1350
      %1468 = vmatprep.subr.mxu0 %v1354
      %1469 = vmatpush1.msra.mxu0 %v1353
      %1470 = vmatprep.subr.mxu0 0.0
      %1471 = vmatpush1.msra.mxu0 0.0
      %1472 = vmatprep.subr.mxu0 0.0
      %1473 = vmatpush1.msra.mxu0 0.0
      %1474 = vmatprep.subr.mxu0 0.0
      %1475 = vmatpush1.msra.mxu0 0.0
      %1476 = vmatprep.subr.mxu0 0.0
      %1477 = vmatpush1.msra.mxu0 0.0
      %1478 = vmatprep.subr.mxu0 0.0
      %1479 = vmatpush1.msra.mxu0 0.0
      %1480 = vmatprep.subr.mxu0 0.0
      %1481 = vmatpush1.msra.mxu0 0.0
      %1482 = vmatprep.subr.mxu0 0.0
      %1483 = vmatpush1.msra.mxu0 0.0
      %1484 = vmatprep.subr.mxu0 0.0
      %1485 = vmatpush1.msra.mxu0 0.0
      %1486 = vmatprep.subr.mxu0 0.0
      %1487 = vmatpush1.msra.mxu0 0.0
      %1488 = vmatprep.subr.mxu0 0.0
      %1489 = vmatpush1.msra.mxu0 0.0
      %1490 = vmatprep.subr.mxu0 0.0
      %1491 = vmatpush1.msra.mxu0 0.0
      %1492 = vmatprep.subr.mxu0 0.0
      %1493 = vmatpush1.msra.mxu0 0.0
      %1494 = vmatprep.subr.mxu0 0.0
      %1495 = vmatpush1.msra.mxu0 0.0
      %1496 = vmatprep.subr.mxu0 0.0
      %1497 = vmatpush1.msra.mxu0 0.0
      %1498 = vmatprep.subr.mxu0 0.0
      %1499 = vmatpush1.msra.mxu0 0.0
      %1500 = vmatprep.subr.mxu0 0.0
      %1501 = vmatpush1.msra.mxu0 0.0
      %1502 = vmatprep.subr.mxu0 0.0
      %1503 = vmatpush1.msra.mxu0 0.0
      %1504 = vmatprep.subr.mxu0 0.0
      %1505 = vmatpush1.msra.mxu0 0.0
      %1506 = vmatprep.subr.mxu0 0.0
      %1507 = vmatpush1.msra.mxu0 0.0
      %1508 = vmatprep.subr.mxu0 0.0
      %1509 = vmatpush1.msra.mxu0 0.0
      %1510 = vmatprep.subr.mxu0 0.0
      %1511 = vmatpush1.msra.mxu0 0.0
      %1512 = vmatprep.subr.mxu0 0.0
      %1513 = vmatpush1.msra.mxu0 0.0
      %1514 = vmatprep.subr.mxu0 0.0
      %1515 = vmatpush1.msra.mxu0 0.0
      %1516 = vmatprep.subr.mxu0 0.0
      %1517 = vmatpush1.msra.mxu0 0.0
      %1518 = vmatprep.subr.mxu0 0.0
      %1519 = vmatpush1.msra.mxu0 0.0
      %1520 = vmatprep.subr.mxu0 0.0
      %1521 = vmatpush1.msra.mxu0 0.0
      %1522 = vmatprep.subr.mxu0 0.0
      %1523 = vmatpush1.msra.mxu0 0.0
      %1524 = vmatprep.subr.mxu0 0.0
      %1525 = vmatpush1.msra.mxu0 0.0
      %1526 = vmatprep.subr.mxu0 0.0
      %1527 = vmatpush1.msra.mxu0 0.0
      %1528 = vmatprep.subr.mxu0 0.0
      %1529 = vmatpush1.msra.mxu0 0.0
      %1530 = vmatprep.mubr.f32.mxu0 0.0
      %1531 = vmatmul.mubr.f32.gmra.mrb[0].mxu0 %v1375
      %v1532 = vpop.f32.mrb[0].mxu0
      %v1533 = vadd.f32 %v1450, %v1532
      %v1534 = vpop.f32.mrb[0].mxu0
      %v1535 = vadd.f32 %v1452, %v1534
      %1536 = vmatprep.mubr.f32.mxu0 0.0
      %1537 = vmatmul.mubr.f32.gmra.mrb[0].mxu0 %v1378
      %v1538 = vpop.f32.mrb[0].mxu0
      %v1539 = vadd.f32 %v1456, %v1538
      %v1540 = vpop.f32.mrb[0].mxu0
      %v1541 = vadd.f32 %v1458, %v1540
      %1542 = vmatprep.mubr.f32.mxu0 0.0
      %1543 = vmatmul.mubr.f32.gmra.mrb[0].mxu0 %v1381
      %v1544 = vpop.f32.mrb[0].mxu0
      %v1545 = vadd.f32 %v1462, %v1544
      %v1546 = vpop.f32.mrb[0].mxu0
      %v1547 = vadd.f32 %v1464, %v1546
      %1548 = vdwg.mxu0
      %1549 = vmatprep.subr.mxu0 0.0
      %1550 = vmatpush1.msra.mxu0 %v1256
      %1551 = vmatprep.subr.mxu0 0.0
      %1552 = vmatpush1.msra.mxu0 %v1259
      %1553 = vmatprep.subr.mxu0 0.0
      %1554 = vmatpush1.msra.mxu0 %v1262
      %1555 = vmatprep.subr.mxu0 0.0
      %1556 = vmatpush1.msra.mxu0 %v1265
      %1557 = vmatprep.subr.mxu0 0.0
      %1558 = vmatpush1.msra.mxu0 %v1268
      %1559 = vmatprep.subr.mxu0 0.0
      %1560 = vmatpush1.msra.mxu0 %v1271
      %1561 = vmatprep.subr.mxu0 0.0
      %1562 = vmatpush1.msra.mxu0 %v1274
      %1563 = vmatprep.subr.mxu0 0.0
      %1564 = vmatpush1.msra.mxu0 %v1277
      %1565 = vmatprep.subr.mxu0 0.0
      %1566 = vmatpush1.msra.mxu0 %v1280
      %1567 = vmatprep.subr.mxu0 0.0
      %1568 = vmatpush1.msra.mxu0 %v1283
      %1569 = vmatprep.subr.mxu0 0.0
      %1570 = vmatpush1.msra.mxu0 %v1286
      %1571 = vmatprep.subr.mxu0 0.0
      %1572 = vmatpush1.msra.mxu0 %v1289
      %1573 = vmatprep.subr.mxu0 0.0
      %1574 = vmatpush1.msra.mxu0 %v1292
      %1575 = vmatprep.subr.mxu0 0.0
      %1576 = vmatpush1.msra.mxu0 %v1295
      %1577 = vmatprep.subr.mxu0 0.0
      %1578 = vmatpush1.msra.mxu0 %v1298
      %1579 = vmatprep.subr.mxu0 0.0
      %1580 = vmatpush1.msra.mxu0 %v1301
      %1581 = vmatprep.subr.mxu0 0.0
      %1582 = vmatpush1.msra.mxu0 %v1304
      %1583 = vmatprep.subr.mxu0 0.0
      %1584 = vmatpush1.msra.mxu0 %v1307
      %1585 = vmatprep.subr.mxu0 0.0
      %1586 = vmatpush1.msra.mxu0 %v1310
      %1587 = vmatprep.subr.mxu0 0.0
      %1588 = vmatpush1.msra.mxu0 %v1313
      %1589 = vmatprep.subr.mxu0 0.0
      %1590 = vmatpush1.msra.mxu0 %v1316
      %1591 = vmatprep.subr.mxu0 0.0
      %1592 = vmatpush1.msra.mxu0 %v1319
      %1593 = vmatprep.subr.mxu0 0.0
      %1594 = vmatpush1.msra.mxu0 %v1322
      %1595 = vmatprep.subr.mxu0 0.0
      %1596 = vmatpush1.msra.mxu0 %v1325
      %1597 = vmatprep.subr.mxu0 0.0
      %1598 = vmatpush1.msra.mxu0 %v1328
      %1599 = vmatprep.subr.mxu0 0.0
      %1600 = vmatpush1.msra.mxu0 %v1331
      %1601 = vmatprep.subr.mxu0 0.0
      %1602 = vmatpush1.msra.mxu0 %v1334
      %1603 = vmatprep.subr.mxu0 0.0
      %1604 = vmatpush1.msra.mxu0 %v1337
      %1605 = vmatprep.subr.mxu0 0.0
      %1606 = vmatpush1.msra.mxu0 %v1340
      %1607 = vmatprep.subr.mxu0 0.0
      %1608 = vmatpush1.msra.mxu0 %v1343
      %1609 = vmatprep.subr.mxu0 0.0
      %1610 = vmatpush1.msra.mxu0 %v1346
      %1611 = vmatprep.subr.mxu0 0.0
      %1612 = vmatpush1.msra.mxu0 %v1349
      %1613 = vmatprep.mubr.f32.mxu0 %v1239
      %1614 = vmatmul.mubr.f32.gmra.mrb[0].mxu0 %v1237
      %v1615 = vpop.f32.mrb[0].mxu0
      %v1616 = vadd.f32 %v1369, %v1615
      %v1617 = vpop.f32.mrb[0].mxu0
      %1618 = vmatprep.mubr.f32.mxu0 %v1245
      %1619 = vmatmul.mubr.f32.gmra.mrb[0].mxu0 %v1243
      %v1620 = vpop.f32.mrb[0].mxu0
      %v1621 = vadd.f32 %v1369, %v1620
      %v1622 = vpop.f32.mrb[0].mxu0
      %1623 = vmatprep.mubr.f32.mxu0 %v1251
      %1624 = vmatmul.mubr.f32.gmra.mrb[0].mxu0 %v1249
      %v1625 = vpop.f32.mrb[0].mxu0
      %v1626 = vadd.f32 %v1369, %v1625
      %v1627 = vpop.f32.mrb[0].mxu0
      %1628 = vdwg.mxu0
      %1629 = vmatprep.subr.mxu0 0.0
      %1630 = vmatpush1.msra.mxu0 %v1352
      %1631 = vmatprep.subr.mxu0 0.0
      %1632 = vmatpush1.msra.mxu0 %v1355
      %1633 = vmatprep.subr.mxu0 0.0
      %1634 = vmatpush1.msra.mxu0 0.0
      %1635 = vmatprep.subr.mxu0 0.0
      %1636 = vmatpush1.msra.mxu0 0.0
      %1637 = vmatprep.subr.mxu0 0.0
      %1638 = vmatpush1.msra.mxu0 0.0
      %1639 = vmatprep.subr.mxu0 0.0
      %1640 = vmatpush1.msra.mxu0 0.0
      %1641 = vmatprep.subr.mxu0 0.0
      %1642 = vmatpush1.msra.mxu0 0.0
      %1643 = vmatprep.subr.mxu0 0.0
      %1644 = vmatpush1.msra.mxu0 0.0
      %1645 = vmatprep.subr.mxu0 0.0
      %1646 = vmatpush1.msra.mxu0 0.0
      %1647 = vmatprep.subr.mxu0 0.0
      %1648 = vmatpush1.msra.mxu0 0.0
      %1649 = vmatprep.subr.mxu0 0.0
      %1650 = vmatpush1.msra.mxu0 0.0
      %1651 = vmatprep.subr.mxu0 0.0
      %1652 = vmatpush1.msra.mxu0 0.0
      %1653 = vmatprep.subr.mxu0 0.0
      %1654 = vmatpush1.msra.mxu0 0.0
      %1655 = vmatprep.subr.mxu0 0.0
      %1656 = vmatpush1.msra.mxu0 0.0
      %1657 = vmatprep.subr.mxu0 0.0
      %1658 = vmatpush1.msra.mxu0 0.0
      %1659 = vmatprep.subr.mxu0 0.0
      %1660 = vmatpush1.msra.mxu0 0.0
      %1661 = vmatprep.subr.mxu0 0.0
      %1662 = vmatpush1.msra.mxu0 0.0
      %1663 = vmatprep.subr.mxu0 0.0
      %1664 = vmatpush1.msra.mxu0 0.0
      %1665 = vmatprep.subr.mxu0 0.0
      %1666 = vmatpush1.msra.mxu0 0.0
      %1667 = vmatprep.subr.mxu0 0.0
      %1668 = vmatpush1.msra.mxu0 0.0
      %1669 = vmatprep.subr.mxu0 0.0
      %1670 = vmatpush1.msra.mxu0 0.0
      %1671 = vmatprep.subr.mxu0 0.0
      %1672 = vmatpush1.msra.mxu0 0.0
      %1673 = vmatprep.subr.mxu0 0.0
      %1674 = vmatpush1.msra.mxu0 0.0
      %1675 = vmatprep.subr.mxu0 0.0
      %1676 = vmatpush1.msra.mxu0 0.0
      %1677 = vmatprep.subr.mxu0 0.0
      %1678 = vmatpush1.msra.mxu0 0.0
      %1679 = vmatprep.subr.mxu0 0.0
      %1680 = vmatpush1.msra.mxu0 0.0
      %1681 = vmatprep.subr.mxu0 0.0
      %1682 = vmatpush1.msra.mxu0 0.0
      %1683 = vmatprep.subr.mxu0 0.0
      %1684 = vmatpush1.msra.mxu0 0.0
      %1685 = vmatprep.subr.mxu0 0.0
      %1686 = vmatpush1.msra.mxu0 0.0
      %1687 = vmatprep.subr.mxu0 0.0
      %1688 = vmatpush1.msra.mxu0 0.0
      %1689 = vmatprep.subr.mxu0 0.0
      %1690 = vmatpush1.msra.mxu0 0.0
      %1691 = vmatprep.subr.mxu0 0.0
      %1692 = vmatpush1.msra.mxu0 0.0
      %1693 = vmatprep.mubr.f32.mxu0 0.0
      %1694 = vmatmul.mubr.f32.gmra.mrb[0].mxu0 %v1375
      %v1695 = vpop.f32.mrb[0].mxu0
      %v1696 = vadd.f32 %v1616, %v1695
      %v1697 = vpop.f32.mrb[0].mxu0
      %1698 = vmatprep.mubr.f32.mxu0 0.0
      %1699 = vmatmul.mubr.f32.gmra.mrb[0].mxu0 %v1378
      %v1700 = vpop.f32.mrb[0].mxu0
      %v1701 = vadd.f32 %v1621, %v1700
      %v1702 = vpop.f32.mrb[0].mxu0
      %1703 = vmatprep.mubr.f32.mxu0 0.0
      %1704 = vmatmul.mubr.f32.gmra.mrb[0].mxu0 %v1381
      %v1705 = vpop.f32.mrb[0].mxu0
      %v1706 = vadd.f32 %v1626, %v1705
      %v1707 = vpop.f32.mrb[0].mxu0
      %1708 = vdwg.mxu0
      %v1709 = vtanh.pop %v1533
      %v1710 = vtanh.pop %v1535
      %v1711 = vtanh.pop %v1696
      %v1712 = vtanh.pop %v1539
      %v1713 = vtanh.pop %v1541
      %v1714 = vtanh.pop %v1701
      %v1715 = vtanh.pop %v1545
      %v1716 = vtanh.pop %v1547
      %v1717 = vtanh.pop %v1706
      %s1718 = scalar_lea.vmem %s2, 816
      %v1719 = vld [vmem:[%s1718] sm:$0xff]
      %v1720 = vld [vmem:[%s1718 + $0x8] sm:$0xff]
      %v1721 = vld [vmem:[%s1718 + $0x10] sm:$0xff]
      %v1722 = vld [vmem:[%s1718 + $0x18] sm:$0xff]
      %v1723 = vld [vmem:[%s1718 + $0x20] sm:$0xff]
      %v1724 = vld [vmem:[%s1718 + $0x28] sm:$0xff]
      %v1725 = vld [vmem:[%s1718 + $0x30] sm:$0xff]
      %v1726 = vld [vmem:[%s1718 + $0x38] sm:$0xff]
      %v1727 = vld [vmem:[%s1718 + $0x40] sm:$0xff]
      %v1728 = vld [vmem:[%s1718 + $0x48] sm:$0xff]
      %v1729 = vld [vmem:[%s1718 + $0x50] sm:$0xff]
      %v1730 = vld [vmem:[%s1718 + $0x58] sm:$0xff]
      %v1731 = vld [vmem:[%s1718 + $0x60] sm:$0xff]
      %v1732 = vld [vmem:[%s1718 + $0x68] sm:$0xff]
      %v1733 = vld [vmem:[%s1718 + $0x70] sm:$0xff]
      %v1734 = vld [vmem:[%s1718 + $0x78] sm:$0xff]
      %v1735 = vld [vmem:[%s1718 + $0x80] sm:$0xff]
      %v1736 = vld [vmem:[%s1718 + $0x88] sm:$0xff]
      %v1737 = vld [vmem:[%s1718 + $0x90] sm:$0xff]
      %v1738 = vld [vmem:[%s1718 + $0x98] sm:$0xff]
      %v1739 = vld [vmem:[%s1718 + $0xa0] sm:$0xff]
      %v1740 = vld [vmem:[%s1718 + $0xa8] sm:$0xff]
      %v1741 = vld [vmem:[%s1718 + $0xb0] sm:$0xff]
      %v1742 = vld [vmem:[%s1718 + $0xb8] sm:$0xff]
      %v1743 = vld [vmem:[%s1718 + $0xc0] sm:$0xff]
      %v1744 = vld [vmem:[%s1718 + $0xc8] sm:$0xff]
      %v1745 = vld [vmem:[%s1718 + $0xd0] sm:$0xff]
      %v1746 = vld [vmem:[%s1718 + $0xd8] sm:$0xff]
      %v1747 = vld [vmem:[%s1718 + $0xe0] sm:$0xff]
      %v1748 = vld [vmem:[%s1718 + $0xe8] sm:$0xff]
      %v1749 = vld [vmem:[%s1718 + $0xf0] sm:$0xff]
      %v1750 = vld [vmem:[%s1718 + $0xf8] sm:$0xff]
      %v1751 = vld [vmem:[%s1718 + $0x100] sm:$0xff]
      %v1752 = vld [vmem:[%s1718 + $0x108] sm:$0xff]
      %v1753 = vld [vmem:[%s1718 + $0x110] sm:$0xff]
      %v1754 = vld [vmem:[%s1718 + $0x118] sm:$0xff]
      %v1755 = vld [vmem:[%s1718 + $0x120] sm:$0xff]
      %v1756 = vld [vmem:[%s1718 + $0x128] sm:$0xff]
      %v1757 = vld [vmem:[%s1718 + $0x130] sm:$0xff]
      %v1758 = vld [vmem:[%s1718 + $0x138] sm:$0xff]
      %v1759 = vld [vmem:[%s1718 + $0x140] sm:$0xff]
      %v1760 = vld [vmem:[%s1718 + $0x148] sm:$0xff]
      %v1761 = vld [vmem:[%s1718 + $0x150] sm:$0xff]
      %v1762 = vld [vmem:[%s1718 + $0x158] sm:$0xff]
      %v1763 = vld [vmem:[%s1718 + $0x160] sm:$0xff]
      %v1764 = vld [vmem:[%s1718 + $0x168] sm:$0xff]
      %v1765 = vld [vmem:[%s1718 + $0x170] sm:$0xff]
      %v1766 = vld [vmem:[%s1718 + $0x178] sm:$0xff]
      %v1767 = vld [vmem:[%s1718 + $0x180] sm:$0xff]
      %v1768 = vld [vmem:[%s1718 + $0x188] sm:$0xff]
      %v1769 = vld [vmem:[%s1718 + $0x190] sm:$0xff]
      %v1770 = vld [vmem:[%s1718 + $0x198] sm:$0xff]
      %v1771 = vld [vmem:[%s1718 + $0x1a0] sm:$0xff]
      %v1772 = vld [vmem:[%s1718 + $0x1a8] sm:$0xff]
      %v1773 = vld [vmem:[%s1718 + $0x1b0] sm:$0xff]
      %v1774 = vld [vmem:[%s1718 + $0x1b8] sm:$0xff]
      %v1775 = vld [vmem:[%s1718 + $0x1c0] sm:$0xff]
      %v1776 = vld [vmem:[%s1718 + $0x1c8] sm:$0xff]
      %v1777 = vld [vmem:[%s1718 + $0x1d0] sm:$0xff]
      %v1778 = vld [vmem:[%s1718 + $0x1d8] sm:$0xff]
      %v1779 = vld [vmem:[%s1718 + $0x1e0] sm:$0xff]
      %v1780 = vld [vmem:[%s1718 + $0x1e8] sm:$0xff]
      %v1781 = vld [vmem:[%s1718 + $0x1f0] sm:$0xff]
      %v1782 = vld [vmem:[%s1718 + $0x1f8] sm:$0xff]
      %v1783 = vld [vmem:[%s1718 + $0x200] sm:$0xff]
      %v1784 = vld [vmem:[%s1718 + $0x208] sm:$0xff]
      %v1785 = vld [vmem:[%s1718 + $0x210] sm:$0xff]
      %v1786 = vld [vmem:[%s1718 + $0x218] sm:$0xff]
      %v1787 = vld [vmem:[%s1718 + $0x220] sm:$0xff]
      %v1788 = vld [vmem:[%s1718 + $0x228] sm:$0xff]
      %v1789 = vld [vmem:[%s1718 + $0x230] sm:$0xff]
      %v1790 = vld [vmem:[%s1718 + $0x238] sm:$0xff]
      %v1791 = vld [vmem:[%s1718 + $0x240] sm:$0xff]
      %v1792 = vld [vmem:[%s1718 + $0x248] sm:$0xff]
      %v1793 = vld [vmem:[%s1718 + $0x250] sm:$0xff]
      %v1794 = vld [vmem:[%s1718 + $0x258] sm:$0xff]
      %v1795 = vld [vmem:[%s1718 + $0x260] sm:$0xff]
      %v1796 = vld [vmem:[%s1718 + $0x268] sm:$0xff]
      %v1797 = vld [vmem:[%s1718 + $0x270] sm:$0xff]
      %v1798 = vld [vmem:[%s1718 + $0x278] sm:$0xff]
      %v1799 = vld [vmem:[%s1718 + $0x280] sm:$0xff]
      %v1800 = vld [vmem:[%s1718 + $0x288] sm:$0xff]
      %v1801 = vld [vmem:[%s1718 + $0x290] sm:$0xff]
      %v1802 = vld [vmem:[%s1718 + $0x298] sm:$0xff]
      %v1803 = vld [vmem:[%s1718 + $0x2a0] sm:$0xff]
      %v1804 = vld [vmem:[%s1718 + $0x2a8] sm:$0xff]
      %v1805 = vld [vmem:[%s1718 + $0x2b0] sm:$0xff]
      %v1806 = vld [vmem:[%s1718 + $0x2b8] sm:$0xff]
      %v1807 = vld [vmem:[%s1718 + $0x2c0] sm:$0xff]
      %v1808 = vld [vmem:[%s1718 + $0x2c8] sm:$0xff]
      %v1809 = vld [vmem:[%s1718 + $0x2d0] sm:$0xff]
      %v1810 = vld [vmem:[%s1718 + $0x2d8] sm:$0xff]
      %v1811 = vld [vmem:[%s1718 + $0x2e0] sm:$0xff]
      %v1812 = vld [vmem:[%s1718 + $0x2e8] sm:$0xff]
      %v1813 = vld [vmem:[%s1718 + $0x2f0] sm:$0xff]
      %v1814 = vld [vmem:[%s1718 + $0x2f8] sm:$0xff]
      %v1815 = vld [vmem:[%s1718 + $0x300] sm:$0xff]
      %v1816 = vld [vmem:[%s1718 + $0x308] sm:$0xff]
      %v1817 = vld [vmem:[%s1718 + $0x310] sm:$0xff]
      %v1818 = vld [vmem:[%s1718 + $0x318] sm:$0xff]
      %v1819 = vld [vmem:[%s1718 + $0x320] sm:$0xff]
      %v1820 = vld [vmem:[%s1718 + $0x328] sm:$0xff]
      %1821 = vmatprep.subr.mxu0 %v1720
      %1822 = vmatpush1.msra.mxu0 %v1719
      %1823 = vmatprep.subr.mxu0 %v1723
      %1824 = vmatpush1.msra.mxu0 %v1722
      %1825 = vmatprep.subr.mxu0 %v1726
      %1826 = vmatpush1.msra.mxu0 %v1725
      %1827 = vmatprep.subr.mxu0 %v1729
      %1828 = vmatpush1.msra.mxu0 %v1728
      %1829 = vmatprep.subr.mxu0 %v1732
      %1830 = vmatpush1.msra.mxu0 %v1731
      %1831 = vmatprep.subr.mxu0 %v1735
      %1832 = vmatpush1.msra.mxu0 %v1734
      %1833 = vmatprep.subr.mxu0 %v1738
      %1834 = vmatpush1.msra.mxu0 %v1737
      %1835 = vmatprep.subr.mxu0 %v1741
      %1836 = vmatpush1.msra.mxu0 %v1740
      %1837 = vmatprep.subr.mxu0 %v1744
      %1838 = vmatpush1.msra.mxu0 %v1743
      %1839 = vmatprep.subr.mxu0 %v1747
      %1840 = vmatpush1.msra.mxu0 %v1746
      %1841 = vmatprep.subr.mxu0 %v1750
      %1842 = vmatpush1.msra.mxu0 %v1749
      %1843 = vmatprep.subr.mxu0 %v1753
      %1844 = vmatpush1.msra.mxu0 %v1752
      %1845 = vmatprep.subr.mxu0 %v1756
      %1846 = vmatpush1.msra.mxu0 %v1755
      %1847 = vmatprep.subr.mxu0 %v1759
      %1848 = vmatpush1.msra.mxu0 %v1758
      %1849 = vmatprep.subr.mxu0 %v1762
      %1850 = vmatpush1.msra.mxu0 %v1761
      %1851 = vmatprep.subr.mxu0 %v1765
      %1852 = vmatpush1.msra.mxu0 %v1764
      %1853 = vmatprep.subr.mxu0 %v1768
      %1854 = vmatpush1.msra.mxu0 %v1767
      %1855 = vmatprep.subr.mxu0 %v1771
      %1856 = vmatpush1.msra.mxu0 %v1770
      %1857 = vmatprep.subr.mxu0 %v1774
      %1858 = vmatpush1.msra.mxu0 %v1773
      %1859 = vmatprep.subr.mxu0 %v1777
      %1860 = vmatpush1.msra.mxu0 %v1776
      %1861 = vmatprep.subr.mxu0 %v1780
      %1862 = vmatpush1.msra.mxu0 %v1779
      %1863 = vmatprep.subr.mxu0 %v1783
      %1864 = vmatpush1.msra.mxu0 %v1782
      %1865 = vmatprep.subr.mxu0 %v1786
      %1866 = vmatpush1.msra.mxu0 %v1785
      %1867 = vmatprep.subr.mxu0 %v1789
      %1868 = vmatpush1.msra.mxu0 %v1788
      %1869 = vmatprep.subr.mxu0 %v1792
      %1870 = vmatpush1.msra.mxu0 %v1791
      %1871 = vmatprep.subr.mxu0 %v1795
      %1872 = vmatpush1.msra.mxu0 %v1794
      %1873 = vmatprep.subr.mxu0 %v1798
      %1874 = vmatpush1.msra.mxu0 %v1797
      %1875 = vmatprep.subr.mxu0 %v1801
      %1876 = vmatpush1.msra.mxu0 %v1800
      %1877 = vmatprep.subr.mxu0 %v1804
      %1878 = vmatpush1.msra.mxu0 %v1803
      %1879 = vmatprep.subr.mxu0 %v1807
      %1880 = vmatpush1.msra.mxu0 %v1806
      %1881 = vmatprep.subr.mxu0 %v1810
      %1882 = vmatpush1.msra.mxu0 %v1809
      %1883 = vmatprep.subr.mxu0 %v1813
      %1884 = vmatpush1.msra.mxu0 %v1812
      %1885 = vmatprep.mubr.f32.mxu0 %v1239
      %1886 = vmatmul.mubr.f32.gmra.mrb[0].mxu0 %v1237
      %v1887 = vpop.f32.mrb[0].mxu0
      %v1888 = vadd.f32 %v1361, %v1887
      %v1889 = vpop.f32.mrb[0].mxu0
      %v1890 = vadd.f32 %v1365, %v1889
      %1891 = vmatprep.mubr.f32.mxu0 %v1245
      %1892 = vmatmul.mubr.f32.gmra.mrb[0].mxu0 %v1243
      %v1893 = vpop.f32.mrb[0].mxu0
      %v1894 = vadd.f32 %v1361, %v1893
      %v1895 = vpop.f32.mrb[0].mxu0
      %v1896 = vadd.f32 %v1365, %v1895
      %1897 = vmatprep.mubr.f32.mxu0 %v1251
      %1898 = vmatmul.mubr.f32.gmra.mrb[0].mxu0 %v1249
      %v1899 = vpop.f32.mrb[0].mxu0
      %v1900 = vadd.f32 %v1361, %v1899
      %v1901 = vpop.f32.mrb[0].mxu0
      %v1902 = vadd.f32 %v1365, %v1901
      %1903 = vdwg.mxu0
      %1904 = vmatprep.subr.mxu0 %v1816
      %1905 = vmatpush1.msra.mxu0 %v1815
      %1906 = vmatprep.subr.mxu0 %v1819
      %1907 = vmatpush1.msra.mxu0 %v1818
      %1908 = vmatprep.subr.mxu0 0.0
      %1909 = vmatpush1.msra.mxu0 0.0
      %1910 = vmatprep.subr.mxu0 0.0
      %1911 = vmatpush1.msra.mxu0 0.0
      %1912 = vmatprep.subr.mxu0 0.0
      %1913 = vmatpush1.msra.mxu0 0.0
      %1914 = vmatprep.subr.mxu0 0.0
      %1915 = vmatpush1.msra.mxu0 0.0
      %1916 = vmatprep.subr.mxu0 0.0
      %1917 = vmatpush1.msra.mxu0 0.0
      %1918 = vmatprep.subr.mxu0 0.0
      %1919 = vmatpush1.msra.mxu0 0.0
      %1920 = vmatprep.subr.mxu0 0.0
      %1921 = vmatpush1.msra.mxu0 0.0
      %1922 = vmatprep.subr.mxu0 0.0
      %1923 = vmatpush1.msra.mxu0 0.0
      %1924 = vmatprep.subr.mxu0 0.0
      %1925 = vmatpush1.msra.mxu0 0.0
      %1926 = vmatprep.subr.mxu0 0.0
      %1927 = vmatpush1.msra.mxu0 0.0
      %1928 = vmatprep.subr.mxu0 0.0
      %1929 = vmatpush1.msra.mxu0 0.0
      %1930 = vmatprep.subr.mxu0 0.0
      %1931 = vmatpush1.msra.mxu0 0.0
      %1932 = vmatprep.subr.mxu0 0.0
      %1933 = vmatpush1.msra.mxu0 0.0
      %1934 = vmatprep.subr.mxu0 0.0
      %1935 = vmatpush1.msra.mxu0 0.0
      %1936 = vmatprep.subr.mxu0 0.0
      %1937 = vmatpush1.msra.mxu0 0.0
      %1938 = vmatprep.subr.mxu0 0.0
      %1939 = vmatpush1.msra.mxu0 0.0
      %1940 = vmatprep.subr.mxu0 0.0
      %1941 = vmatpush1.msra.mxu0 0.0
      %1942 = vmatprep.subr.mxu0 0.0
      %1943 = vmatpush1.msra.mxu0 0.0
      %1944 = vmatprep.subr.mxu0 0.0
      %1945 = vmatpush1.msra.mxu0 0.0
      %1946 = vmatprep.subr.mxu0 0.0
      %1947 = vmatpush1.msra.mxu0 0.0
      %1948 = vmatprep.subr.mxu0 0.0
      %1949 = vmatpush1.msra.mxu0 0.0
      %1950 = vmatprep.subr.mxu0 0.0
      %1951 = vmatpush1.msra.mxu0 0.0
      %1952 = vmatprep.subr.mxu0 0.0
      %1953 = vmatpush1.msra.mxu0 0.0
      %1954 = vmatprep.subr.mxu0 0.0
      %1955 = vmatpush1.msra.mxu0 0.0
      %1956 = vmatprep.subr.mxu0 0.0
      %1957 = vmatpush1.msra.mxu0 0.0
      %1958 = vmatprep.subr.mxu0 0.0
      %1959 = vmatpush1.msra.mxu0 0.0
      %1960 = vmatprep.subr.mxu0 0.0
      %1961 = vmatpush1.msra.mxu0 0.0
      %1962 = vmatprep.subr.mxu0 0.0
      %1963 = vmatpush1.msra.mxu0 0.0
      %1964 = vmatprep.subr.mxu0 0.0
      %1965 = vmatpush1.msra.mxu0 0.0
      %1966 = vmatprep.subr.mxu0 0.0
      %1967 = vmatpush1.msra.mxu0 0.0
      %1968 = vmatprep.mubr.f32.mxu0 0.0
      %1969 = vmatmul.mubr.f32.gmra.mrb[0].mxu0 %v1375
      %v1970 = vpop.f32.mrb[0].mxu0
      %v1971 = vadd.f32 %v1888, %v1970
      %v1972 = vpop.f32.mrb[0].mxu0
      %v1973 = vadd.f32 %v1890, %v1972
      %1974 = vmatprep.mubr.f32.mxu0 0.0
      %1975 = vmatmul.mubr.f32.gmra.mrb[0].mxu0 %v1378
      %v1976 = vpop.f32.mrb[0].mxu0
      %v1977 = vadd.f32 %v1894, %v1976
      %v1978 = vpop.f32.mrb[0].mxu0
      %v1979 = vadd.f32 %v1896, %v1978
      %1980 = vmatprep.mubr.f32.mxu0 0.0
      %1981 = vmatmul.mubr.f32.gmra.mrb[0].mxu0 %v1381
      %v1982 = vpop.f32.mrb[0].mxu0
      %v1983 = vadd.f32 %v1900, %v1982
      %v1984 = vpop.f32.mrb[0].mxu0
      %v1985 = vadd.f32 %v1902, %v1984
      %1986 = vdwg.mxu0
      %1987 = vmatprep.subr.mxu0 0.0
      %1988 = vmatpush1.msra.mxu0 %v1721
      %1989 = vmatprep.subr.mxu0 0.0
      %1990 = vmatpush1.msra.mxu0 %v1724
      %1991 = vmatprep.subr.mxu0 0.0
      %1992 = vmatpush1.msra.mxu0 %v1727
      %1993 = vmatprep.subr.mxu0 0.0
      %1994 = vmatpush1.msra.mxu0 %v1730
      %1995 = vmatprep.subr.mxu0 0.0
      %1996 = vmatpush1.msra.mxu0 %v1733
      %1997 = vmatprep.subr.mxu0 0.0
      %1998 = vmatpush1.msra.mxu0 %v1736
      %1999 = vmatprep.subr.mxu0 0.0
      %2000 = vmatpush1.msra.mxu0 %v1739
      %2001 = vmatprep.subr.mxu0 0.0
      %2002 = vmatpush1.msra.mxu0 %v1742
      %2003 = vmatprep.subr.mxu0 0.0
      %2004 = vmatpush1.msra.mxu0 %v1745
      %2005 = vmatprep.subr.mxu0 0.0
      %2006 = vmatpush1.msra.mxu0 %v1748
      %2007 = vmatprep.subr.mxu0 0.0
      %2008 = vmatpush1.msra.mxu0 %v1751
      %2009 = vmatprep.subr.mxu0 0.0
      %2010 = vmatpush1.msra.mxu0 %v1754
      %2011 = vmatprep.subr.mxu0 0.0
      %2012 = vmatpush1.msra.mxu0 %v1757
      %2013 = vmatprep.subr.mxu0 0.0
      %2014 = vmatpush1.msra.mxu0 %v1760
      %2015 = vmatprep.subr.mxu0 0.0
      %2016 = vmatpush1.msra.mxu0 %v1763
      %2017 = vmatprep.subr.mxu0 0.0
      %2018 = vmatpush1.msra.mxu0 %v1766
      %2019 = vmatprep.subr.mxu0 0.0
      %2020 = vmatpush1.msra.mxu0 %v1769
      %2021 = vmatprep.subr.mxu0 0.0
      %2022 = vmatpush1.msra.mxu0 %v1772
      %2023 = vmatprep.subr.mxu0 0.0
      %2024 = vmatpush1.msra.mxu0 %v1775
      %2025 = vmatprep.subr.mxu0 0.0
      %2026 = vmatpush1.msra.mxu0 %v1778
      %2027 = vmatprep.subr.mxu0 0.0
      %2028 = vmatpush1.msra.mxu0 %v1781
      %2029 = vmatprep.subr.mxu0 0.0
      %2030 = vmatpush1.msra.mxu0 %v1784
      %2031 = vmatprep.subr.mxu0 0.0
      %2032 = vmatpush1.msra.mxu0 %v1787
      %2033 = vmatprep.subr.mxu0 0.0
      %2034 = vmatpush1.msra.mxu0 %v1790
      %2035 = vmatprep.subr.mxu0 0.0
      %2036 = vmatpush1.msra.mxu0 %v1793
      %2037 = vmatprep.subr.mxu0 0.0
      %2038 = vmatpush1.msra.mxu0 %v1796
      %2039 = vmatprep.subr.mxu0 0.0
      %2040 = vmatpush1.msra.mxu0 %v1799
      %2041 = vmatprep.subr.mxu0 0.0
      %2042 = vmatpush1.msra.mxu0 %v1802
      %2043 = vmatprep.subr.mxu0 0.0
      %2044 = vmatpush1.msra.mxu0 %v1805
      %2045 = vmatprep.subr.mxu0 0.0
      %2046 = vmatpush1.msra.mxu0 %v1808
      %2047 = vmatprep.subr.mxu0 0.0
      %2048 = vmatpush1.msra.mxu0 %v1811
      %2049 = vmatprep.subr.mxu0 0.0
      %2050 = vmatpush1.msra.mxu0 %v1814
      %2051 = vmatprep.mubr.f32.mxu0 %v1239
      %2052 = vmatmul.mubr.f32.gmra.mrb[0].mxu0 %v1237
      %v2053 = vpop.f32.mrb[0].mxu0
      %v2054 = vadd.f32 %v1369, %v2053
      %v2055 = vpop.f32.mrb[0].mxu0
      %2056 = vmatprep.mubr.f32.mxu0 %v1245
      %2057 = vmatmul.mubr.f32.gmra.mrb[0].mxu0 %v1243
      %v2058 = vpop.f32.mrb[0].mxu0
      %v2059 = vadd.f32 %v1369, %v2058
      %v2060 = vpop.f32.mrb[0].mxu0
      %2061 = vmatprep.mubr.f32.mxu0 %v1251
      %2062 = vmatmul.mubr.f32.gmra.mrb[0].mxu0 %v1249
      %v2063 = vpop.f32.mrb[0].mxu0
      %v2064 = vadd.f32 %v1369, %v2063
      %v2065 = vpop.f32.mrb[0].mxu0
      %2066 = vdwg.mxu0
      %2067 = vmatprep.subr.mxu0 0.0
      %2068 = vmatpush1.msra.mxu0 %v1817
      %2069 = vmatprep.subr.mxu0 0.0
      %2070 = vmatpush1.msra.mxu0 %v1820
      %2071 = vmatprep.subr.mxu0 0.0
      %2072 = vmatpush1.msra.mxu0 0.0
      %2073 = vmatprep.subr.mxu0 0.0
      %2074 = vmatpush1.msra.mxu0 0.0
      %2075 = vmatprep.subr.mxu0 0.0
      %2076 = vmatpush1.msra.mxu0 0.0
      %2077 = vmatprep.subr.mxu0 0.0
      %2078 = vmatpush1.msra.mxu0 0.0
      %2079 = vmatprep.subr.mxu0 0.0
      %2080 = vmatpush1.msra.mxu0 0.0
      %2081 = vmatprep.subr.mxu0 0.0
      %2082 = vmatpush1.msra.mxu0 0.0
      %2083 = vmatprep.subr.mxu0 0.0
      %2084 = vmatpush1.msra.mxu0 0.0
      %2085 = vmatprep.subr.mxu0 0.0
      %2086 = vmatpush1.msra.mxu0 0.0
      %2087 = vmatprep.subr.mxu0 0.0
      %2088 = vmatpush1.msra.mxu0 0.0
      %2089 = vmatprep.subr.mxu0 0.0
      %2090 = vmatpush1.msra.mxu0 0.0
      %2091 = vmatprep.subr.mxu0 0.0
      %2092 = vmatpush1.msra.mxu0 0.0
      %2093 = vmatprep.subr.mxu0 0.0
      %2094 = vmatpush1.msra.mxu0 0.0
      %2095 = vmatprep.subr.mxu0 0.0
      %2096 = vmatpush1.msra.mxu0 0.0
      %2097 = vmatprep.subr.mxu0 0.0
      %2098 = vmatpush1.msra.mxu0 0.0
      %2099 = vmatprep.subr.mxu0 0.0
      %2100 = vmatpush1.msra.mxu0 0.0
      %2101 = vmatprep.subr.mxu0 0.0
      %2102 = vmatpush1.msra.mxu0 0.0
      %2103 = vmatprep.subr.mxu0 0.0
      %2104 = vmatpush1.msra.mxu0 0.0
      %2105 = vmatprep.subr.mxu0 0.0
      %2106 = vmatpush1.msra.mxu0 0.0
      %2107 = vmatprep.subr.mxu0 0.0
      %2108 = vmatpush1.msra.mxu0 0.0
      %2109 = vmatprep.subr.mxu0 0.0
      %2110 = vmatpush1.msra.mxu0 0.0
      %2111 = vmatprep.subr.mxu0 0.0
      %2112 = vmatpush1.msra.mxu0 0.0
      %2113 = vmatprep.subr.mxu0 0.0
      %2114 = vmatpush1.msra.mxu0 0.0
      %2115 = vmatprep.subr.mxu0 0.0
      %2116 = vmatpush1.msra.mxu0 0.0
      %2117 = vmatprep.subr.mxu0 0.0
      %2118 = vmatpush1.msra.mxu0 0.0
      %2119 = vmatprep.subr.mxu0 0.0
      %2120 = vmatpush1.msra.mxu0 0.0
      %2121 = vmatprep.subr.mxu0 0.0
      %2122 = vmatpush1.msra.mxu0 0.0
      %2123 = vmatprep.subr.mxu0 0.0
      %2124 = vmatpush1.msra.mxu0 0.0
      %2125 = vmatprep.subr.mxu0 0.0
      %2126 = vmatpush1.msra.mxu0 0.0
      %2127 = vmatprep.subr.mxu0 0.0
      %2128 = vmatpush1.msra.mxu0 0.0
      %2129 = vmatprep.subr.mxu0 0.0
      %2130 = vmatpush1.msra.mxu0 0.0
      %2131 = vmatprep.mubr.f32.mxu0 0.0
      %2132 = vmatmul.mubr.f32.gmra.mrb[0].mxu0 %v1375
      %v2133 = vpop.f32.mrb[0].mxu0
      %v2134 = vadd.f32 %v2054, %v2133
      %v2135 = vpop.f32.mrb[0].mxu0
      %2136 = vmatprep.mubr.f32.mxu0 0.0
      %2137 = vmatmul.mubr.f32.gmra.mrb[0].mxu0 %v1378
      %v2138 = vpop.f32.mrb[0].mxu0
      %v2139 = vadd.f32 %v2059, %v2138
      %v2140 = vpop.f32.mrb[0].mxu0
      %2141 = vmatprep.mubr.f32.mxu0 0.0
      %2142 = vmatmul.mubr.f32.gmra.mrb[0].mxu0 %v1381
      %v2143 = vpop.f32.mrb[0].mxu0
      %v2144 = vadd.f32 %v2064, %v2143
      %v2145 = vpop.f32.mrb[0].mxu0
      %2146 = vdwg.mxu0
      %v2147 = vtanh.pop %v1971
      %v2148 = vtanh.pop %v1973
      %v2149 = vtanh.pop %v2134
      %v2150 = vtanh.pop %v1977
      %v2151 = vtanh.pop %v1979
      %v2152 = vtanh.pop %v2139
      %v2153 = vtanh.pop %v1983
      %v2154 = vtanh.pop %v1985
      %v2155 = vtanh.pop %v2144
      %2156 = vst [vmem:[#allocation3] sm:$0xff] %v1709
      %2157 = vst [vmem:[#allocation3 + $0x8] sm:$0xff] %v1710
      %2158 = vst.msk [vmem:[#allocation3 + $0x10] sm:$0xff] %vm1373, %v1711
      %2159 = vst [vmem:[#allocation3 + $0x18] sm:$0xff] %v1712
      %2160 = vst [vmem:[#allocation3 + $0x20] sm:$0xff] %v1713
      %2161 = vst.msk [vmem:[#allocation3 + $0x28] sm:$0xff] %vm1373, %v1714
      %2162 = vst [vmem:[#allocation3 + $0x30] sm:$0x1] %v1715
      %2163 = vst [vmem:[#allocation3 + $0x38] sm:$0x1] %v1716
      %vm2164 = vcmask 122880
      %2165 = vst.msk [vmem:[#allocation3 + $0x40] sm:$0x1] %vm2164, %v1717
      %vm2166 = vcmp.lt.s32.totalorder %v286, 272
      %vm2167 = vmand %vm287, %vm2166
      %s2168 = scalar_lea.vmem [#allocation3], 49
      %2169 = vst.msk [vmem:[%s2168] ss:$8 sm:$0x7] %vm2167, 0.0
      %2170 = vst.msk [vmem:[%s2168] ss:$8 sm:$0x0] %vm2167, 0.0
      %s2171 = scalar_lea.vmem [#allocation3], 72
      %2172 = vst.msk [vmem:[%s2171] ss:$8 sm:$0x7] %vm2167, 0.0
      %2173 = vst.msk [vmem:[%s2171] ss:$8 sm:$0x0] %vm2167, 0.0
      %vm2183 = vcmask 1040384
      %v2184 = vrot.slane %v2147, 7
      %v2185 = vrot.slane %v2148, 7
      %v2186 = vrot.slane %v2149, 7
      %v2187 = vrot.slane %v2150, 7
      %v2188 = vsel %vm2183, %v2184, %v2187
      %v2189 = vrot.slane %v2151, 7
      %v2190 = vsel %vm2183, %v2185, %v2189
      %v2191 = vrot.slane %v2152, 7
      %v2192 = vsel %vm2183, %v2186, %v2191
      %v2193 = vrot.slane %v2153, 7
      %v2194 = vsel %vm2183, %v2187, %v2193
      %v2195 = vrot.slane %v2154, 7
      %v2196 = vsel %vm2183, %v2189, %v2195
      %v2197 = vrot.slane %v2155, 7
      %v2198 = vsel %vm2183, %v2191, %v2197
      %2208 = vst [vmem:[%s2171] sm:$0xfe] %v2184
      %2209 = vst [vmem:[%s2171 + $0x8] sm:$0xfe] %v2185
      %vm2210 = vcmask 130049
      %2211 = vst.msk [vmem:[%s2171 + $0x10] sm:$0xfe] %vm2210, %v2186
      %2212 = vst [vmem:[%s2171 + $0x18] sm:$0xff] %v2188
      %2213 = vst [vmem:[%s2171 + $0x20] sm:$0xff] %v2190
      %2214 = vst.msk [vmem:[%s2171 + $0x28] sm:$0xff] %vm1373, %v2192
      %2215 = vst [vmem:[%s2171 + $0x30] sm:$0x3] %v2194
      %2216 = vst [vmem:[%s2171 + $0x38] sm:$0x3] %v2196
      %vm2217 = vcmask 123904
      %2218 = vst.msk [vmem:[%s2171 + $0x40] sm:$0x3] %vm2217, %v2198
      %v2219 = vld [vmem:[#allocation3] sm:$0xff]
      %v2220 = vld [vmem:[#allocation3 + $0x8] sm:$0xff]
      %v2221 = vld [vmem:[#allocation3 + $0x10] sm:$0xff]
      %v2222 = vld [vmem:[#allocation3 + $0x18] sm:$0xff]
      %v2223 = vld [vmem:[#allocation3 + $0x20] sm:$0xff]
      %v2224 = vld [vmem:[#allocation3 + $0x28] sm:$0xff]
      %v2225 = vld [vmem:[#allocation3 + $0x30] sm:$0x3]
      %v2226 = vld [vmem:[#allocation3 + $0x38] sm:$0x3]
      %v2227 = vld [vmem:[#allocation3 + $0x40] sm:$0x3]
      %v2228 = vld [vmem:[%s3] sm:$0xff]
      %v2229 = vld [vmem:[%s3 + $0x8] sm:$0xff]
      %v2230 = vld [vmem:[%s3 + $0x10] sm:$0xff]
      %v2231 = vld [vmem:[%s3 + $0x18] sm:$0xff]
      %v2232 = vld [vmem:[%s3 + $0x20] sm:$0xff]
      %v2233 = vld [vmem:[%s3 + $0x28] sm:$0xff]
      %v2234 = vld [vmem:[%s3 + $0x30] sm:$0xff]
      %v2235 = vld [vmem:[%s3 + $0x38] sm:$0xff]
      %v2236 = vld [vmem:[%s3 + $0x40] sm:$0xff]
      %v2237 = vld [vmem:[%s3 + $0x48] sm:$0xff]
      %v2238 = vld [vmem:[%s3 + $0x50] sm:$0xff]
      %v2239 = vld [vmem:[%s3 + $0x58] sm:$0xff]
      %v2240 = vld [vmem:[%s3 + $0x60] sm:$0xff]
      %v2241 = vld [vmem:[%s3 + $0x68] sm:$0xff]
      %v2242 = vld [vmem:[%s3 + $0x70] sm:$0xff]
      %v2243 = vld [vmem:[%s3 + $0x78] sm:$0xff]
      %v2244 = vld [vmem:[%s3 + $0x80] sm:$0xff]
      %v2245 = vld [vmem:[%s3 + $0x88] sm:$0xff]
      %v2246 = vld [vmem:[%s3 + $0x90] sm:$0xff]
      %v2247 = vld [vmem:[%s3 + $0x98] sm:$0xff]
      %v2248 = vld [vmem:[%s3 + $0xa0] sm:$0xff]
      %v2249 = vld [vmem:[%s3 + $0xa8] sm:$0xff]
      %v2250 = vld [vmem:[%s3 + $0xb0] sm:$0xff]
      %v2251 = vld [vmem:[%s3 + $0xb8] sm:$0xff]
      %v2252 = vld [vmem:[%s3 + $0xc0] sm:$0xff]
      %v2253 = vld [vmem:[%s3 + $0xc8] sm:$0xff]
      %v2254 = vld [vmem:[%s3 + $0xd0] sm:$0xff]
      %v2255 = vld [vmem:[%s3 + $0xd8] sm:$0xff]
      %v2256 = vld [vmem:[%s3 + $0xe0] sm:$0xff]
      %v2257 = vld [vmem:[%s3 + $0xe8] sm:$0xff]
      %v2258 = vld [vmem:[%s3 + $0xf0] sm:$0xff]
      %v2259 = vld [vmem:[%s3 + $0xf8] sm:$0xff]
      %v2260 = vld [vmem:[%s3 + $0x100] sm:$0xff]
      %v2261 = vld [vmem:[%s3 + $0x108] sm:$0xff]
      %v2262 = vld [vmem:[%s3 + $0x110] sm:$0xff]
      %v2263 = vld [vmem:[%s3 + $0x118] sm:$0xff]
      %v2264 = vld [vmem:[%s3 + $0x120] sm:$0xff]
      %v2265 = vld [vmem:[%s3 + $0x128] sm:$0xff]
      %v2266 = vld [vmem:[%s3 + $0x130] sm:$0xff]
      %v2267 = vld [vmem:[%s3 + $0x138] sm:$0xff]
      %v2268 = vld [vmem:[%s3 + $0x140] sm:$0xff]
      %v2269 = vld [vmem:[%s3 + $0x148] sm:$0xff]
      %v2270 = vld [vmem:[%s3 + $0x150] sm:$0xff]
      %v2271 = vld [vmem:[%s3 + $0x158] sm:$0xff]
      %v2272 = vld [vmem:[%s3 + $0x160] sm:$0xff]
      %v2273 = vld [vmem:[%s3 + $0x168] sm:$0xff]
      %v2274 = vld [vmem:[%s3 + $0x170] sm:$0xff]
      %v2275 = vld [vmem:[%s3 + $0x178] sm:$0xff]
      %v2276 = vld [vmem:[%s3 + $0x180] sm:$0xff]
      %v2277 = vld [vmem:[%s3 + $0x188] sm:$0xff]
      %v2278 = vld [vmem:[%s3 + $0x190] sm:$0xff]
      %v2279 = vld [vmem:[%s3 + $0x198] sm:$0xff]
      %v2280 = vld [vmem:[%s3 + $0x1a0] sm:$0xff]
      %v2281 = vld [vmem:[%s3 + $0x1a8] sm:$0xff]
      %v2282 = vld [vmem:[%s3 + $0x1b0] sm:$0xff]
      %v2283 = vld [vmem:[%s3 + $0x1b8] sm:$0xff]
      %v2284 = vld [vmem:[%s3 + $0x1c0] sm:$0xff]
      %v2285 = vld [vmem:[%s3 + $0x1c8] sm:$0xff]
      %v2286 = vld [vmem:[%s3 + $0x1d0] sm:$0xff]
      %v2287 = vld [vmem:[%s3 + $0x1d8] sm:$0xff]
      %v2288 = vld [vmem:[%s3 + $0x1e0] sm:$0xff]
      %v2289 = vld [vmem:[%s3 + $0x1e8] sm:$0xff]
      %v2290 = vld [vmem:[%s3 + $0x1f0] sm:$0xff]
      %v2291 = vld [vmem:[%s3 + $0x1f8] sm:$0xff]
      %v2292 = vld [vmem:[%s3 + $0x200] sm:$0xff]
      %v2293 = vld [vmem:[%s3 + $0x208] sm:$0xff]
      %v2294 = vld [vmem:[%s3 + $0x210] sm:$0xff]
      %v2295 = vld [vmem:[%s3 + $0x218] sm:$0xff]
      %v2296 = vld [vmem:[%s3 + $0x220] sm:$0xff]
      %v2297 = vld [vmem:[%s3 + $0x228] sm:$0xff]
      %v2298 = vld [vmem:[%s3 + $0x230] sm:$0xff]
      %v2299 = vld [vmem:[%s3 + $0x238] sm:$0xff]
      %v2300 = vld [vmem:[%s3 + $0x240] sm:$0xff]
      %v2301 = vld [vmem:[%s3 + $0x248] sm:$0xff]
      %v2302 = vld [vmem:[%s3 + $0x250] sm:$0xff]
      %v2303 = vld [vmem:[%s3 + $0x258] sm:$0xff]
      %v2304 = vld [vmem:[%s3 + $0x260] sm:$0xff]
      %v2305 = vld [vmem:[%s3 + $0x268] sm:$0xff]
      %v2306 = vld [vmem:[%s3 + $0x270] sm:$0xff]
      %v2307 = vld [vmem:[%s3 + $0x278] sm:$0xff]
      %v2308 = vld [vmem:[%s3 + $0x280] sm:$0xff]
      %v2309 = vld [vmem:[%s3 + $0x288] sm:$0xff]
      %v2310 = vld [vmem:[%s3 + $0x290] sm:$0xff]
      %v2311 = vld [vmem:[%s3 + $0x298] sm:$0xff]
      %v2312 = vld [vmem:[%s3 + $0x2a0] sm:$0xff]
      %v2313 = vld [vmem:[%s3 + $0x2a8] sm:$0xff]
      %v2314 = vld [vmem:[%s3 + $0x2b0] sm:$0xff]
      %v2315 = vld [vmem:[%s3 + $0x2b8] sm:$0xff]
      %v2316 = vld [vmem:[%s3 + $0x2c0] sm:$0xff]
      %v2317 = vld [vmem:[%s3 + $0x2c8] sm:$0xff]
      %v2318 = vld [vmem:[%s3 + $0x2d0] sm:$0xff]
      %v2319 = vld [vmem:[%s3 + $0x2d8] sm:$0xff]
      %v2320 = vld [vmem:[%s3 + $0x2e0] sm:$0xff]
      %v2321 = vld [vmem:[%s3 + $0x2e8] sm:$0xff]
      %v2322 = vld [vmem:[%s3 + $0x2f0] sm:$0xff]
      %v2323 = vld [vmem:[%s3 + $0x2f8] sm:$0xff]
      %v2324 = vld [vmem:[%s3 + $0x300] sm:$0xff]
      %v2325 = vld [vmem:[%s3 + $0x308] sm:$0xff]
      %v2326 = vld [vmem:[%s3 + $0x310] sm:$0xff]
      %v2327 = vld [vmem:[%s3 + $0x318] sm:$0xff]
      %v2328 = vld [vmem:[%s3 + $0x320] sm:$0xff]
      %v2329 = vld [vmem:[%s3 + $0x328] sm:$0xff]
      %v2330 = vld [vmem:[%s2171] sm:$0xff]
      %v2331 = vld [vmem:[%s2171 + $0x8] sm:$0xff]
      %v2332 = vld [vmem:[%s2171 + $0x10] sm:$0xff]
      %v2333 = vld [vmem:[%s2171 + $0x18] sm:$0xff]
      %v2334 = vld [vmem:[%s2171 + $0x20] sm:$0xff]
      %v2335 = vld [vmem:[%s2171 + $0x28] sm:$0xff]
      %v2336 = vld [vmem:[%s2171 + $0x30] sm:$0x3]
      %v2337 = vld [vmem:[%s2171 + $0x38] sm:$0x3]
      %v2338 = vld [vmem:[%s2171 + $0x40] sm:$0x3]
      %s2339 = scalar_lea.vmem %s3, 816
      %v2340 = vld [vmem:[%s2339] sm:$0xff]
      %v2341 = vld [vmem:[%s2339 + $0x8] sm:$0xff]
      %v2342 = vld [vmem:[%s2339 + $0x10] sm:$0xff]
      %v2343 = vld [vmem:[%s2339 + $0x18] sm:$0xff]
      %v2344 = vld [vmem:[%s2339 + $0x20] sm:$0xff]
      %v2345 = vld [vmem:[%s2339 + $0x28] sm:$0xff]
      %v2346 = vld [vmem:[%s2339 + $0x30] sm:$0xff]
      %v2347 = vld [vmem:[%s2339 + $0x38] sm:$0xff]
      %v2348 = vld [vmem:[%s2339 + $0x40] sm:$0xff]
      %v2349 = vld [vmem:[%s2339 + $0x48] sm:$0xff]
      %v2350 = vld [vmem:[%s2339 + $0x50] sm:$0xff]
      %v2351 = vld [vmem:[%s2339 + $0x58] sm:$0xff]
      %v2352 = vld [vmem:[%s2339 + $0x60] sm:$0xff]
      %v2353 = vld [vmem:[%s2339 + $0x68] sm:$0xff]
      %v2354 = vld [vmem:[%s2339 + $0x70] sm:$0xff]
      %v2355 = vld [vmem:[%s2339 + $0x78] sm:$0xff]
      %v2356 = vld [vmem:[%s2339 + $0x80] sm:$0xff]
      %v2357 = vld [vmem:[%s2339 + $0x88] sm:$0xff]
      %v2358 = vld [vmem:[%s2339 + $0x90] sm:$0xff]
      %v2359 = vld [vmem:[%s2339 + $0x98] sm:$0xff]
      %v2360 = vld [vmem:[%s2339 + $0xa0] sm:$0xff]
      %v2361 = vld [vmem:[%s2339 + $0xa8] sm:$0xff]
      %v2362 = vld [vmem:[%s2339 + $0xb0] sm:$0xff]
      %v2363 = vld [vmem:[%s2339 + $0xb8] sm:$0xff]
      %v2364 = vld [vmem:[%s2339 + $0xc0] sm:$0xff]
      %v2365 = vld [vmem:[%s2339 + $0xc8] sm:$0xff]
      %v2366 = vld [vmem:[%s2339 + $0xd0] sm:$0xff]
      %v2367 = vld [vmem:[%s2339 + $0xd8] sm:$0xff]
      %v2368 = vld [vmem:[%s2339 + $0xe0] sm:$0xff]
      %v2369 = vld [vmem:[%s2339 + $0xe8] sm:$0xff]
      %v2370 = vld [vmem:[%s2339 + $0xf0] sm:$0xff]
      %v2371 = vld [vmem:[%s2339 + $0xf8] sm:$0xff]
      %v2372 = vld [vmem:[%s2339 + $0x100] sm:$0xff]
      %v2373 = vld [vmem:[%s2339 + $0x108] sm:$0xff]
      %v2374 = vld [vmem:[%s2339 + $0x110] sm:$0xff]
      %v2375 = vld [vmem:[%s2339 + $0x118] sm:$0xff]
      %v2376 = vld [vmem:[%s2339 + $0x120] sm:$0xff]
      %v2377 = vld [vmem:[%s2339 + $0x128] sm:$0xff]
      %v2378 = vld [vmem:[%s2339 + $0x130] sm:$0xff]
      %v2379 = vld [vmem:[%s2339 + $0x138] sm:$0xff]
      %v2380 = vld [vmem:[%s2339 + $0x140] sm:$0xff]
      %v2381 = vld [vmem:[%s2339 + $0x148] sm:$0xff]
      %v2382 = vld [vmem:[%s2339 + $0x150] sm:$0xff]
      %v2383 = vld [vmem:[%s2339 + $0x158] sm:$0xff]
      %v2384 = vld [vmem:[%s2339 + $0x160] sm:$0xff]
      %v2385 = vld [vmem:[%s2339 + $0x168] sm:$0xff]
      %v2386 = vld [vmem:[%s2339 + $0x170] sm:$0xff]
      %v2387 = vld [vmem:[%s2339 + $0x178] sm:$0xff]
      %v2388 = vld [vmem:[%s2339 + $0x180] sm:$0xff]
      %v2389 = vld [vmem:[%s2339 + $0x188] sm:$0xff]
      %v2390 = vld [vmem:[%s2339 + $0x190] sm:$0xff]
      %v2391 = vld [vmem:[%s2339 + $0x198] sm:$0xff]
      %v2392 = vld [vmem:[%s2339 + $0x1a0] sm:$0xff]
      %v2393 = vld [vmem:[%s2339 + $0x1a8] sm:$0xff]
      %v2394 = vld [vmem:[%s2339 + $0x1b0] sm:$0xff]
      %v2395 = vld [vmem:[%s2339 + $0x1b8] sm:$0xff]
      %v2396 = vld [vmem:[%s2339 + $0x1c0] sm:$0xff]
      %v2397 = vld [vmem:[%s2339 + $0x1c8] sm:$0xff]
      %v2398 = vld [vmem:[%s2339 + $0x1d0] sm:$0xff]
      %v2399 = vld [vmem:[%s2339 + $0x1d8] sm:$0xff]
      %v2400 = vld [vmem:[%s2339 + $0x1e0] sm:$0xff]
      %v2401 = vld [vmem:[%s2339 + $0x1e8] sm:$0xff]
      %v2402 = vld [vmem:[%s2339 + $0x1f0] sm:$0xff]
      %v2403 = vld [vmem:[%s2339 + $0x1f8] sm:$0xff]
      %v2404 = vld [vmem:[%s2339 + $0x200] sm:$0xff]
      %v2405 = vld [vmem:[%s2339 + $0x208] sm:$0xff]
      %v2406 = vld [vmem:[%s2339 + $0x210] sm:$0xff]
      %v2407 = vld [vmem:[%s2339 + $0x218] sm:$0xff]
      %v2408 = vld [vmem:[%s2339 + $0x220] sm:$0xff]
      %v2409 = vld [vmem:[%s2339 + $0x228] sm:$0xff]
      %v2410 = vld [vmem:[%s2339 + $0x230] sm:$0xff]
      %v2411 = vld [vmem:[%s2339 + $0x238] sm:$0xff]
      %v2412 = vld [vmem:[%s2339 + $0x240] sm:$0xff]
      %v2413 = vld [vmem:[%s2339 + $0x248] sm:$0xff]
      %v2414 = vld [vmem:[%s2339 + $0x250] sm:$0xff]
      %v2415 = vld [vmem:[%s2339 + $0x258] sm:$0xff]
      %v2416 = vld [vmem:[%s2339 + $0x260] sm:$0xff]
      %v2417 = vld [vmem:[%s2339 + $0x268] sm:$0xff]
      %v2418 = vld [vmem:[%s2339 + $0x270] sm:$0xff]
      %v2419 = vld [vmem:[%s2339 + $0x278] sm:$0xff]
      %v2420 = vld [vmem:[%s2339 + $0x280] sm:$0xff]
      %v2421 = vld [vmem:[%s2339 + $0x288] sm:$0xff]
      %v2422 = vld [vmem:[%s2339 + $0x290] sm:$0xff]
      %v2423 = vld [vmem:[%s2339 + $0x298] sm:$0xff]
      %v2424 = vld [vmem:[%s2339 + $0x2a0] sm:$0xff]
      %v2425 = vld [vmem:[%s2339 + $0x2a8] sm:$0xff]
      %v2426 = vld [vmem:[%s2339 + $0x2b0] sm:$0xff]
      %v2427 = vld [vmem:[%s2339 + $0x2b8] sm:$0xff]
      %v2428 = vld [vmem:[%s2339 + $0x2c0] sm:$0xff]
      %v2429 = vld [vmem:[%s2339 + $0x2c8] sm:$0xff]
      %v2430 = vld [vmem:[%s2339 + $0x2d0] sm:$0xff]
      %v2431 = vld [vmem:[%s2339 + $0x2d8] sm:$0xff]
      %v2432 = vld [vmem:[%s2339 + $0x2e0] sm:$0xff]
      %v2433 = vld [vmem:[%s2339 + $0x2e8] sm:$0xff]
      %v2434 = vld [vmem:[%s2339 + $0x2f0] sm:$0xff]
      %v2435 = vld [vmem:[%s2339 + $0x2f8] sm:$0xff]
      %v2436 = vld [vmem:[%s2339 + $0x300] sm:$0xff]
      %v2437 = vld [vmem:[%s2339 + $0x308] sm:$0xff]
      %v2438 = vld [vmem:[%s2339 + $0x310] sm:$0xff]
      %v2439 = vld [vmem:[%s2339 + $0x318] sm:$0xff]
      %v2440 = vld [vmem:[%s2339 + $0x320] sm:$0xff]
      %v2441 = vld [vmem:[%s2339 + $0x328] sm:$0xff]
      %v2443 = vsel %vm1373, %v2332, 0
      %v2446 = vsel %vm1373, %v2335, 0
      %v2449 = vsel %vm1373, %v2338, 0
      %2451 = vmatprep.subr.mxu0 %v2341
      %2452 = vmatpush1.msra.mxu0 %v2340
      %2453 = vmatprep.subr.mxu0 %v2344
      %2454 = vmatpush1.msra.mxu0 %v2343
      %2455 = vmatprep.subr.mxu0 %v2347
      %2456 = vmatpush1.msra.mxu0 %v2346
      %2457 = vmatprep.subr.mxu0 %v2350
      %2458 = vmatpush1.msra.mxu0 %v2349
      %2459 = vmatprep.subr.mxu0 %v2353
      %2460 = vmatpush1.msra.mxu0 %v2352
      %2461 = vmatprep.subr.mxu0 %v2356
      %2462 = vmatpush1.msra.mxu0 %v2355
      %2463 = vmatprep.subr.mxu0 %v2359
      %2464 = vmatpush1.msra.mxu0 %v2358
      %2465 = vmatprep.subr.mxu0 %v2362
      %2466 = vmatpush1.msra.mxu0 %v2361
      %2467 = vmatprep.subr.mxu0 %v2365
      %2468 = vmatpush1.msra.mxu0 %v2364
      %2469 = vmatprep.subr.mxu0 %v2368
      %2470 = vmatpush1.msra.mxu0 %v2367
      %2471 = vmatprep.subr.mxu0 %v2371
      %2472 = vmatpush1.msra.mxu0 %v2370
      %2473 = vmatprep.subr.mxu0 %v2374
      %2474 = vmatpush1.msra.mxu0 %v2373
      %2475 = vmatprep.subr.mxu0 %v2377
      %2476 = vmatpush1.msra.mxu0 %v2376
      %2477 = vmatprep.subr.mxu0 %v2380
      %2478 = vmatpush1.msra.mxu0 %v2379
      %2479 = vmatprep.subr.mxu0 %v2383
      %2480 = vmatpush1.msra.mxu0 %v2382
      %2481 = vmatprep.subr.mxu0 %v2386
      %2482 = vmatpush1.msra.mxu0 %v2385
      %2483 = vmatprep.subr.mxu0 %v2389
      %2484 = vmatpush1.msra.mxu0 %v2388
      %2485 = vmatprep.subr.mxu0 %v2392
      %2486 = vmatpush1.msra.mxu0 %v2391
      %2487 = vmatprep.subr.mxu0 %v2395
      %2488 = vmatpush1.msra.mxu0 %v2394
      %2489 = vmatprep.subr.mxu0 %v2398
      %2490 = vmatpush1.msra.mxu0 %v2397
      %2491 = vmatprep.subr.mxu0 %v2401
      %2492 = vmatpush1.msra.mxu0 %v2400
      %2493 = vmatprep.subr.mxu0 %v2404
      %2494 = vmatpush1.msra.mxu0 %v2403
      %2495 = vmatprep.subr.mxu0 %v2407
      %2496 = vmatpush1.msra.mxu0 %v2406
      %2497 = vmatprep.subr.mxu0 %v2410
      %2498 = vmatpush1.msra.mxu0 %v2409
      %2499 = vmatprep.subr.mxu0 %v2413
      %2500 = vmatpush1.msra.mxu0 %v2412
      %2501 = vmatprep.subr.mxu0 %v2416
      %2502 = vmatpush1.msra.mxu0 %v2415
      %2503 = vmatprep.subr.mxu0 %v2419
      %2504 = vmatpush1.msra.mxu0 %v2418
      %2505 = vmatprep.subr.mxu0 %v2422
      %2506 = vmatpush1.msra.mxu0 %v2421
      %2507 = vmatprep.subr.mxu0 %v2425
      %2508 = vmatpush1.msra.mxu0 %v2424
      %2509 = vmatprep.subr.mxu0 %v2428
      %2510 = vmatpush1.msra.mxu0 %v2427
      %2511 = vmatprep.subr.mxu0 %v2431
      %2512 = vmatpush1.msra.mxu0 %v2430
      %2513 = vmatprep.subr.mxu0 %v2434
      %2514 = vmatpush1.msra.mxu0 %v2433
      %2515 = vmatprep.mubr.f32.mxu0 %v2331
      %2516 = vmatmul.mubr.f32.gmra.mrb[0].mxu0 %v2330
      %v2517 = vpop.f32.mrb[0].mxu0
      %v2518 = vadd.f32 0.0, %v2517
      %v2519 = vpop.f32.mrb[0].mxu0
      %v2520 = vadd.f32 0.0, %v2519
      %2521 = vmatprep.mubr.f32.mxu0 %v2334
      %2522 = vmatmul.mubr.f32.gmra.mrb[0].mxu0 %v2333
      %v2523 = vpop.f32.mrb[0].mxu0
      %v2524 = vadd.f32 0.0, %v2523
      %v2525 = vpop.f32.mrb[0].mxu0
      %v2526 = vadd.f32 0.0, %v2525
      %2527 = vmatprep.mubr.f32.mxu0 %v2337
      %2528 = vmatmul.mubr.f32.gmra.mrb[0].mxu0 %v2336
      %v2529 = vpop.f32.mrb[0].mxu0
      %v2530 = vadd.f32 0.0, %v2529
      %v2531 = vpop.f32.mrb[0].mxu0
      %v2532 = vadd.f32 0.0, %v2531
      %2533 = vdwg.mxu0
      %2534 = vmatprep.subr.mxu0 %v2437
      %2535 = vmatpush1.msra.mxu0 %v2436
      %2536 = vmatprep.subr.mxu0 %v2440
      %2537 = vmatpush1.msra.mxu0 %v2439
      %2538 = vmatprep.subr.mxu0 0.0
      %2539 = vmatpush1.msra.mxu0 0.0
      %2540 = vmatprep.subr.mxu0 0.0
      %2541 = vmatpush1.msra.mxu0 0.0
      %2542 = vmatprep.subr.mxu0 0.0
      %2543 = vmatpush1.msra.mxu0 0.0
      %2544 = vmatprep.subr.mxu0 0.0
      %2545 = vmatpush1.msra.mxu0 0.0
      %2546 = vmatprep.subr.mxu0 0.0
      %2547 = vmatpush1.msra.mxu0 0.0
      %2548 = vmatprep.subr.mxu0 0.0
      %2549 = vmatpush1.msra.mxu0 0.0
      %2550 = vmatprep.subr.mxu0 0.0
      %2551 = vmatpush1.msra.mxu0 0.0
      %2552 = vmatprep.subr.mxu0 0.0
      %2553 = vmatpush1.msra.mxu0 0.0
      %2554 = vmatprep.subr.mxu0 0.0
      %2555 = vmatpush1.msra.mxu0 0.0
      %2556 = vmatprep.subr.mxu0 0.0
      %2557 = vmatpush1.msra.mxu0 0.0
      %2558 = vmatprep.subr.mxu0 0.0
      %2559 = vmatpush1.msra.mxu0 0.0
      %2560 = vmatprep.subr.mxu0 0.0
      %2561 = vmatpush1.msra.mxu0 0.0
      %2562 = vmatprep.subr.mxu0 0.0
      %2563 = vmatpush1.msra.mxu0 0.0
      %2564 = vmatprep.subr.mxu0 0.0
      %2565 = vmatpush1.msra.mxu0 0.0
      %2566 = vmatprep.subr.mxu0 0.0
      %2567 = vmatpush1.msra.mxu0 0.0
      %2568 = vmatprep.subr.mxu0 0.0
      %2569 = vmatpush1.msra.mxu0 0.0
      %2570 = vmatprep.subr.mxu0 0.0
      %2571 = vmatpush1.msra.mxu0 0.0
      %2572 = vmatprep.subr.mxu0 0.0
      %2573 = vmatpush1.msra.mxu0 0.0
      %2574 = vmatprep.subr.mxu0 0.0
      %2575 = vmatpush1.msra.mxu0 0.0
      %2576 = vmatprep.subr.mxu0 0.0
      %2577 = vmatpush1.msra.mxu0 0.0
      %2578 = vmatprep.subr.mxu0 0.0
      %2579 = vmatpush1.msra.mxu0 0.0
      %2580 = vmatprep.subr.mxu0 0.0
      %2581 = vmatpush1.msra.mxu0 0.0
      %2582 = vmatprep.subr.mxu0 0.0
      %2583 = vmatpush1.msra.mxu0 0.0
      %2584 = vmatprep.subr.mxu0 0.0
      %2585 = vmatpush1.msra.mxu0 0.0
      %2586 = vmatprep.subr.mxu0 0.0
      %2587 = vmatpush1.msra.mxu0 0.0
      %2588 = vmatprep.subr.mxu0 0.0
      %2589 = vmatpush1.msra.mxu0 0.0
      %2590 = vmatprep.subr.mxu0 0.0
      %2591 = vmatpush1.msra.mxu0 0.0
      %2592 = vmatprep.subr.mxu0 0.0
      %2593 = vmatpush1.msra.mxu0 0.0
      %2594 = vmatprep.subr.mxu0 0.0
      %2595 = vmatpush1.msra.mxu0 0.0
      %2596 = vmatprep.subr.mxu0 0.0
      %2597 = vmatpush1.msra.mxu0 0.0
      %2598 = vmatprep.mubr.f32.mxu0 0.0
      %2599 = vmatmul.mubr.f32.gmra.mrb[0].mxu0 %v2443
      %v2600 = vpop.f32.mrb[0].mxu0
      %v2601 = vadd.f32 %v2518, %v2600
      %v2602 = vpop.f32.mrb[0].mxu0
      %v2603 = vadd.f32 %v2520, %v2602
      %2604 = vmatprep.mubr.f32.mxu0 0.0
      %2605 = vmatmul.mubr.f32.gmra.mrb[0].mxu0 %v2446
      %v2606 = vpop.f32.mrb[0].mxu0
      %v2607 = vadd.f32 %v2524, %v2606
      %v2608 = vpop.f32.mrb[0].mxu0
      %v2609 = vadd.f32 %v2526, %v2608
      %2610 = vmatprep.mubr.f32.mxu0 0.0
      %2611 = vmatmul.mubr.f32.gmra.mrb[0].mxu0 %v2449
      %v2612 = vpop.f32.mrb[0].mxu0
      %v2613 = vadd.f32 %v2530, %v2612
      %v2614 = vpop.f32.mrb[0].mxu0
      %v2615 = vadd.f32 %v2532, %v2614
      %2616 = vdwg.mxu0
      %2617 = vmatprep.subr.mxu0 0.0
      %2618 = vmatpush1.msra.mxu0 %v2342
      %2619 = vmatprep.subr.mxu0 0.0
      %2620 = vmatpush1.msra.mxu0 %v2345
      %2621 = vmatprep.subr.mxu0 0.0
      %2622 = vmatpush1.msra.mxu0 %v2348
      %2623 = vmatprep.subr.mxu0 0.0
      %2624 = vmatpush1.msra.mxu0 %v2351
      %2625 = vmatprep.subr.mxu0 0.0
      %2626 = vmatpush1.msra.mxu0 %v2354
      %2627 = vmatprep.subr.mxu0 0.0
      %2628 = vmatpush1.msra.mxu0 %v2357
      %2629 = vmatprep.subr.mxu0 0.0
      %2630 = vmatpush1.msra.mxu0 %v2360
      %2631 = vmatprep.subr.mxu0 0.0
      %2632 = vmatpush1.msra.mxu0 %v2363
      %2633 = vmatprep.subr.mxu0 0.0
      %2634 = vmatpush1.msra.mxu0 %v2366
      %2635 = vmatprep.subr.mxu0 0.0
      %2636 = vmatpush1.msra.mxu0 %v2369
      %2637 = vmatprep.subr.mxu0 0.0
      %2638 = vmatpush1.msra.mxu0 %v2372
      %2639 = vmatprep.subr.mxu0 0.0
      %2640 = vmatpush1.msra.mxu0 %v2375
      %2641 = vmatprep.subr.mxu0 0.0
      %2642 = vmatpush1.msra.mxu0 %v2378
      %2643 = vmatprep.subr.mxu0 0.0
      %2644 = vmatpush1.msra.mxu0 %v2381
      %2645 = vmatprep.subr.mxu0 0.0
      %2646 = vmatpush1.msra.mxu0 %v2384
      %2647 = vmatprep.subr.mxu0 0.0
      %2648 = vmatpush1.msra.mxu0 %v2387
      %2649 = vmatprep.subr.mxu0 0.0
      %2650 = vmatpush1.msra.mxu0 %v2390
      %2651 = vmatprep.subr.mxu0 0.0
      %2652 = vmatpush1.msra.mxu0 %v2393
      %2653 = vmatprep.subr.mxu0 0.0
      %2654 = vmatpush1.msra.mxu0 %v2396
      %2655 = vmatprep.subr.mxu0 0.0
      %2656 = vmatpush1.msra.mxu0 %v2399
      %2657 = vmatprep.subr.mxu0 0.0
      %2658 = vmatpush1.msra.mxu0 %v2402
      %2659 = vmatprep.subr.mxu0 0.0
      %2660 = vmatpush1.msra.mxu0 %v2405
      %2661 = vmatprep.subr.mxu0 0.0
      %2662 = vmatpush1.msra.mxu0 %v2408
      %2663 = vmatprep.subr.mxu0 0.0
      %2664 = vmatpush1.msra.mxu0 %v2411
      %2665 = vmatprep.subr.mxu0 0.0
      %2666 = vmatpush1.msra.mxu0 %v2414
      %2667 = vmatprep.subr.mxu0 0.0
      %2668 = vmatpush1.msra.mxu0 %v2417
      %2669 = vmatprep.subr.mxu0 0.0
      %2670 = vmatpush1.msra.mxu0 %v2420
      %2671 = vmatprep.subr.mxu0 0.0
      %2672 = vmatpush1.msra.mxu0 %v2423
      %2673 = vmatprep.subr.mxu0 0.0
      %2674 = vmatpush1.msra.mxu0 %v2426
      %2675 = vmatprep.subr.mxu0 0.0
      %2676 = vmatpush1.msra.mxu0 %v2429
      %2677 = vmatprep.subr.mxu0 0.0
      %2678 = vmatpush1.msra.mxu0 %v2432
      %2679 = vmatprep.subr.mxu0 0.0
      %2680 = vmatpush1.msra.mxu0 %v2435
      %2681 = vmatprep.mubr.f32.mxu0 %v2331
      %2682 = vmatmul.mubr.f32.gmra.mrb[0].mxu0 %v2330
      %v2683 = vpop.f32.mrb[0].mxu0
      %v2684 = vadd.f32 0.0, %v2683
      %v2685 = vpop.f32.mrb[0].mxu0
      %2686 = vmatprep.mubr.f32.mxu0 %v2334
      %2687 = vmatmul.mubr.f32.gmra.mrb[0].mxu0 %v2333
      %v2688 = vpop.f32.mrb[0].mxu0
      %v2689 = vadd.f32 0.0, %v2688
      %v2690 = vpop.f32.mrb[0].mxu0
      %2691 = vmatprep.mubr.f32.mxu0 %v2337
      %2692 = vmatmul.mubr.f32.gmra.mrb[0].mxu0 %v2336
      %v2693 = vpop.f32.mrb[0].mxu0
      %v2694 = vadd.f32 0.0, %v2693
      %v2695 = vpop.f32.mrb[0].mxu0
      %2696 = vdwg.mxu0
      %2697 = vmatprep.subr.mxu0 0.0
      %2698 = vmatpush1.msra.mxu0 %v2438
      %2699 = vmatprep.subr.mxu0 0.0
      %2700 = vmatpush1.msra.mxu0 %v2441
      %2701 = vmatprep.subr.mxu0 0.0
      %2702 = vmatpush1.msra.mxu0 0.0
      %2703 = vmatprep.subr.mxu0 0.0
      %2704 = vmatpush1.msra.mxu0 0.0
      %2705 = vmatprep.subr.mxu0 0.0
      %2706 = vmatpush1.msra.mxu0 0.0
      %2707 = vmatprep.subr.mxu0 0.0
      %2708 = vmatpush1.msra.mxu0 0.0
      %2709 = vmatprep.subr.mxu0 0.0
      %2710 = vmatpush1.msra.mxu0 0.0
      %2711 = vmatprep.subr.mxu0 0.0
      %2712 = vmatpush1.msra.mxu0 0.0
      %2713 = vmatprep.subr.mxu0 0.0
      %2714 = vmatpush1.msra.mxu0 0.0
      %2715 = vmatprep.subr.mxu0 0.0
      %2716 = vmatpush1.msra.mxu0 0.0
      %2717 = vmatprep.subr.mxu0 0.0
      %2718 = vmatpush1.msra.mxu0 0.0
      %2719 = vmatprep.subr.mxu0 0.0
      %2720 = vmatpush1.msra.mxu0 0.0
      %2721 = vmatprep.subr.mxu0 0.0
      %2722 = vmatpush1.msra.mxu0 0.0
      %2723 = vmatprep.subr.mxu0 0.0
      %2724 = vmatpush1.msra.mxu0 0.0
      %2725 = vmatprep.subr.mxu0 0.0
      %2726 = vmatpush1.msra.mxu0 0.0
      %2727 = vmatprep.subr.mxu0 0.0
      %2728 = vmatpush1.msra.mxu0 0.0
      %2729 = vmatprep.subr.mxu0 0.0
      %2730 = vmatpush1.msra.mxu0 0.0
      %2731 = vmatprep.subr.mxu0 0.0
      %2732 = vmatpush1.msra.mxu0 0.0
      %2733 = vmatprep.subr.mxu0 0.0
      %2734 = vmatpush1.msra.mxu0 0.0
      %2735 = vmatprep.subr.mxu0 0.0
      %2736 = vmatpush1.msra.mxu0 0.0
      %2737 = vmatprep.subr.mxu0 0.0
      %2738 = vmatpush1.msra.mxu0 0.0
      %2739 = vmatprep.subr.mxu0 0.0
      %2740 = vmatpush1.msra.mxu0 0.0
      %2741 = vmatprep.subr.mxu0 0.0
      %2742 = vmatpush1.msra.mxu0 0.0
      %2743 = vmatprep.subr.mxu0 0.0
      %2744 = vmatpush1.msra.mxu0 0.0
      %2745 = vmatprep.subr.mxu0 0.0
      %2746 = vmatpush1.msra.mxu0 0.0
      %2747 = vmatprep.subr.mxu0 0.0
      %2748 = vmatpush1.msra.mxu0 0.0
      %2749 = vmatprep.subr.mxu0 0.0
      %2750 = vmatpush1.msra.mxu0 0.0
      %2751 = vmatprep.subr.mxu0 0.0
      %2752 = vmatpush1.msra.mxu0 0.0
      %2753 = vmatprep.subr.mxu0 0.0
      %2754 = vmatpush1.msra.mxu0 0.0
      %2755 = vmatprep.subr.mxu0 0.0
      %2756 = vmatpush1.msra.mxu0 0.0
      %2757 = vmatprep.subr.mxu0 0.0
      %2758 = vmatpush1.msra.mxu0 0.0
      %2759 = vmatprep.subr.mxu0 0.0
      %2760 = vmatpush1.msra.mxu0 0.0
      %2761 = vmatprep.mubr.f32.mxu0 0.0
      %2762 = vmatmul.mubr.f32.gmra.mrb[0].mxu0 %v2443
      %v2763 = vpop.f32.mrb[0].mxu0
      %v2764 = vadd.f32 %v2684, %v2763
      %v2765 = vpop.f32.mrb[0].mxu0
      %2766 = vmatprep.mubr.f32.mxu0 0.0
      %2767 = vmatmul.mubr.f32.gmra.mrb[0].mxu0 %v2446
      %v2768 = vpop.f32.mrb[0].mxu0
      %v2769 = vadd.f32 %v2689, %v2768
      %v2770 = vpop.f32.mrb[0].mxu0
      %2771 = vmatprep.mubr.f32.mxu0 0.0
      %2772 = vmatmul.mubr.f32.gmra.mrb[0].mxu0 %v2449
      %v2773 = vpop.f32.mrb[0].mxu0
      %v2774 = vadd.f32 %v2694, %v2773
      %v2775 = vpop.f32.mrb[0].mxu0
      %2776 = vdwg.mxu0
      %v2778 = vsel %vm1373, %v2221, 0
      %v2781 = vsel %vm1373, %v2224, 0
      %v2784 = vsel %vm1373, %v2227, 0
      %2786 = vmatprep.subr.mxu0 %v2229
      %2787 = vmatpush1.msra.mxu0 %v2228
      %2788 = vmatprep.subr.mxu0 %v2232
      %2789 = vmatpush1.msra.mxu0 %v2231
      %2790 = vmatprep.subr.mxu0 %v2235
      %2791 = vmatpush1.msra.mxu0 %v2234
      %2792 = vmatprep.subr.mxu0 %v2238
      %2793 = vmatpush1.msra.mxu0 %v2237
      %2794 = vmatprep.subr.mxu0 %v2241
      %2795 = vmatpush1.msra.mxu0 %v2240
      %2796 = vmatprep.subr.mxu0 %v2244
      %2797 = vmatpush1.msra.mxu0 %v2243
      %2798 = vmatprep.subr.mxu0 %v2247
      %2799 = vmatpush1.msra.mxu0 %v2246
      %2800 = vmatprep.subr.mxu0 %v2250
      %2801 = vmatpush1.msra.mxu0 %v2249
      %2802 = vmatprep.subr.mxu0 %v2253
      %2803 = vmatpush1.msra.mxu0 %v2252
      %2804 = vmatprep.subr.mxu0 %v2256
      %2805 = vmatpush1.msra.mxu0 %v2255
      %2806 = vmatprep.subr.mxu0 %v2259
      %2807 = vmatpush1.msra.mxu0 %v2258
      %2808 = vmatprep.subr.mxu0 %v2262
      %2809 = vmatpush1.msra.mxu0 %v2261
      %2810 = vmatprep.subr.mxu0 %v2265
      %2811 = vmatpush1.msra.mxu0 %v2264
      %2812 = vmatprep.subr.mxu0 %v2268
      %2813 = vmatpush1.msra.mxu0 %v2267
      %2814 = vmatprep.subr.mxu0 %v2271
      %2815 = vmatpush1.msra.mxu0 %v2270
      %2816 = vmatprep.subr.mxu0 %v2274
      %2817 = vmatpush1.msra.mxu0 %v2273
      %2818 = vmatprep.subr.mxu0 %v2277
      %2819 = vmatpush1.msra.mxu0 %v2276
      %2820 = vmatprep.subr.mxu0 %v2280
      %2821 = vmatpush1.msra.mxu0 %v2279
      %2822 = vmatprep.subr.mxu0 %v2283
      %2823 = vmatpush1.msra.mxu0 %v2282
      %2824 = vmatprep.subr.mxu0 %v2286
      %2825 = vmatpush1.msra.mxu0 %v2285
      %2826 = vmatprep.subr.mxu0 %v2289
      %2827 = vmatpush1.msra.mxu0 %v2288
      %2828 = vmatprep.subr.mxu0 %v2292
      %2829 = vmatpush1.msra.mxu0 %v2291
      %2830 = vmatprep.subr.mxu0 %v2295
      %2831 = vmatpush1.msra.mxu0 %v2294
      %2832 = vmatprep.subr.mxu0 %v2298
      %2833 = vmatpush1.msra.mxu0 %v2297
      %2834 = vmatprep.subr.mxu0 %v2301
      %2835 = vmatpush1.msra.mxu0 %v2300
      %2836 = vmatprep.subr.mxu0 %v2304
      %2837 = vmatpush1.msra.mxu0 %v2303
      %2838 = vmatprep.subr.mxu0 %v2307
      %2839 = vmatpush1.msra.mxu0 %v2306
      %2840 = vmatprep.subr.mxu0 %v2310
      %2841 = vmatpush1.msra.mxu0 %v2309
      %2842 = vmatprep.subr.mxu0 %v2313
      %2843 = vmatpush1.msra.mxu0 %v2312
      %2844 = vmatprep.subr.mxu0 %v2316
      %2845 = vmatpush1.msra.mxu0 %v2315
      %2846 = vmatprep.subr.mxu0 %v2319
      %2847 = vmatpush1.msra.mxu0 %v2318
      %2848 = vmatprep.subr.mxu0 %v2322
      %2849 = vmatpush1.msra.mxu0 %v2321
      %2850 = vmatprep.mubr.f32.mxu0 %v2220
      %2851 = vmatmul.mubr.f32.gmra.mrb[0].mxu0 %v2219
      %v2852 = vpop.f32.mrb[0].mxu0
      %v2853 = vadd.f32 %v2601, %v2852
      %v2854 = vpop.f32.mrb[0].mxu0
      %v2855 = vadd.f32 %v2603, %v2854
      %2856 = vmatprep.mubr.f32.mxu0 %v2223
      %2857 = vmatmul.mubr.f32.gmra.mrb[0].mxu0 %v2222
      %v2858 = vpop.f32.mrb[0].mxu0
      %v2859 = vadd.f32 %v2607, %v2858
      %v2860 = vpop.f32.mrb[0].mxu0
      %v2861 = vadd.f32 %v2609, %v2860
      %2862 = vmatprep.mubr.f32.mxu0 %v2226
      %2863 = vmatmul.mubr.f32.gmra.mrb[0].mxu0 %v2225
      %v2864 = vpop.f32.mrb[0].mxu0
      %v2865 = vadd.f32 %v2613, %v2864
      %v2866 = vpop.f32.mrb[0].mxu0
      %v2867 = vadd.f32 %v2615, %v2866
      %2868 = vdwg.mxu0
      %2869 = vmatprep.subr.mxu0 %v2325
      %2870 = vmatpush1.msra.mxu0 %v2324
      %2871 = vmatprep.subr.mxu0 %v2328
      %2872 = vmatpush1.msra.mxu0 %v2327
      %2873 = vmatprep.subr.mxu0 0.0
      %2874 = vmatpush1.msra.mxu0 0.0
      %2875 = vmatprep.subr.mxu0 0.0
      %2876 = vmatpush1.msra.mxu0 0.0
      %2877 = vmatprep.subr.mxu0 0.0
      %2878 = vmatpush1.msra.mxu0 0.0
      %2879 = vmatprep.subr.mxu0 0.0
      %2880 = vmatpush1.msra.mxu0 0.0
      %2881 = vmatprep.subr.mxu0 0.0
      %2882 = vmatpush1.msra.mxu0 0.0
      %2883 = vmatprep.subr.mxu0 0.0
      %2884 = vmatpush1.msra.mxu0 0.0
      %2885 = vmatprep.subr.mxu0 0.0
      %2886 = vmatpush1.msra.mxu0 0.0
      %2887 = vmatprep.subr.mxu0 0.0
      %2888 = vmatpush1.msra.mxu0 0.0
      %2889 = vmatprep.subr.mxu0 0.0
      %2890 = vmatpush1.msra.mxu0 0.0
      %2891 = vmatprep.subr.mxu0 0.0
      %2892 = vmatpush1.msra.mxu0 0.0
      %2893 = vmatprep.subr.mxu0 0.0
      %2894 = vmatpush1.msra.mxu0 0.0
      %2895 = vmatprep.subr.mxu0 0.0
      %2896 = vmatpush1.msra.mxu0 0.0
      %2897 = vmatprep.subr.mxu0 0.0
      %2898 = vmatpush1.msra.mxu0 0.0
      %2899 = vmatprep.subr.mxu0 0.0
      %2900 = vmatpush1.msra.mxu0 0.0
      %2901 = vmatprep.subr.mxu0 0.0
      %2902 = vmatpush1.msra.mxu0 0.0
      %2903 = vmatprep.subr.mxu0 0.0
      %2904 = vmatpush1.msra.mxu0 0.0
      %2905 = vmatprep.subr.mxu0 0.0
      %2906 = vmatpush1.msra.mxu0 0.0
      %2907 = vmatprep.subr.mxu0 0.0
      %2908 = vmatpush1.msra.mxu0 0.0
      %2909 = vmatprep.subr.mxu0 0.0
      %2910 = vmatpush1.msra.mxu0 0.0
      %2911 = vmatprep.subr.mxu0 0.0
      %2912 = vmatpush1.msra.mxu0 0.0
      %2913 = vmatprep.subr.mxu0 0.0
      %2914 = vmatpush1.msra.mxu0 0.0
      %2915 = vmatprep.subr.mxu0 0.0
      %2916 = vmatpush1.msra.mxu0 0.0
      %2917 = vmatprep.subr.mxu0 0.0
      %2918 = vmatpush1.msra.mxu0 0.0
      %2919 = vmatprep.subr.mxu0 0.0
      %2920 = vmatpush1.msra.mxu0 0.0
      %2921 = vmatprep.subr.mxu0 0.0
      %2922 = vmatpush1.msra.mxu0 0.0
      %2923 = vmatprep.subr.mxu0 0.0
      %2924 = vmatpush1.msra.mxu0 0.0
      %2925 = vmatprep.subr.mxu0 0.0
      %2926 = vmatpush1.msra.mxu0 0.0
      %2927 = vmatprep.subr.mxu0 0.0
      %2928 = vmatpush1.msra.mxu0 0.0
      %2929 = vmatprep.subr.mxu0 0.0
      %2930 = vmatpush1.msra.mxu0 0.0
      %2931 = vmatprep.subr.mxu0 0.0
      %2932 = vmatpush1.msra.mxu0 0.0
      %2933 = vmatprep.mubr.f32.mxu0 0.0
      %2934 = vmatmul.mubr.f32.gmra.mrb[0].mxu0 %v2778
      %v2935 = vpop.f32.mrb[0].mxu0
      %v2936 = vadd.f32 %v2853, %v2935
      %v2937 = vpop.f32.mrb[0].mxu0
      %v2938 = vadd.f32 %v2855, %v2937
      %2939 = vmatprep.mubr.f32.mxu0 0.0
      %2940 = vmatmul.mubr.f32.gmra.mrb[0].mxu0 %v2781
      %v2941 = vpop.f32.mrb[0].mxu0
      %v2942 = vadd.f32 %v2859, %v2941
      %v2943 = vpop.f32.mrb[0].mxu0
      %v2944 = vadd.f32 %v2861, %v2943
      %2945 = vmatprep.mubr.f32.mxu0 0.0
      %2946 = vmatmul.mubr.f32.gmra.mrb[0].mxu0 %v2784
      %v2947 = vpop.f32.mrb[0].mxu0
      %v2948 = vadd.f32 %v2865, %v2947
      %v2949 = vpop.f32.mrb[0].mxu0
      %v2950 = vadd.f32 %v2867, %v2949
      %2951 = vdwg.mxu0
      %2952 = vmatprep.subr.mxu0 0.0
      %2953 = vmatpush1.msra.mxu0 %v2230
      %2954 = vmatprep.subr.mxu0 0.0
      %2955 = vmatpush1.msra.mxu0 %v2233
      %2956 = vmatprep.subr.mxu0 0.0
      %2957 = vmatpush1.msra.mxu0 %v2236
      %2958 = vmatprep.subr.mxu0 0.0
      %2959 = vmatpush1.msra.mxu0 %v2239
      %2960 = vmatprep.subr.mxu0 0.0
      %2961 = vmatpush1.msra.mxu0 %v2242
      %2962 = vmatprep.subr.mxu0 0.0
      %2963 = vmatpush1.msra.mxu0 %v2245
      %2964 = vmatprep.subr.mxu0 0.0
      %2965 = vmatpush1.msra.mxu0 %v2248
      %2966 = vmatprep.subr.mxu0 0.0
      %2967 = vmatpush1.msra.mxu0 %v2251
      %2968 = vmatprep.subr.mxu0 0.0
      %2969 = vmatpush1.msra.mxu0 %v2254
      %2970 = vmatprep.subr.mxu0 0.0
      %2971 = vmatpush1.msra.mxu0 %v2257
      %2972 = vmatprep.subr.mxu0 0.0
      %2973 = vmatpush1.msra.mxu0 %v2260
      %2974 = vmatprep.subr.mxu0 0.0
      %2975 = vmatpush1.msra.mxu0 %v2263
      %2976 = vmatprep.subr.mxu0 0.0
      %2977 = vmatpush1.msra.mxu0 %v2266
      %2978 = vmatprep.subr.mxu0 0.0
      %2979 = vmatpush1.msra.mxu0 %v2269
      %2980 = vmatprep.subr.mxu0 0.0
      %2981 = vmatpush1.msra.mxu0 %v2272
      %2982 = vmatprep.subr.mxu0 0.0
      %2983 = vmatpush1.msra.mxu0 %v2275
      %2984 = vmatprep.subr.mxu0 0.0
      %2985 = vmatpush1.msra.mxu0 %v2278
      %2986 = vmatprep.subr.mxu0 0.0
      %2987 = vmatpush1.msra.mxu0 %v2281
      %2988 = vmatprep.subr.mxu0 0.0
      %2989 = vmatpush1.msra.mxu0 %v2284
      %2990 = vmatprep.subr.mxu0 0.0
      %2991 = vmatpush1.msra.mxu0 %v2287
      %2992 = vmatprep.subr.mxu0 0.0
      %2993 = vmatpush1.msra.mxu0 %v2290
      %2994 = vmatprep.subr.mxu0 0.0
      %2995 = vmatpush1.msra.mxu0 %v2293
      %2996 = vmatprep.subr.mxu0 0.0
      %2997 = vmatpush1.msra.mxu0 %v2296
      %2998 = vmatprep.subr.mxu0 0.0
      %2999 = vmatpush1.msra.mxu0 %v2299
      %3000 = vmatprep.subr.mxu0 0.0
      %3001 = vmatpush1.msra.mxu0 %v2302
      %3002 = vmatprep.subr.mxu0 0.0
      %3003 = vmatpush1.msra.mxu0 %v2305
      %3004 = vmatprep.subr.mxu0 0.0
      %3005 = vmatpush1.msra.mxu0 %v2308
      %3006 = vmatprep.subr.mxu0 0.0
      %3007 = vmatpush1.msra.mxu0 %v2311
      %3008 = vmatprep.subr.mxu0 0.0
      %3009 = vmatpush1.msra.mxu0 %v2314
      %3010 = vmatprep.subr.mxu0 0.0
      %3011 = vmatpush1.msra.mxu0 %v2317
      %3012 = vmatprep.subr.mxu0 0.0
      %3013 = vmatpush1.msra.mxu0 %v2320
      %3014 = vmatprep.subr.mxu0 0.0
      %3015 = vmatpush1.msra.mxu0 %v2323
      %3016 = vmatprep.mubr.f32.mxu0 %v2220
      %3017 = vmatmul.mubr.f32.gmra.mrb[0].mxu0 %v2219
      %v3018 = vpop.f32.mrb[0].mxu0
      %v3019 = vadd.f32 %v2764, %v3018
      %v3020 = vpop.f32.mrb[0].mxu0
      %3021 = vmatprep.mubr.f32.mxu0 %v2223
      %3022 = vmatmul.mubr.f32.gmra.mrb[0].mxu0 %v2222
      %v3023 = vpop.f32.mrb[0].mxu0
      %v3024 = vadd.f32 %v2769, %v3023
      %v3025 = vpop.f32.mrb[0].mxu0
      %3026 = vmatprep.mubr.f32.mxu0 %v2226
      %3027 = vmatmul.mubr.f32.gmra.mrb[0].mxu0 %v2225
      %v3028 = vpop.f32.mrb[0].mxu0
      %v3029 = vadd.f32 %v2774, %v3028
      %v3030 = vpop.f32.mrb[0].mxu0
      %3031 = vdwg.mxu0
      %3032 = vmatprep.subr.mxu0 0.0
      %3033 = vmatpush1.msra.mxu0 %v2326
      %3034 = vmatprep.subr.mxu0 0.0
      %3035 = vmatpush1.msra.mxu0 %v2329
      %3036 = vmatprep.subr.mxu0 0.0
      %3037 = vmatpush1.msra.mxu0 0.0
      %3038 = vmatprep.subr.mxu0 0.0
      %3039 = vmatpush1.msra.mxu0 0.0
      %3040 = vmatprep.subr.mxu0 0.0
      %3041 = vmatpush1.msra.mxu0 0.0
      %3042 = vmatprep.subr.mxu0 0.0
      %3043 = vmatpush1.msra.mxu0 0.0
      %3044 = vmatprep.subr.mxu0 0.0
      %3045 = vmatpush1.msra.mxu0 0.0
      %3046 = vmatprep.subr.mxu0 0.0
      %3047 = vmatpush1.msra.mxu0 0.0
      %3048 = vmatprep.subr.mxu0 0.0
      %3049 = vmatpush1.msra.mxu0 0.0
      %3050 = vmatprep.subr.mxu0 0.0
      %3051 = vmatpush1.msra.mxu0 0.0
      %3052 = vmatprep.subr.mxu0 0.0
      %3053 = vmatpush1.msra.mxu0 0.0
      %3054 = vmatprep.subr.mxu0 0.0
      %3055 = vmatpush1.msra.mxu0 0.0
      %3056 = vmatprep.subr.mxu0 0.0
      %3057 = vmatpush1.msra.mxu0 0.0
      %3058 = vmatprep.subr.mxu0 0.0
      %3059 = vmatpush1.msra.mxu0 0.0
      %3060 = vmatprep.subr.mxu0 0.0
      %3061 = vmatpush1.msra.mxu0 0.0
      %3062 = vmatprep.subr.mxu0 0.0
      %3063 = vmatpush1.msra.mxu0 0.0
      %3064 = vmatprep.subr.mxu0 0.0
      %3065 = vmatpush1.msra.mxu0 0.0
      %3066 = vmatprep.subr.mxu0 0.0
      %3067 = vmatpush1.msra.mxu0 0.0
      %3068 = vmatprep.subr.mxu0 0.0
      %3069 = vmatpush1.msra.mxu0 0.0
      %3070 = vmatprep.subr.mxu0 0.0
      %3071 = vmatpush1.msra.mxu0 0.0
      %3072 = vmatprep.subr.mxu0 0.0
      %3073 = vmatpush1.msra.mxu0 0.0
      %3074 = vmatprep.subr.mxu0 0.0
      %3075 = vmatpush1.msra.mxu0 0.0
      %3076 = vmatprep.subr.mxu0 0.0
      %3077 = vmatpush1.msra.mxu0 0.0
      %3078 = vmatprep.subr.mxu0 0.0
      %3079 = vmatpush1.msra.mxu0 0.0
      %3080 = vmatprep.subr.mxu0 0.0
      %3081 = vmatpush1.msra.mxu0 0.0
      %3082 = vmatprep.subr.mxu0 0.0
      %3083 = vmatpush1.msra.mxu0 0.0
      %3084 = vmatprep.subr.mxu0 0.0
      %3085 = vmatpush1.msra.mxu0 0.0
      %3086 = vmatprep.subr.mxu0 0.0
      %3087 = vmatpush1.msra.mxu0 0.0
      %3088 = vmatprep.subr.mxu0 0.0
      %3089 = vmatpush1.msra.mxu0 0.0
      %3090 = vmatprep.subr.mxu0 0.0
      %3091 = vmatpush1.msra.mxu0 0.0
      %3092 = vmatprep.subr.mxu0 0.0
      %3093 = vmatpush1.msra.mxu0 0.0
      %3094 = vmatprep.subr.mxu0 0.0
      %3095 = vmatpush1.msra.mxu0 0.0
      %3096 = vmatprep.mubr.f32.mxu0 0.0
      %3097 = vmatmul.mubr.f32.gmra.mrb[0].mxu0 %v2778
      %v3098 = vpop.f32.mrb[0].mxu0
      %v3099 = vadd.f32 %v3019, %v3098
      %v3100 = vpop.f32.mrb[0].mxu0
      %3101 = vmatprep.mubr.f32.mxu0 0.0
      %3102 = vmatmul.mubr.f32.gmra.mrb[0].mxu0 %v2781
      %v3103 = vpop.f32.mrb[0].mxu0
      %v3104 = vadd.f32 %v3024, %v3103
      %v3105 = vpop.f32.mrb[0].mxu0
      %3106 = vmatprep.mubr.f32.mxu0 0.0
      %3107 = vmatmul.mubr.f32.gmra.mrb[0].mxu0 %v2784
      %v3108 = vpop.f32.mrb[0].mxu0
      %v3109 = vadd.f32 %v3029, %v3108
      %v3110 = vpop.f32.mrb[0].mxu0
      %3111 = vdwg.mxu0
      %v3112 = vld [vmem:[%s6] sm:$0x7]
      %v3114 = vlaneseq
      %v3115 = vshrl.u32 %v3114, 7
      %v3116 = vsub.s32 0, %v3115
      %v3117 = vrot.slane %v3112, %v3116
      %v3118 = vlaneseq
      %v3119 = vshrl.u32 %v3118, 7
      %v3120 = vsub.s32 1, %v3119
      %v3121 = vrot.slane %v3112, %v3120
      %v3122 = vlaneseq
      %v3123 = vshrl.u32 %v3122, 7
      %v3124 = vsub.s32 2, %v3123
      %v3125 = vrot.slane %v3112, %v3124
      %v3129 = vadd.f32 %v2936, %v3117
      %v3130 = vadd.f32 %v2938, %v3121
      %v3131 = vadd.f32 %v3099, %v3125
      %v3132 = vadd.f32 %v2942, %v3117
      %v3133 = vadd.f32 %v2944, %v3121
      %v3134 = vadd.f32 %v3104, %v3125
      %v3135 = vadd.f32 %v2948, %v3117
      %v3136 = vadd.f32 %v2950, %v3121
      %v3137 = vadd.f32 %v3109, %v3125
      %v3139 = vsel %vm1373, %v1711, 0
      %v3142 = vsel %vm1373, %v1714, 0
      %v3145 = vsel %vm1373, %v1717, 0
      %3147 = vmatprep.subr.mxu0 %v2341
      %3148 = vmatpush1.msra.mxu0 %v2340
      %3149 = vmatprep.subr.mxu0 %v2344
      %3150 = vmatpush1.msra.mxu0 %v2343
      %3151 = vmatprep.subr.mxu0 %v2347
      %3152 = vmatpush1.msra.mxu0 %v2346
      %3153 = vmatprep.subr.mxu0 %v2350
      %3154 = vmatpush1.msra.mxu0 %v2349
      %3155 = vmatprep.subr.mxu0 %v2353
      %3156 = vmatpush1.msra.mxu0 %v2352
      %3157 = vmatprep.subr.mxu0 %v2356
      %3158 = vmatpush1.msra.mxu0 %v2355
      %3159 = vmatprep.subr.mxu0 %v2359
      %3160 = vmatpush1.msra.mxu0 %v2358
      %3161 = vmatprep.subr.mxu0 %v2362
      %3162 = vmatpush1.msra.mxu0 %v2361
      %3163 = vmatprep.subr.mxu0 %v2365
      %3164 = vmatpush1.msra.mxu0 %v2364
      %3165 = vmatprep.subr.mxu0 %v2368
      %3166 = vmatpush1.msra.mxu0 %v2367
      %3167 = vmatprep.subr.mxu0 %v2371
      %3168 = vmatpush1.msra.mxu0 %v2370
      %3169 = vmatprep.subr.mxu0 %v2374
      %3170 = vmatpush1.msra.mxu0 %v2373
      %3171 = vmatprep.subr.mxu0 %v2377
      %3172 = vmatpush1.msra.mxu0 %v2376
      %3173 = vmatprep.subr.mxu0 %v2380
      %3174 = vmatpush1.msra.mxu0 %v2379
      %3175 = vmatprep.subr.mxu0 %v2383
      %3176 = vmatpush1.msra.mxu0 %v2382
      %3177 = vmatprep.subr.mxu0 %v2386
      %3178 = vmatpush1.msra.mxu0 %v2385
      %3179 = vmatprep.subr.mxu0 %v2389
      %3180 = vmatpush1.msra.mxu0 %v2388
      %3181 = vmatprep.subr.mxu0 %v2392
      %3182 = vmatpush1.msra.mxu0 %v2391
      %3183 = vmatprep.subr.mxu0 %v2395
      %3184 = vmatpush1.msra.mxu0 %v2394
      %3185 = vmatprep.subr.mxu0 %v2398
      %3186 = vmatpush1.msra.mxu0 %v2397
      %3187 = vmatprep.subr.mxu0 %v2401
      %3188 = vmatpush1.msra.mxu0 %v2400
      %3189 = vmatprep.subr.mxu0 %v2404
      %3190 = vmatpush1.msra.mxu0 %v2403
      %3191 = vmatprep.subr.mxu0 %v2407
      %3192 = vmatpush1.msra.mxu0 %v2406
      %3193 = vmatprep.subr.mxu0 %v2410
      %3194 = vmatpush1.msra.mxu0 %v2409
      %3195 = vmatprep.subr.mxu0 %v2413
      %3196 = vmatpush1.msra.mxu0 %v2412
      %3197 = vmatprep.subr.mxu0 %v2416
      %3198 = vmatpush1.msra.mxu0 %v2415
      %3199 = vmatprep.subr.mxu0 %v2419
      %3200 = vmatpush1.msra.mxu0 %v2418
      %3201 = vmatprep.subr.mxu0 %v2422
      %3202 = vmatpush1.msra.mxu0 %v2421
      %3203 = vmatprep.subr.mxu0 %v2425
      %3204 = vmatpush1.msra.mxu0 %v2424
      %3205 = vmatprep.subr.mxu0 %v2428
      %3206 = vmatpush1.msra.mxu0 %v2427
      %3207 = vmatprep.subr.mxu0 %v2431
      %3208 = vmatpush1.msra.mxu0 %v2430
      %3209 = vmatprep.subr.mxu0 %v2434
      %3210 = vmatpush1.msra.mxu0 %v2433
      %3211 = vmatprep.mubr.f32.mxu0 %v1710
      %3212 = vmatmul.mubr.f32.gmra.mrb[0].mxu0 %v1709
      %v3213 = vpop.f32.mrb[0].mxu0
      %v3214 = vadd.f32 0.0, %v3213
      %v3215 = vpop.f32.mrb[0].mxu0
      %v3216 = vadd.f32 0.0, %v3215
      %3217 = vmatprep.mubr.f32.mxu0 %v1713
      %3218 = vmatmul.mubr.f32.gmra.mrb[0].mxu0 %v1712
      %v3219 = vpop.f32.mrb[0].mxu0
      %v3220 = vadd.f32 0.0, %v3219
      %v3221 = vpop.f32.mrb[0].mxu0
      %v3222 = vadd.f32 0.0, %v3221
      %3223 = vmatprep.mubr.f32.mxu0 %v1716
      %3224 = vmatmul.mubr.f32.gmra.mrb[0].mxu0 %v1715
      %v3225 = vpop.f32.mrb[0].mxu0
      %v3226 = vadd.f32 0.0, %v3225
      %v3227 = vpop.f32.mrb[0].mxu0
      %v3228 = vadd.f32 0.0, %v3227
      %3229 = vdwg.mxu0
      %3230 = vmatprep.subr.mxu0 %v2437
      %3231 = vmatpush1.msra.mxu0 %v2436
      %3232 = vmatprep.subr.mxu0 %v2440
      %3233 = vmatpush1.msra.mxu0 %v2439
      %3234 = vmatprep.subr.mxu0 0.0
      %3235 = vmatpush1.msra.mxu0 0.0
      %3236 = vmatprep.subr.mxu0 0.0
      %3237 = vmatpush1.msra.mxu0 0.0
      %3238 = vmatprep.subr.mxu0 0.0
      %3239 = vmatpush1.msra.mxu0 0.0
      %3240 = vmatprep.subr.mxu0 0.0
      %3241 = vmatpush1.msra.mxu0 0.0
      %3242 = vmatprep.subr.mxu0 0.0
      %3243 = vmatpush1.msra.mxu0 0.0
      %3244 = vmatprep.subr.mxu0 0.0
      %3245 = vmatpush1.msra.mxu0 0.0
      %3246 = vmatprep.subr.mxu0 0.0
      %3247 = vmatpush1.msra.mxu0 0.0
      %3248 = vmatprep.subr.mxu0 0.0
      %3249 = vmatpush1.msra.mxu0 0.0
      %3250 = vmatprep.subr.mxu0 0.0
      %3251 = vmatpush1.msra.mxu0 0.0
      %3252 = vmatprep.subr.mxu0 0.0
      %3253 = vmatpush1.msra.mxu0 0.0
      %3254 = vmatprep.subr.mxu0 0.0
      %3255 = vmatpush1.msra.mxu0 0.0
      %3256 = vmatprep.subr.mxu0 0.0
      %3257 = vmatpush1.msra.mxu0 0.0
      %3258 = vmatprep.subr.mxu0 0.0
      %3259 = vmatpush1.msra.mxu0 0.0
      %3260 = vmatprep.subr.mxu0 0.0
      %3261 = vmatpush1.msra.mxu0 0.0
      %3262 = vmatprep.subr.mxu0 0.0
      %3263 = vmatpush1.msra.mxu0 0.0
      %3264 = vmatprep.subr.mxu0 0.0
      %3265 = vmatpush1.msra.mxu0 0.0
      %3266 = vmatprep.subr.mxu0 0.0
      %3267 = vmatpush1.msra.mxu0 0.0
      %3268 = vmatprep.subr.mxu0 0.0
      %3269 = vmatpush1.msra.mxu0 0.0
      %3270 = vmatprep.subr.mxu0 0.0
      %3271 = vmatpush1.msra.mxu0 0.0
      %3272 = vmatprep.subr.mxu0 0.0
      %3273 = vmatpush1.msra.mxu0 0.0
      %3274 = vmatprep.subr.mxu0 0.0
      %3275 = vmatpush1.msra.mxu0 0.0
      %3276 = vmatprep.subr.mxu0 0.0
      %3277 = vmatpush1.msra.mxu0 0.0
      %3278 = vmatprep.subr.mxu0 0.0
      %3279 = vmatpush1.msra.mxu0 0.0
      %3280 = vmatprep.subr.mxu0 0.0
      %3281 = vmatpush1.msra.mxu0 0.0
      %3282 = vmatprep.subr.mxu0 0.0
      %3283 = vmatpush1.msra.mxu0 0.0
      %3284 = vmatprep.subr.mxu0 0.0
      %3285 = vmatpush1.msra.mxu0 0.0
      %3286 = vmatprep.subr.mxu0 0.0
      %3287 = vmatpush1.msra.mxu0 0.0
      %3288 = vmatprep.subr.mxu0 0.0
      %3289 = vmatpush1.msra.mxu0 0.0
      %3290 = vmatprep.subr.mxu0 0.0
      %3291 = vmatpush1.msra.mxu0 0.0
      %3292 = vmatprep.subr.mxu0 0.0
      %3293 = vmatpush1.msra.mxu0 0.0
      %3294 = vmatprep.mubr.f32.mxu0 0.0
      %3295 = vmatmul.mubr.f32.gmra.mrb[0].mxu0 %v3139
      %v3296 = vpop.f32.mrb[0].mxu0
      %v3297 = vadd.f32 %v3214, %v3296
      %v3298 = vpop.f32.mrb[0].mxu0
      %v3299 = vadd.f32 %v3216, %v3298
      %3300 = vmatprep.mubr.f32.mxu0 0.0
      %3301 = vmatmul.mubr.f32.gmra.mrb[0].mxu0 %v3142
      %v3302 = vpop.f32.mrb[0].mxu0
      %v3303 = vadd.f32 %v3220, %v3302
      %v3304 = vpop.f32.mrb[0].mxu0
      %v3305 = vadd.f32 %v3222, %v3304
      %3306 = vmatprep.mubr.f32.mxu0 0.0
      %3307 = vmatmul.mubr.f32.gmra.mrb[0].mxu0 %v3145
      %v3308 = vpop.f32.mrb[0].mxu0
      %v3309 = vadd.f32 %v3226, %v3308
      %v3310 = vpop.f32.mrb[0].mxu0
      %v3311 = vadd.f32 %v3228, %v3310
      %3312 = vdwg.mxu0
      %3313 = vmatprep.subr.mxu0 0.0
      %3314 = vmatpush1.msra.mxu0 %v2342
      %3315 = vmatprep.subr.mxu0 0.0
      %3316 = vmatpush1.msra.mxu0 %v2345
      %3317 = vmatprep.subr.mxu0 0.0
      %3318 = vmatpush1.msra.mxu0 %v2348
      %3319 = vmatprep.subr.mxu0 0.0
      %3320 = vmatpush1.msra.mxu0 %v2351
      %3321 = vmatprep.subr.mxu0 0.0
      %3322 = vmatpush1.msra.mxu0 %v2354
      %3323 = vmatprep.subr.mxu0 0.0
      %3324 = vmatpush1.msra.mxu0 %v2357
      %3325 = vmatprep.subr.mxu0 0.0
      %3326 = vmatpush1.msra.mxu0 %v2360
      %3327 = vmatprep.subr.mxu0 0.0
      %3328 = vmatpush1.msra.mxu0 %v2363
      %3329 = vmatprep.subr.mxu0 0.0
      %3330 = vmatpush1.msra.mxu0 %v2366
      %3331 = vmatprep.subr.mxu0 0.0
      %3332 = vmatpush1.msra.mxu0 %v2369
      %3333 = vmatprep.subr.mxu0 0.0
      %3334 = vmatpush1.msra.mxu0 %v2372
      %3335 = vmatprep.subr.mxu0 0.0
      %3336 = vmatpush1.msra.mxu0 %v2375
      %3337 = vmatprep.subr.mxu0 0.0
      %3338 = vmatpush1.msra.mxu0 %v2378
      %3339 = vmatprep.subr.mxu0 0.0
      %3340 = vmatpush1.msra.mxu0 %v2381
      %3341 = vmatprep.subr.mxu0 0.0
      %3342 = vmatpush1.msra.mxu0 %v2384
      %3343 = vmatprep.subr.mxu0 0.0
      %3344 = vmatpush1.msra.mxu0 %v2387
      %3345 = vmatprep.subr.mxu0 0.0
      %3346 = vmatpush1.msra.mxu0 %v2390
      %3347 = vmatprep.subr.mxu0 0.0
      %3348 = vmatpush1.msra.mxu0 %v2393
      %3349 = vmatprep.subr.mxu0 0.0
      %3350 = vmatpush1.msra.mxu0 %v2396
      %3351 = vmatprep.subr.mxu0 0.0
      %3352 = vmatpush1.msra.mxu0 %v2399
      %3353 = vmatprep.subr.mxu0 0.0
      %3354 = vmatpush1.msra.mxu0 %v2402
      %3355 = vmatprep.subr.mxu0 0.0
      %3356 = vmatpush1.msra.mxu0 %v2405
      %3357 = vmatprep.subr.mxu0 0.0
      %3358 = vmatpush1.msra.mxu0 %v2408
      %3359 = vmatprep.subr.mxu0 0.0
      %3360 = vmatpush1.msra.mxu0 %v2411
      %3361 = vmatprep.subr.mxu0 0.0
      %3362 = vmatpush1.msra.mxu0 %v2414
      %3363 = vmatprep.subr.mxu0 0.0
      %3364 = vmatpush1.msra.mxu0 %v2417
      %3365 = vmatprep.subr.mxu0 0.0
      %3366 = vmatpush1.msra.mxu0 %v2420
      %3367 = vmatprep.subr.mxu0 0.0
      %3368 = vmatpush1.msra.mxu0 %v2423
      %3369 = vmatprep.subr.mxu0 0.0
      %3370 = vmatpush1.msra.mxu0 %v2426
      %3371 = vmatprep.subr.mxu0 0.0
      %3372 = vmatpush1.msra.mxu0 %v2429
      %3373 = vmatprep.subr.mxu0 0.0
      %3374 = vmatpush1.msra.mxu0 %v2432
      %3375 = vmatprep.subr.mxu0 0.0
      %3376 = vmatpush1.msra.mxu0 %v2435
      %3377 = vmatprep.mubr.f32.mxu0 %v1710
      %3378 = vmatmul.mubr.f32.gmra.mrb[0].mxu0 %v1709
      %v3379 = vpop.f32.mrb[0].mxu0
      %v3380 = vadd.f32 0.0, %v3379
      %v3381 = vpop.f32.mrb[0].mxu0
      %3382 = vmatprep.mubr.f32.mxu0 %v1713
      %3383 = vmatmul.mubr.f32.gmra.mrb[0].mxu0 %v1712
      %v3384 = vpop.f32.mrb[0].mxu0
      %v3385 = vadd.f32 0.0, %v3384
      %v3386 = vpop.f32.mrb[0].mxu0
      %3387 = vmatprep.mubr.f32.mxu0 %v1716
      %3388 = vmatmul.mubr.f32.gmra.mrb[0].mxu0 %v1715
      %v3389 = vpop.f32.mrb[0].mxu0
      %v3390 = vadd.f32 0.0, %v3389
      %v3391 = vpop.f32.mrb[0].mxu0
      %3392 = vdwg.mxu0
      %3393 = vmatprep.subr.mxu0 0.0
      %3394 = vmatpush1.msra.mxu0 %v2438
      %3395 = vmatprep.subr.mxu0 0.0
      %3396 = vmatpush1.msra.mxu0 %v2441
      %3397 = vmatprep.subr.mxu0 0.0
      %3398 = vmatpush1.msra.mxu0 0.0
      %3399 = vmatprep.subr.mxu0 0.0
      %3400 = vmatpush1.msra.mxu0 0.0
      %3401 = vmatprep.subr.mxu0 0.0
      %3402 = vmatpush1.msra.mxu0 0.0
      %3403 = vmatprep.subr.mxu0 0.0
      %3404 = vmatpush1.msra.mxu0 0.0
      %3405 = vmatprep.subr.mxu0 0.0
      %3406 = vmatpush1.msra.mxu0 0.0
      %3407 = vmatprep.subr.mxu0 0.0
      %3408 = vmatpush1.msra.mxu0 0.0
      %3409 = vmatprep.subr.mxu0 0.0
      %3410 = vmatpush1.msra.mxu0 0.0
      %3411 = vmatprep.subr.mxu0 0.0
      %3412 = vmatpush1.msra.mxu0 0.0
      %3413 = vmatprep.subr.mxu0 0.0
      %3414 = vmatpush1.msra.mxu0 0.0
      %3415 = vmatprep.subr.mxu0 0.0
      %3416 = vmatpush1.msra.mxu0 0.0
      %3417 = vmatprep.subr.mxu0 0.0
      %3418 = vmatpush1.msra.mxu0 0.0
      %3419 = vmatprep.subr.mxu0 0.0
      %3420 = vmatpush1.msra.mxu0 0.0
      %3421 = vmatprep.subr.mxu0 0.0
      %3422 = vmatpush1.msra.mxu0 0.0
      %3423 = vmatprep.subr.mxu0 0.0
      %3424 = vmatpush1.msra.mxu0 0.0
      %3425 = vmatprep.subr.mxu0 0.0
      %3426 = vmatpush1.msra.mxu0 0.0
      %3427 = vmatprep.subr.mxu0 0.0
      %3428 = vmatpush1.msra.mxu0 0.0
      %3429 = vmatprep.subr.mxu0 0.0
      %3430 = vmatpush1.msra.mxu0 0.0
      %3431 = vmatprep.subr.mxu0 0.0
      %3432 = vmatpush1.msra.mxu0 0.0
      %3433 = vmatprep.subr.mxu0 0.0
      %3434 = vmatpush1.msra.mxu0 0.0
      %3435 = vmatprep.subr.mxu0 0.0
      %3436 = vmatpush1.msra.mxu0 0.0
      %3437 = vmatprep.subr.mxu0 0.0
      %3438 = vmatpush1.msra.mxu0 0.0
      %3439 = vmatprep.subr.mxu0 0.0
      %3440 = vmatpush1.msra.mxu0 0.0
      %3441 = vmatprep.subr.mxu0 0.0
      %3442 = vmatpush1.msra.mxu0 0.0
      %3443 = vmatprep.subr.mxu0 0.0
      %3444 = vmatpush1.msra.mxu0 0.0
      %3445 = vmatprep.subr.mxu0 0.0
      %3446 = vmatpush1.msra.mxu0 0.0
      %3447 = vmatprep.subr.mxu0 0.0
      %3448 = vmatpush1.msra.mxu0 0.0
      %3449 = vmatprep.subr.mxu0 0.0
      %3450 = vmatpush1.msra.mxu0 0.0
      %3451 = vmatprep.subr.mxu0 0.0
      %3452 = vmatpush1.msra.mxu0 0.0
      %3453 = vmatprep.subr.mxu0 0.0
      %3454 = vmatpush1.msra.mxu0 0.0
      %3455 = vmatprep.subr.mxu0 0.0
      %3456 = vmatpush1.msra.mxu0 0.0
      %3457 = vmatprep.mubr.f32.mxu0 0.0
      %3458 = vmatmul.mubr.f32.gmra.mrb[0].mxu0 %v3139
      %v3459 = vpop.f32.mrb[0].mxu0
      %v3460 = vadd.f32 %v3380, %v3459
      %v3461 = vpop.f32.mrb[0].mxu0
      %3462 = vmatprep.mubr.f32.mxu0 0.0
      %3463 = vmatmul.mubr.f32.gmra.mrb[0].mxu0 %v3142
      %v3464 = vpop.f32.mrb[0].mxu0
      %v3465 = vadd.f32 %v3385, %v3464
      %v3466 = vpop.f32.mrb[0].mxu0
      %3467 = vmatprep.mubr.f32.mxu0 0.0
      %3468 = vmatmul.mubr.f32.gmra.mrb[0].mxu0 %v3145
      %v3469 = vpop.f32.mrb[0].mxu0
      %v3470 = vadd.f32 %v3390, %v3469
      %v3471 = vpop.f32.mrb[0].mxu0
      %3472 = vdwg.mxu0
      %v3473 = vsel %vm1373, %v2149, 0
      %v3475 = vsel %vm1373, %v2152, 0
      %v3477 = vsel %vm1373, %v2155, 0
      %3479 = vmatprep.subr.mxu0 %v2229
      %3480 = vmatpush1.msra.mxu0 %v2228
      %3481 = vmatprep.subr.mxu0 %v2232
      %3482 = vmatpush1.msra.mxu0 %v2231
      %3483 = vmatprep.subr.mxu0 %v2235
      %3484 = vmatpush1.msra.mxu0 %v2234
      %3485 = vmatprep.subr.mxu0 %v2238
      %3486 = vmatpush1.msra.mxu0 %v2237
      %3487 = vmatprep.subr.mxu0 %v2241
      %3488 = vmatpush1.msra.mxu0 %v2240
      %3489 = vmatprep.subr.mxu0 %v2244
      %3490 = vmatpush1.msra.mxu0 %v2243
      %3491 = vmatprep.subr.mxu0 %v2247
      %3492 = vmatpush1.msra.mxu0 %v2246
      %3493 = vmatprep.subr.mxu0 %v2250
      %3494 = vmatpush1.msra.mxu0 %v2249
      %3495 = vmatprep.subr.mxu0 %v2253
      %3496 = vmatpush1.msra.mxu0 %v2252
      %3497 = vmatprep.subr.mxu0 %v2256
      %3498 = vmatpush1.msra.mxu0 %v2255
      %3499 = vmatprep.subr.mxu0 %v2259
      %3500 = vmatpush1.msra.mxu0 %v2258
      %3501 = vmatprep.subr.mxu0 %v2262
      %3502 = vmatpush1.msra.mxu0 %v2261
      %3503 = vmatprep.subr.mxu0 %v2265
      %3504 = vmatpush1.msra.mxu0 %v2264
      %3505 = vmatprep.subr.mxu0 %v2268
      %3506 = vmatpush1.msra.mxu0 %v2267
      %3507 = vmatprep.subr.mxu0 %v2271
      %3508 = vmatpush1.msra.mxu0 %v2270
      %3509 = vmatprep.subr.mxu0 %v2274
      %3510 = vmatpush1.msra.mxu0 %v2273
      %3511 = vmatprep.subr.mxu0 %v2277
      %3512 = vmatpush1.msra.mxu0 %v2276
      %3513 = vmatprep.subr.mxu0 %v2280
      %3514 = vmatpush1.msra.mxu0 %v2279
      %3515 = vmatprep.subr.mxu0 %v2283
      %3516 = vmatpush1.msra.mxu0 %v2282
      %3517 = vmatprep.subr.mxu0 %v2286
      %3518 = vmatpush1.msra.mxu0 %v2285
      %3519 = vmatprep.subr.mxu0 %v2289
      %3520 = vmatpush1.msra.mxu0 %v2288
      %3521 = vmatprep.subr.mxu0 %v2292
      %3522 = vmatpush1.msra.mxu0 %v2291
      %3523 = vmatprep.subr.mxu0 %v2295
      %3524 = vmatpush1.msra.mxu0 %v2294
      %3525 = vmatprep.subr.mxu0 %v2298
      %3526 = vmatpush1.msra.mxu0 %v2297
      %3527 = vmatprep.subr.mxu0 %v2301
      %3528 = vmatpush1.msra.mxu0 %v2300
      %3529 = vmatprep.subr.mxu0 %v2304
      %3530 = vmatpush1.msra.mxu0 %v2303
      %3531 = vmatprep.subr.mxu0 %v2307
      %3532 = vmatpush1.msra.mxu0 %v2306
      %3533 = vmatprep.subr.mxu0 %v2310
      %3534 = vmatpush1.msra.mxu0 %v2309
      %3535 = vmatprep.subr.mxu0 %v2313
      %3536 = vmatpush1.msra.mxu0 %v2312
      %3537 = vmatprep.subr.mxu0 %v2316
      %3538 = vmatpush1.msra.mxu0 %v2315
      %3539 = vmatprep.subr.mxu0 %v2319
      %3540 = vmatpush1.msra.mxu0 %v2318
      %3541 = vmatprep.subr.mxu0 %v2322
      %3542 = vmatpush1.msra.mxu0 %v2321
      %3543 = vmatprep.mubr.f32.mxu0 %v2148
      %3544 = vmatmul.mubr.f32.gmra.mrb[0].mxu0 %v2147
      %v3545 = vpop.f32.mrb[0].mxu0
      %v3546 = vadd.f32 %v3297, %v3545
      %v3547 = vpop.f32.mrb[0].mxu0
      %v3548 = vadd.f32 %v3299, %v3547
      %3549 = vmatprep.mubr.f32.mxu0 %v2151
      %3550 = vmatmul.mubr.f32.gmra.mrb[0].mxu0 %v2150
      %v3551 = vpop.f32.mrb[0].mxu0
      %v3552 = vadd.f32 %v3303, %v3551
      %v3553 = vpop.f32.mrb[0].mxu0
      %v3554 = vadd.f32 %v3305, %v3553
      %3555 = vmatprep.mubr.f32.mxu0 %v2154
      %3556 = vmatmul.mubr.f32.gmra.mrb[0].mxu0 %v2153
      %v3557 = vpop.f32.mrb[0].mxu0
      %v3558 = vadd.f32 %v3309, %v3557
      %v3559 = vpop.f32.mrb[0].mxu0
      %v3560 = vadd.f32 %v3311, %v3559
      %3561 = vdwg.mxu0
      %3562 = vmatprep.subr.mxu0 %v2325
      %3563 = vmatpush1.msra.mxu0 %v2324
      %3564 = vmatprep.subr.mxu0 %v2328
      %3565 = vmatpush1.msra.mxu0 %v2327
      %3566 = vmatprep.subr.mxu0 0.0
      %3567 = vmatpush1.msra.mxu0 0.0
      %3568 = vmatprep.subr.mxu0 0.0
      %3569 = vmatpush1.msra.mxu0 0.0
      %3570 = vmatprep.subr.mxu0 0.0
      %3571 = vmatpush1.msra.mxu0 0.0
      %3572 = vmatprep.subr.mxu0 0.0
      %3573 = vmatpush1.msra.mxu0 0.0
      %3574 = vmatprep.subr.mxu0 0.0
      %3575 = vmatpush1.msra.mxu0 0.0
      %3576 = vmatprep.subr.mxu0 0.0
      %3577 = vmatpush1.msra.mxu0 0.0
      %3578 = vmatprep.subr.mxu0 0.0
      %3579 = vmatpush1.msra.mxu0 0.0
      %3580 = vmatprep.subr.mxu0 0.0
      %3581 = vmatpush1.msra.mxu0 0.0
      %3582 = vmatprep.subr.mxu0 0.0
      %3583 = vmatpush1.msra.mxu0 0.0
      %3584 = vmatprep.subr.mxu0 0.0
      %3585 = vmatpush1.msra.mxu0 0.0
      %3586 = vmatprep.subr.mxu0 0.0
      %3587 = vmatpush1.msra.mxu0 0.0
      %3588 = vmatprep.subr.mxu0 0.0
      %3589 = vmatpush1.msra.mxu0 0.0
      %3590 = vmatprep.subr.mxu0 0.0
      %3591 = vmatpush1.msra.mxu0 0.0
      %3592 = vmatprep.subr.mxu0 0.0
      %3593 = vmatpush1.msra.mxu0 0.0
      %3594 = vmatprep.subr.mxu0 0.0
      %3595 = vmatpush1.msra.mxu0 0.0
      %3596 = vmatprep.subr.mxu0 0.0
      %3597 = vmatpush1.msra.mxu0 0.0
      %3598 = vmatprep.subr.mxu0 0.0
      %3599 = vmatpush1.msra.mxu0 0.0
      %3600 = vmatprep.subr.mxu0 0.0
      %3601 = vmatpush1.msra.mxu0 0.0
      %3602 = vmatprep.subr.mxu0 0.0
      %3603 = vmatpush1.msra.mxu0 0.0
      %3604 = vmatprep.subr.mxu0 0.0
      %3605 = vmatpush1.msra.mxu0 0.0
      %3606 = vmatprep.subr.mxu0 0.0
      %3607 = vmatpush1.msra.mxu0 0.0
      %3608 = vmatprep.subr.mxu0 0.0
      %3609 = vmatpush1.msra.mxu0 0.0
      %3610 = vmatprep.subr.mxu0 0.0
      %3611 = vmatpush1.msra.mxu0 0.0
      %3612 = vmatprep.subr.mxu0 0.0
      %3613 = vmatpush1.msra.mxu0 0.0
      %3614 = vmatprep.subr.mxu0 0.0
      %3615 = vmatpush1.msra.mxu0 0.0
      %3616 = vmatprep.subr.mxu0 0.0
      %3617 = vmatpush1.msra.mxu0 0.0
      %3618 = vmatprep.subr.mxu0 0.0
      %3619 = vmatpush1.msra.mxu0 0.0
      %3620 = vmatprep.subr.mxu0 0.0
      %3621 = vmatpush1.msra.mxu0 0.0
      %3622 = vmatprep.subr.mxu0 0.0
      %3623 = vmatpush1.msra.mxu0 0.0
      %3624 = vmatprep.subr.mxu0 0.0
      %3625 = vmatpush1.msra.mxu0 0.0
      %3626 = vmatprep.mubr.f32.mxu0 0.0
      %3627 = vmatmul.mubr.f32.gmra.mrb[0].mxu0 %v3473
      %v3628 = vpop.f32.mrb[0].mxu0
      %v3629 = vadd.f32 %v3546, %v3628
      %v3630 = vpop.f32.mrb[0].mxu0
      %v3631 = vadd.f32 %v3548, %v3630
      %3632 = vmatprep.mubr.f32.mxu0 0.0
      %3633 = vmatmul.mubr.f32.gmra.mrb[0].mxu0 %v3475
      %v3634 = vpop.f32.mrb[0].mxu0
      %v3635 = vadd.f32 %v3552, %v3634
      %v3636 = vpop.f32.mrb[0].mxu0
      %v3637 = vadd.f32 %v3554, %v3636
      %3638 = vmatprep.mubr.f32.mxu0 0.0
      %3639 = vmatmul.mubr.f32.gmra.mrb[0].mxu0 %v3477
      %v3640 = vpop.f32.mrb[0].mxu0
      %v3641 = vadd.f32 %v3558, %v3640
      %v3642 = vpop.f32.mrb[0].mxu0
      %v3643 = vadd.f32 %v3560, %v3642
      %3644 = vdwg.mxu0
      %3645 = vmatprep.subr.mxu0 0.0
      %3646 = vmatpush1.msra.mxu0 %v2230
      %3647 = vmatprep.subr.mxu0 0.0
      %3648 = vmatpush1.msra.mxu0 %v2233
      %3649 = vmatprep.subr.mxu0 0.0
      %3650 = vmatpush1.msra.mxu0 %v2236
      %3651 = vmatprep.subr.mxu0 0.0
      %3652 = vmatpush1.msra.mxu0 %v2239
      %3653 = vmatprep.subr.mxu0 0.0
      %3654 = vmatpush1.msra.mxu0 %v2242
      %3655 = vmatprep.subr.mxu0 0.0
      %3656 = vmatpush1.msra.mxu0 %v2245
      %3657 = vmatprep.subr.mxu0 0.0
      %3658 = vmatpush1.msra.mxu0 %v2248
      %3659 = vmatprep.subr.mxu0 0.0
      %3660 = vmatpush1.msra.mxu0 %v2251
      %3661 = vmatprep.subr.mxu0 0.0
      %3662 = vmatpush1.msra.mxu0 %v2254
      %3663 = vmatprep.subr.mxu0 0.0
      %3664 = vmatpush1.msra.mxu0 %v2257
      %3665 = vmatprep.subr.mxu0 0.0
      %3666 = vmatpush1.msra.mxu0 %v2260
      %3667 = vmatprep.subr.mxu0 0.0
      %3668 = vmatpush1.msra.mxu0 %v2263
      %3669 = vmatprep.subr.mxu0 0.0
      %3670 = vmatpush1.msra.mxu0 %v2266
      %3671 = vmatprep.subr.mxu0 0.0
      %3672 = vmatpush1.msra.mxu0 %v2269
      %3673 = vmatprep.subr.mxu0 0.0
      %3674 = vmatpush1.msra.mxu0 %v2272
      %3675 = vmatprep.subr.mxu0 0.0
      %3676 = vmatpush1.msra.mxu0 %v2275
      %3677 = vmatprep.subr.mxu0 0.0
      %3678 = vmatpush1.msra.mxu0 %v2278
      %3679 = vmatprep.subr.mxu0 0.0
      %3680 = vmatpush1.msra.mxu0 %v2281
      %3681 = vmatprep.subr.mxu0 0.0
      %3682 = vmatpush1.msra.mxu0 %v2284
      %3683 = vmatprep.subr.mxu0 0.0
      %3684 = vmatpush1.msra.mxu0 %v2287
      %3685 = vmatprep.subr.mxu0 0.0
      %3686 = vmatpush1.msra.mxu0 %v2290
      %3687 = vmatprep.subr.mxu0 0.0
      %3688 = vmatpush1.msra.mxu0 %v2293
      %3689 = vmatprep.subr.mxu0 0.0
      %3690 = vmatpush1.msra.mxu0 %v2296
      %3691 = vmatprep.subr.mxu0 0.0
      %3692 = vmatpush1.msra.mxu0 %v2299
      %3693 = vmatprep.subr.mxu0 0.0
      %3694 = vmatpush1.msra.mxu0 %v2302
      %3695 = vmatprep.subr.mxu0 0.0
      %3696 = vmatpush1.msra.mxu0 %v2305
      %3697 = vmatprep.subr.mxu0 0.0
      %3698 = vmatpush1.msra.mxu0 %v2308
      %3699 = vmatprep.subr.mxu0 0.0
      %3700 = vmatpush1.msra.mxu0 %v2311
      %3701 = vmatprep.subr.mxu0 0.0
      %3702 = vmatpush1.msra.mxu0 %v2314
      %3703 = vmatprep.subr.mxu0 0.0
      %3704 = vmatpush1.msra.mxu0 %v2317
      %3705 = vmatprep.subr.mxu0 0.0
      %3706 = vmatpush1.msra.mxu0 %v2320
      %3707 = vmatprep.subr.mxu0 0.0
      %3708 = vmatpush1.msra.mxu0 %v2323
      %3709 = vmatprep.mubr.f32.mxu0 %v2148
      %3710 = vmatmul.mubr.f32.gmra.mrb[0].mxu0 %v2147
      %v3711 = vpop.f32.mrb[0].mxu0
      %v3712 = vadd.f32 %v3460, %v3711
      %v3713 = vpop.f32.mrb[0].mxu0
      %3714 = vmatprep.mubr.f32.mxu0 %v2151
      %3715 = vmatmul.mubr.f32.gmra.mrb[0].mxu0 %v2150
      %v3716 = vpop.f32.mrb[0].mxu0
      %v3717 = vadd.f32 %v3465, %v3716
      %v3718 = vpop.f32.mrb[0].mxu0
      %3719 = vmatprep.mubr.f32.mxu0 %v2154
      %3720 = vmatmul.mubr.f32.gmra.mrb[0].mxu0 %v2153
      %v3721 = vpop.f32.mrb[0].mxu0
      %v3722 = vadd.f32 %v3470, %v3721
      %v3723 = vpop.f32.mrb[0].mxu0
      %3724 = vdwg.mxu0
      %3725 = vmatprep.subr.mxu0 0.0
      %3726 = vmatpush1.msra.mxu0 %v2326
      %3727 = vmatprep.subr.mxu0 0.0
      %3728 = vmatpush1.msra.mxu0 %v2329
      %3729 = vmatprep.subr.mxu0 0.0
      %3730 = vmatpush1.msra.mxu0 0.0
      %3731 = vmatprep.subr.mxu0 0.0
      %3732 = vmatpush1.msra.mxu0 0.0
      %3733 = vmatprep.subr.mxu0 0.0
      %3734 = vmatpush1.msra.mxu0 0.0
      %3735 = vmatprep.subr.mxu0 0.0
      %3736 = vmatpush1.msra.mxu0 0.0
      %3737 = vmatprep.subr.mxu0 0.0
      %3738 = vmatpush1.msra.mxu0 0.0
      %3739 = vmatprep.subr.mxu0 0.0
      %3740 = vmatpush1.msra.mxu0 0.0
      %3741 = vmatprep.subr.mxu0 0.0
      %3742 = vmatpush1.msra.mxu0 0.0
      %3743 = vmatprep.subr.mxu0 0.0
      %3744 = vmatpush1.msra.mxu0 0.0
      %3745 = vmatprep.subr.mxu0 0.0
      %3746 = vmatpush1.msra.mxu0 0.0
      %3747 = vmatprep.subr.mxu0 0.0
      %3748 = vmatpush1.msra.mxu0 0.0
      %3749 = vmatprep.subr.mxu0 0.0
      %3750 = vmatpush1.msra.mxu0 0.0
      %3751 = vmatprep.subr.mxu0 0.0
      %3752 = vmatpush1.msra.mxu0 0.0
      %3753 = vmatprep.subr.mxu0 0.0
      %3754 = vmatpush1.msra.mxu0 0.0
      %3755 = vmatprep.subr.mxu0 0.0
      %3756 = vmatpush1.msra.mxu0 0.0
      %3757 = vmatprep.subr.mxu0 0.0
      %3758 = vmatpush1.msra.mxu0 0.0
      %3759 = vmatprep.subr.mxu0 0.0
      %3760 = vmatpush1.msra.mxu0 0.0
      %3761 = vmatprep.subr.mxu0 0.0
      %3762 = vmatpush1.msra.mxu0 0.0
      %3763 = vmatprep.subr.mxu0 0.0
      %3764 = vmatpush1.msra.mxu0 0.0
      %3765 = vmatprep.subr.mxu0 0.0
      %3766 = vmatpush1.msra.mxu0 0.0
      %3767 = vmatprep.subr.mxu0 0.0
      %3768 = vmatpush1.msra.mxu0 0.0
      %3769 = vmatprep.subr.mxu0 0.0
      %3770 = vmatpush1.msra.mxu0 0.0
      %3771 = vmatprep.subr.mxu0 0.0
      %3772 = vmatpush1.msra.mxu0 0.0
      %3773 = vmatprep.subr.mxu0 0.0
      %3774 = vmatpush1.msra.mxu0 0.0
      %3775 = vmatprep.subr.mxu0 0.0
      %3776 = vmatpush1.msra.mxu0 0.0
      %3777 = vmatprep.subr.mxu0 0.0
      %3778 = vmatpush1.msra.mxu0 0.0
      %3779 = vmatprep.subr.mxu0 0.0
      %3780 = vmatpush1.msra.mxu0 0.0
      %3781 = vmatprep.subr.mxu0 0.0
      %3782 = vmatpush1.msra.mxu0 0.0
      %3783 = vmatprep.subr.mxu0 0.0
      %3784 = vmatpush1.msra.mxu0 0.0
      %3785 = vmatprep.subr.mxu0 0.0
      %3786 = vmatpush1.msra.mxu0 0.0
      %3787 = vmatprep.subr.mxu0 0.0
      %3788 = vmatpush1.msra.mxu0 0.0
      %3789 = vmatprep.mubr.f32.mxu0 0.0
      %3790 = vmatmul.mubr.f32.gmra.mrb[0].mxu0 %v3473
      %v3791 = vpop.f32.mrb[0].mxu0
      %v3792 = vadd.f32 %v3712, %v3791
      %v3793 = vpop.f32.mrb[0].mxu0
      %3794 = vmatprep.mubr.f32.mxu0 0.0
      %3795 = vmatmul.mubr.f32.gmra.mrb[0].mxu0 %v3475
      %v3796 = vpop.f32.mrb[0].mxu0
      %v3797 = vadd.f32 %v3717, %v3796
      %v3798 = vpop.f32.mrb[0].mxu0
      %3799 = vmatprep.mubr.f32.mxu0 0.0
      %3800 = vmatmul.mubr.f32.gmra.mrb[0].mxu0 %v3477
      %v3801 = vpop.f32.mrb[0].mxu0
      %v3802 = vadd.f32 %v3722, %v3801
      %v3803 = vpop.f32.mrb[0].mxu0
      %3804 = vdwg.mxu0
      %v3805 = vadd.f32 %v3629, %v3117
      %v3806 = vadd.f32 %v3631, %v3121
      %v3807 = vadd.f32 %v3792, %v3125
      %v3808 = vadd.f32 %v3635, %v3117
      %v3809 = vadd.f32 %v3637, %v3121
      %v3810 = vadd.f32 %v3797, %v3125
      %v3811 = vadd.f32 %v3641, %v3117
      %v3812 = vadd.f32 %v3643, %v3121
      %v3813 = vadd.f32 %v3802, %v3125
      %3814 = vst [vmem:[%s278] sm:$0xff] %v3129
      %3815 = vst [vmem:[%s278 + $0x8] sm:$0xff] %v3130
      %vm3816 = vcmask 195584
      %3817 = vst.msk [vmem:[%s278 + $0x10] sm:$0xff] %vm3816, %v3131
      %3818 = vst [vmem:[%s278 + $0x18] sm:$0xff] %v3132
      %3819 = vst [vmem:[%s278 + $0x20] sm:$0xff] %v3133
      %3820 = vst.msk [vmem:[%s278 + $0x28] sm:$0xff] %vm3816, %v3134
      %3821 = vst [vmem:[%s278 + $0x30] sm:$0x3] %v3135
      %3822 = vst [vmem:[%s278 + $0x38] sm:$0x3] %v3136
      %vm3823 = vcmask 189440
      %3824 = vst.msk [vmem:[%s278 + $0x40] sm:$0x3] %vm3823, %v3137
      %s3825 = scalar_lea.vmem %s278, 72
      %3826 = vst [vmem:[%s3825] sm:$0xff] %v3805
      %3827 = vst [vmem:[%s3825 + $0x8] sm:$0xff] %v3806
      %3828 = vst.msk [vmem:[%s3825 + $0x10] sm:$0xff] %vm3816, %v3807
      %3829 = vst [vmem:[%s3825 + $0x18] sm:$0xff] %v3808
      %3830 = vst [vmem:[%s3825 + $0x20] sm:$0xff] %v3809
      %3831 = vst.msk [vmem:[%s3825 + $0x28] sm:$0xff] %vm3816, %v3810
      %3832 = vst [vmem:[%s3825 + $0x30] sm:$0x1] %v3811
      %3833 = vst [vmem:[%s3825 + $0x38] sm:$0x1] %v3812
      %vm3834 = vcmask 188416
      %3835 = vst.msk [vmem:[%s3825 + $0x40] sm:$0x1] %vm3834, %v3813
      %vm3836 = vcmp.lt.s32.totalorder %v286, 280
      %vm3837 = vmand %vm287, %vm3836
      %s3838 = scalar_lea.vmem %s3825, 49
      %3839 = vst.msk [vmem:[%s3838] ss:$8 sm:$0x7] %vm3837, 0.0
      %3840 = vst.msk [vmem:[%s3838] ss:$8 sm:$0x0] %vm3837, 0.0
      %p3841 = scmp.lt.s32.totalorder %s18, 1
      %s3842 = scalar_select %p3841, %s18, 1
      %s3843 = smul.addr %s3842, 18
      %s3844 = smul.addr %s3843, 8
      %s3845 = scalar_lea.vmem %s7, %s3844
      // Predicated region
      $region49: #{model_forward.1} parent=47 // pred_check
        %p3846 = pneg %p188
      $region50: #{model_forward.1} parent=47 // pred_check_branch
        %3848 = sbr.rel (%p3846) target = $region52
      $region51: #{model_forward.1} parent=47 // pred_region
        _
      $region52: #{model_forward.1} parent=47 // pred_fallthru
        _
    $region48: #{model_forward.1} parent=5 // pred_fallthru
      _
    %p3849 = scmp.le.s32.totalorder 2, %s13
    // Predicated region
    $region53: #{model_forward.1} parent=5 // pred_check
      %p3850 = pneg %p3849
    $region54: #{model_forward.1} parent=5 // pred_check_branch
      %3852 = sbr.rel (%p3850) target = $region56
    $region55: #{model_forward.1} parent=5 // pred_region
      %s3853 = ssub.s32 %s13, 2
      // Predicated region
      $region57: #{model_forward.1} parent=55 // pred_check
        %p3854 = pneg %p194
      $region58: #{model_forward.1} parent=55 // pred_check_branch
        %3856 = sbr.rel (%p3854) target = $region60
      $region59: #{model_forward.1} parent=55 // pred_region
        %p3857 = scmp.lt.s32.totalorder %s19, 1
        %s3858 = scalar_select %p3857, %s19, 1
        %s3859 = smul.addr %s3858, 18
        %s3860 = smul.addr %s3859, 8
        %s3861 = scalar_lea.vmem %s7, %s3860
      $region60: #{model_forward.1} parent=55 // pred_fallthru
        _
    $region56: #{model_forward.1} parent=5 // pred_fallthru
      _
  $region6: #{model_forward.1} parent=0 // loop_footer
    %s17 = sadd.s32 1, %s13
  $region7: #{model_forward.1} parent=0 // loop_footer_branch
    %12 = sbr.rel target = $region3
  $region8: #{model_forward.1} parent=0 // loop_exit
    _

</llo_original>
